<compile_context>
chip_gen: v5e
topology: v5e:2x2
jax: 0.10.0
libtpu: 0.0.40
codegen_flags: <defaults>
</compile_context>

<pallas_src>
import functools

import jax
import jax.numpy as jnp
from jax.experimental import pallas as pl
from jax.experimental.pallas import tpu as pltpu

EPS = 1e-5          # nn.BatchNorm2d default eps
NEG_SLOPE = 0.2     # nn.LeakyReLU(0.2)


def _round_up(x, m):
    return (x + m - 1) // m * m


def _fused_conv_stats_kernel(main_ref, halo_ref, w_ref, mask_ref, y_ref, stats_ref,
                             *, offsets):
    """Direct stride-1 conv on flattened padded-NHWC rows + partial BN stats.

    main_ref : (tm, Cin)            bf16  rows [t*tm, t*tm+tm) of the flat activation
    halo_ref : (halo, Cin)          bf16  rows [t*tm+tm, t*tm+tm+halo)
    w_ref    : (kh*kw, Cin, Cout)   bf16  per-tap weight matrices
    mask_ref : (tm, 1)              f32   1.0 for rows that are real output positions
    y_ref    : (tm, Cout)           bf16  conv output (pre-BN)
    stats_ref: (1, 2, Cout)         f32   per-tile [sum, sum-of-squares]
    """
    tm = main_ref.shape[0]
    # Contiguous slab of tm+halo activation rows; taps are static-offset windows of it.
    slab = jnp.concatenate([main_ref[...], halo_ref[...]], axis=0).astype(jnp.float32)
    acc = None
    for o, off in enumerate(offsets):
        x_o = slab[off:off + tm, :].astype(jnp.bfloat16)   # lossless (data was bf16)
        w_o = w_ref[o]                                     # (Cin, Cout) bf16
        p = jnp.dot(x_o, w_o, preferred_element_type=jnp.float32)
        acc = p if acc is None else acc + p
    y_ref[...] = acc.astype(y_ref.dtype)

    # Partial BN statistics; extended-grid garbage rows are zeroed by the mask.
    ym = acc * mask_ref[...]
    s1 = jnp.sum(ym, axis=0, keepdims=True)
    s2 = jnp.sum(ym * ym, axis=0, keepdims=True)
    stats_ref[0, :, :] = jnp.concatenate([s1, s2], axis=0)


def _im2col_conv_stats_kernel(x_ref, w_ref, y_ref, stats_ref):
    """Fallback (stride != 1): pre-built im2col columns -> matmul + partial BN stats."""
    acc = jnp.dot(x_ref[...], w_ref[...], preferred_element_type=jnp.float32)
    y_ref[...] = acc.astype(y_ref.dtype)
    # With no conv bias, zero-padded rows contribute exactly 0 -> no masking needed.
    s1 = jnp.sum(acc, axis=0, keepdims=True)
    s2 = jnp.sum(acc * acc, axis=0, keepdims=True)
    stats_ref[0, :, :] = jnp.concatenate([s1, s2], axis=0)


def _bn_lrelu_kernel(y_ref, scale_ref, shift_ref, o_ref):
    z = y_ref[...].astype(jnp.float32) * scale_ref[...] + shift_ref[...]
    o_ref[...] = jnp.where(z > 0, z, NEG_SLOPE * z)


@functools.partial(jax.jit, static_argnames=("stride", "padding", "tm"))
def bnlrcnn_forward(x_nchw, weight, bias, gamma, beta, *, stride, padding, tm=256):
    del bias  # a per-channel pre-BN bias cancels exactly under training-mode batch norm
    N, Cin, H, W = x_nchw.shape
    Cout, _, kh, kw = weight.shape
    Hp, Wp = H + 2 * padding, W + 2 * padding
    Ho = (Hp - kh) // stride + 1
    Wo = (Wp - kw) // stride + 1
    M = N * Ho * Wo                       # true number of output positions
    K = kh * kw * Cin

    # ---- glue (plain JAX): NCHW -> NHWC, spatial zero pad, weight re-layout ----
    x = jnp.transpose(x_nchw, (0, 2, 3, 1))
    xp = jnp.pad(x, ((0, 0), (padding, padding), (padding, padding), (0, 0)))
    # weight [Cout,Cin,kh,kw] -> per-tap [kh*kw, Cin, Cout] (tap-major, matches offsets)
    w_taps = jnp.transpose(weight, (2, 3, 1, 0)).reshape(kh * kw, Cin, Cout)
    w_taps = w_taps.astype(jnp.bfloat16)

    cparams = pltpu.CompilerParams(dimension_semantics=("parallel",))
    max_off = (kh - 1) * Wp + (kw - 1)
    use_fused = (stride == 1) and (max_off < tm) and (tm % 8 == 0)

    if use_fused:
        # Extended output grid = every padded spatial position, so per-output base rows
        # are contiguous; invalid positions are masked out of the stats and sliced away.
        M_ext = N * Hp * Wp
        Mp = _round_up(M_ext, tm)
        n_tiles = Mp // tm
        halo = max(8, _round_up(max_off, 8))
        while tm % halo:
            halo += 8
        mult = tm // halo

        a = xp.reshape(M_ext, Cin)
        a = jnp.pad(a, ((0, Mp + halo - M_ext), (0, 0))).astype(jnp.bfloat16)

        rows = jnp.arange(Mp, dtype=jnp.int32)
        rem = rows % (Hp * Wp)
        valid = (rows < M_ext) & (rem // Wp < Ho) & (rem % Wp < Wo)
        mask = valid.astype(jnp.float32).reshape(Mp, 1)

        offsets = tuple(i * Wp + j for i in range(kh) for j in range(kw))
        kern = functools.partial(_fused_conv_stats_kernel, offsets=offsets)
        in_specs = [
            pl.BlockSpec((tm, Cin), lambda i: (i, 0)),                   # main rows
            pl.BlockSpec((halo, Cin), lambda i: ((i + 1) * mult, 0)),    # halo rows
            pl.BlockSpec((kh * kw, Cin, Cout), lambda i: (0, 0, 0)),     # weights (resident)
            pl.BlockSpec((tm, 1), lambda i: (i, 0)),                     # validity mask
        ]
        operands = (a, a, w_taps, mask)
    else:
        # TODO(synk): the strided path still materializes im2col columns in HBM; a fully
        # fused strided conv needs element-offset windows or manual DMA.
        Mp = _round_up(M, tm)
        n_tiles = Mp // tm
        patches = [xp[:, i:i + Ho * stride:stride, j:j + Wo * stride:stride, :]
                   for i in range(kh) for j in range(kw)]
        cols = jnp.stack(patches, axis=3).reshape(M, K)
        x_cols = jnp.pad(cols, ((0, Mp - M), (0, 0))).astype(jnp.bfloat16)
        kern = _im2col_conv_stats_kernel
        in_specs = [
            pl.BlockSpec((tm, K), lambda i: (i, 0)),
            pl.BlockSpec((K, Cout), lambda i: (0, 0)),
        ]
        operands = (x_cols, w_taps.reshape(K, Cout))

    # ---- phase 1: conv + per-tile BN partial sums ----
    y_bf16, stats = pl.pallas_call(
        kern,
        out_shape=(
            jax.ShapeDtypeStruct((Mp, Cout), jnp.bfloat16),      # unpadded channels, bf16
            jax.ShapeDtypeStruct((n_tiles, 2, Cout), jnp.float32),
        ),
        grid=(n_tiles,),
        in_specs=in_specs,
        out_specs=(
            pl.BlockSpec((tm, Cout), lambda i: (i, 0)),
            pl.BlockSpec((1, 2, Cout), lambda i: (i, 0, 0)),
        ),
        compiler_params=cparams,
    )(*operands)

    # ---- tiny per-channel BN math (plain JAX, negligible work) ----
    tot = jnp.sum(stats, axis=0)                         # (2, Cout)
    mean = tot[0] / M
    # TODO(synk): E[y^2]-E[y]^2 in f32 is cancellation-prone when |mean| >> std; switch
    # to a shifted / Welford accumulation if tolerances tighten.
    var = jnp.maximum(tot[1] / M - mean * mean, 0.0)     # biased batch variance
    scale = gamma.astype(jnp.float32) * jax.lax.rsqrt(var + EPS)
    shift = beta.astype(jnp.float32) - mean * scale
    # TODO(synk): PyTorch training-mode BN also updates running_mean/running_var buffers
    # (a module side effect, not part of the returned tensor); not modeled here.

    # ---- phase 2: normalize + affine + LeakyReLU ----
    out_flat = pl.pallas_call(
        _bn_lrelu_kernel,
        out_shape=jax.ShapeDtypeStruct((Mp, Cout), jnp.float32),
        grid=(n_tiles,),
        in_specs=[
            pl.BlockSpec((tm, Cout), lambda i: (i, 0)),
            pl.BlockSpec((1, Cout), lambda i: (0, 0)),
            pl.BlockSpec((1, Cout), lambda i: (0, 0)),
        ],
        out_specs=pl.BlockSpec((tm, Cout), lambda i: (i, 0)),
        compiler_params=cparams,
    )(y_bf16, scale.reshape(1, Cout), shift.reshape(1, Cout))

    # ---- back to NCHW (single XLA slice+transpose pass over the unpadded result) ----
    # TODO(synk): returning NHWC (or fusing the transpose into phase 2) would save one
    # more HBM pass, but the module's forward contract is NCHW.
    if use_fused:
        out = out_flat[:M_ext].reshape(N, Hp, Wp, Cout)[:, :Ho, :Wo, :]
    else:
        out = out_flat[:M].reshape(N, Ho, Wo, Cout)
    return jnp.transpose(out, (0, 3, 1, 2))


def reference(x_nchw, weight, bias, gamma, beta, stride, padding):
    y = jax.lax.conv_general_dilated(
        x_nchw, weight, window_strides=(stride, stride),
        padding=[(padding, padding), (padding, padding)],
        dimension_numbers=("NCHW", "OIHW", "NCHW"))
    y = y + bias.reshape(1, -1, 1, 1)
    mean = jnp.mean(y, axis=(0, 2, 3), keepdims=True)
    var = jnp.mean((y - mean) ** 2, axis=(0, 2, 3), keepdims=True)
    y_hat = (y - mean) / jnp.sqrt(var + EPS)
    z = y_hat * gamma.reshape(1, -1, 1, 1) + beta.reshape(1, -1, 1, 1)
    return jnp.where(z > 0, z, NEG_SLOPE * z)


if __name__ == "__main__":
    key = jax.random.PRNGKey(0)
    k1, k2, k3, k4, k5 = jax.random.split(key, 5)

    # Module-consistent small shapes: in_channels=4, out_channels=8, kernel=3.
    N, Cin, H, W = 2, 4, 16, 16
    Cout, ksize = 8, 3

    x = jax.random.normal(k1, (N, Cin, H, W), jnp.float32)
    weight = 0.1 * jax.random.normal(k2, (Cout, Cin, ksize, ksize), jnp.float32)
    bias = 0.1 * jax.random.normal(k3, (Cout,), jnp.float32)
    gamma = 1.0 + 0.1 * jax.random.normal(k4, (Cout,), jnp.float32)
    beta = 0.1 * jax.random.normal(k5, (Cout,), jnp.float32)

    # stride=1 exercises the fused (no-im2col) path; stride=2 exercises the fallback.
    for stride, padding in ((1, 1), (2, 1)):
        out = bnlrcnn_forward(x, weight, bias, gamma, beta, stride=stride, padding=padding)
        out = jax.block_until_ready(out)
        ref = reference(x, weight, bias, gamma, beta, stride, padding)
        assert out.shape == ref.shape, (out.shape, ref.shape)
        max_err = float(jnp.max(jnp.abs(out - ref)))
        assert max_err < 5e-2, f"stride={stride}: max abs err too large: {max_err}"

    print("KERNEL_OK")
</pallas_src>

<mosaic_0001>
module attributes {stable_mosaic.version = 11 : i64} {
  func.func @_fused_conv_stats_kernel(%arg0: i32, %arg1: memref<256x4xbf16, #tpu.memory_space<vmem>>, %arg2: memref<64x4xbf16, #tpu.memory_space<vmem>>, %arg3: memref<9x4x8xbf16, #tpu.memory_space<vmem>>, %arg4: memref<256x1xf32, #tpu.memory_space<vmem>>, %arg5: memref<256x8xbf16, #tpu.memory_space<vmem>>, %arg6: memref<1x2x8xf32, #tpu.memory_space<vmem>>) attributes {dimension_semantics = [#tpu.dimension_semantics<parallel>], iteration_bounds = array<i64: 3>, scalar_prefetch = 0 : i64, scratch_operands = 0 : i64, tpu.core_type = #tpu.core_type<tc>, window_params = [{transform_indices = @transform_0, window_bounds = array<i64: 256, 4>}, {transform_indices = @transform_1, window_bounds = array<i64: 64, 4>}, {pipeline_mode = #tpu.pipeline_mode<synchronous>, transform_indices = @transform_2, window_bounds = array<i64: 9, 4, 8>}, {transform_indices = @transform_3, window_bounds = array<i64: 256, 1>}, {transform_indices = @transform_4, window_bounds = array<i64: 256, 8>}, {transform_indices = @transform_5, window_bounds = array<i64: 1, 2, 8>}]} {
    %c0 = arith.constant 0 : index
    %c0_0 = arith.constant 0 : index
    %0 = vector.load %arg1[%c0, %c0_0] : memref<256x4xbf16, #tpu.memory_space<vmem>>, vector<256x4xbf16>
    %c0_1 = arith.constant 0 : index
    %c0_2 = arith.constant 0 : index
    %1 = vector.load %arg2[%c0_1, %c0_2] : memref<64x4xbf16, #tpu.memory_space<vmem>>, vector<64x4xbf16>
    %2 = tpu.concatenate %0, %1 in 0 : vector<256x4xbf16>, vector<64x4xbf16> -> vector<320x4xbf16>
    %3 = arith.extf %2 : vector<320x4xbf16> to vector<320x4xf32>
    %4 = vector.extract_strided_slice %3 {offsets = [0, 0], sizes = [256, 4], strides = [1, 1]} : vector<320x4xf32> to vector<256x4xf32>
    %5 = arith.truncf %4 : vector<256x4xf32> to vector<256x4xbf16>
    %c0_3 = arith.constant 0 : index
    %c0_4 = arith.constant 0 : index
    %c0_5 = arith.constant 0 : index
    %6 = vector.load %arg3[%c0_3, %c0_4, %c0_5] : memref<9x4x8xbf16, #tpu.memory_space<vmem>>, vector<1x4x8xbf16>
    %7 = vector.shape_cast %6 : vector<1x4x8xbf16> to vector<4x8xbf16>
    %cst = arith.constant dense<0.000000e+00> : vector<256x8xf32>
    %8 = tpu.matmul %5, %7, %cst {dimension_numbers = #tpu.dot_dimension_numbers<[1], [0], [0], [1], [0, 0, 1, 1], [], []>} : vector<256x4xbf16>, vector<4x8xbf16>, vector<256x8xf32> -> vector<256x8xf32>
    %9 = vector.extract_strided_slice %3 {offsets = [1, 0], sizes = [256, 4], strides = [1, 1]} : vector<320x4xf32> to vector<256x4xf32>
    %10 = arith.truncf %9 : vector<256x4xf32> to vector<256x4xbf16>
    %c1 = arith.constant 1 : index
    %c0_6 = arith.constant 0 : index
    %c0_7 = arith.constant 0 : index
    %11 = vector.load %arg3[%c1, %c0_6, %c0_7] : memref<9x4x8xbf16, #tpu.memory_space<vmem>>, vector<1x4x8xbf16>
    %12 = vector.shape_cast %11 : vector<1x4x8xbf16> to vector<4x8xbf16>
    %cst_8 = arith.constant dense<0.000000e+00> : vector<256x8xf32>
    %13 = tpu.matmul %10, %12, %cst_8 {dimension_numbers = #tpu.dot_dimension_numbers<[1], [0], [0], [1], [0, 0, 1, 1], [], []>} : vector<256x4xbf16>, vector<4x8xbf16>, vector<256x8xf32> -> vector<256x8xf32>
    %14 = arith.addf %8, %13 : vector<256x8xf32>
    %15 = vector.extract_strided_slice %3 {offsets = [2, 0], sizes = [256, 4], strides = [1, 1]} : vector<320x4xf32> to vector<256x4xf32>
    %16 = arith.truncf %15 : vector<256x4xf32> to vector<256x4xbf16>
    %c2 = arith.constant 2 : index
    %c0_9 = arith.constant 0 : index
    %c0_10 = arith.constant 0 : index
    %17 = vector.load %arg3[%c2, %c0_9, %c0_10] : memref<9x4x8xbf16, #tpu.memory_space<vmem>>, vector<1x4x8xbf16>
    %18 = vector.shape_cast %17 : vector<1x4x8xbf16> to vector<4x8xbf16>
    %cst_11 = arith.constant dense<0.000000e+00> : vector<256x8xf32>
    %19 = tpu.matmul %16, %18, %cst_11 {dimension_numbers = #tpu.dot_dimension_numbers<[1], [0], [0], [1], [0, 0, 1, 1], [], []>} : vector<256x4xbf16>, vector<4x8xbf16>, vector<256x8xf32> -> vector<256x8xf32>
    %20 = arith.addf %14, %19 : vector<256x8xf32>
    %21 = vector.extract_strided_slice %3 {offsets = [18, 0], sizes = [256, 4], strides = [1, 1]} : vector<320x4xf32> to vector<256x4xf32>
    %22 = arith.truncf %21 : vector<256x4xf32> to vector<256x4xbf16>
    %c3 = arith.constant 3 : index
    %c0_12 = arith.constant 0 : index
    %c0_13 = arith.constant 0 : index
    %23 = vector.load %arg3[%c3, %c0_12, %c0_13] : memref<9x4x8xbf16, #tpu.memory_space<vmem>>, vector<1x4x8xbf16>
    %24 = vector.shape_cast %23 : vector<1x4x8xbf16> to vector<4x8xbf16>
    %cst_14 = arith.constant dense<0.000000e+00> : vector<256x8xf32>
    %25 = tpu.matmul %22, %24, %cst_14 {dimension_numbers = #tpu.dot_dimension_numbers<[1], [0], [0], [1], [0, 0, 1, 1], [], []>} : vector<256x4xbf16>, vector<4x8xbf16>, vector<256x8xf32> -> vector<256x8xf32>
    %26 = arith.addf %20, %25 : vector<256x8xf32>
    %27 = vector.extract_strided_slice %3 {offsets = [19, 0], sizes = [256, 4], strides = [1, 1]} : vector<320x4xf32> to vector<256x4xf32>
    %28 = arith.truncf %27 : vector<256x4xf32> to vector<256x4xbf16>
    %c4 = arith.constant 4 : index
    %c0_15 = arith.constant 0 : index
    %c0_16 = arith.constant 0 : index
    %29 = vector.load %arg3[%c4, %c0_15, %c0_16] : memref<9x4x8xbf16, #tpu.memory_space<vmem>>, vector<1x4x8xbf16>
    %30 = vector.shape_cast %29 : vector<1x4x8xbf16> to vector<4x8xbf16>
    %cst_17 = arith.constant dense<0.000000e+00> : vector<256x8xf32>
    %31 = tpu.matmul %28, %30, %cst_17 {dimension_numbers = #tpu.dot_dimension_numbers<[1], [0], [0], [1], [0, 0, 1, 1], [], []>} : vector<256x4xbf16>, vector<4x8xbf16>, vector<256x8xf32> -> vector<256x8xf32>
    %32 = arith.addf %26, %31 : vector<256x8xf32>
    %33 = vector.extract_strided_slice %3 {offsets = [20, 0], sizes = [256, 4], strides = [1, 1]} : vector<320x4xf32> to vector<256x4xf32>
    %34 = arith.truncf %33 : vector<256x4xf32> to vector<256x4xbf16>
    %c5 = arith.constant 5 : index
    %c0_18 = arith.constant 0 : index
    %c0_19 = arith.constant 0 : index
    %35 = vector.load %arg3[%c5, %c0_18, %c0_19] : memref<9x4x8xbf16, #tpu.memory_space<vmem>>, vector<1x4x8xbf16>
    %36 = vector.shape_cast %35 : vector<1x4x8xbf16> to vector<4x8xbf16>
    %cst_20 = arith.constant dense<0.000000e+00> : vector<256x8xf32>
    %37 = tpu.matmul %34, %36, %cst_20 {dimension_numbers = #tpu.dot_dimension_numbers<[1], [0], [0], [1], [0, 0, 1, 1], [], []>} : vector<256x4xbf16>, vector<4x8xbf16>, vector<256x8xf32> -> vector<256x8xf32>
    %38 = arith.addf %32, %37 : vector<256x8xf32>
    %39 = vector.extract_strided_slice %3 {offsets = [36, 0], sizes = [256, 4], strides = [1, 1]} : vector<320x4xf32> to vector<256x4xf32>
    %40 = arith.truncf %39 : vector<256x4xf32> to vector<256x4xbf16>
    %c6 = arith.constant 6 : index
    %c0_21 = arith.constant 0 : index
    %c0_22 = arith.constant 0 : index
    %41 = vector.load %arg3[%c6, %c0_21, %c0_22] : memref<9x4x8xbf16, #tpu.memory_space<vmem>>, vector<1x4x8xbf16>
    %42 = vector.shape_cast %41 : vector<1x4x8xbf16> to vector<4x8xbf16>
    %cst_23 = arith.constant dense<0.000000e+00> : vector<256x8xf32>
    %43 = tpu.matmul %40, %42, %cst_23 {dimension_numbers = #tpu.dot_dimension_numbers<[1], [0], [0], [1], [0, 0, 1, 1], [], []>} : vector<256x4xbf16>, vector<4x8xbf16>, vector<256x8xf32> -> vector<256x8xf32>
    %44 = arith.addf %38, %43 : vector<256x8xf32>
    %45 = vector.extract_strided_slice %3 {offsets = [37, 0], sizes = [256, 4], strides = [1, 1]} : vector<320x4xf32> to vector<256x4xf32>
    %46 = arith.truncf %45 : vector<256x4xf32> to vector<256x4xbf16>
    %c7 = arith.constant 7 : index
    %c0_24 = arith.constant 0 : index
    %c0_25 = arith.constant 0 : index
    %47 = vector.load %arg3[%c7, %c0_24, %c0_25] : memref<9x4x8xbf16, #tpu.memory_space<vmem>>, vector<1x4x8xbf16>
    %48 = vector.shape_cast %47 : vector<1x4x8xbf16> to vector<4x8xbf16>
    %cst_26 = arith.constant dense<0.000000e+00> : vector<256x8xf32>
    %49 = tpu.matmul %46, %48, %cst_26 {dimension_numbers = #tpu.dot_dimension_numbers<[1], [0], [0], [1], [0, 0, 1, 1], [], []>} : vector<256x4xbf16>, vector<4x8xbf16>, vector<256x8xf32> -> vector<256x8xf32>
    %50 = arith.addf %44, %49 : vector<256x8xf32>
    %51 = vector.extract_strided_slice %3 {offsets = [38, 0], sizes = [256, 4], strides = [1, 1]} : vector<320x4xf32> to vector<256x4xf32>
    %52 = arith.truncf %51 : vector<256x4xf32> to vector<256x4xbf16>
    %c8 = arith.constant 8 : index
    %c0_27 = arith.constant 0 : index
    %c0_28 = arith.constant 0 : index
    %53 = vector.load %arg3[%c8, %c0_27, %c0_28] : memref<9x4x8xbf16, #tpu.memory_space<vmem>>, vector<1x4x8xbf16>
    %54 = vector.shape_cast %53 : vector<1x4x8xbf16> to vector<4x8xbf16>
    %cst_29 = arith.constant dense<0.000000e+00> : vector<256x8xf32>
    %55 = tpu.matmul %52, %54, %cst_29 {dimension_numbers = #tpu.dot_dimension_numbers<[1], [0], [0], [1], [0, 0, 1, 1], [], []>} : vector<256x4xbf16>, vector<4x8xbf16>, vector<256x8xf32> -> vector<256x8xf32>
    %56 = arith.addf %50, %55 : vector<256x8xf32>
    %57 = arith.truncf %56 : vector<256x8xf32> to vector<256x8xbf16>
    %c0_30 = arith.constant 0 : index
    %c0_31 = arith.constant 0 : index
    %58 = vector.load %arg5[%c0_30, %c0_31] : memref<256x8xbf16, #tpu.memory_space<vmem>>, vector<256x8xbf16>
    tpu.vector_store %arg5[%c0_30, %c0_31], %57 {strides = array<i32>} : memref<256x8xbf16, #tpu.memory_space<vmem>>, vector<256x8xbf16>,
    %c0_32 = arith.constant 0 : index
    %c0_33 = arith.constant 0 : index
    %59 = vector.load %arg4[%c0_32, %c0_33] : memref<256x1xf32, #tpu.memory_space<vmem>>, vector<256x1xf32>
    %60 = vector.broadcast %59 : vector<256x1xf32> to vector<256x8xf32>
    %61 = arith.mulf %56, %60 : vector<256x8xf32>
    %cst_34 = arith.constant dense<0.000000e+00> : vector<8xf32>
    %62 = vector.multi_reduction <add>, %61, %cst_34 [0] : vector<256x8xf32> to vector<8xf32>
    %63 = vector.shape_cast %62 : vector<8xf32> to vector<1x8xf32>
    %64 = arith.mulf %61, %61 : vector<256x8xf32>
    %cst_35 = arith.constant dense<0.000000e+00> : vector<8xf32>
    %65 = vector.multi_reduction <add>, %64, %cst_35 [0] : vector<256x8xf32> to vector<8xf32>
    %66 = vector.shape_cast %65 : vector<8xf32> to vector<1x8xf32>
    %67 = tpu.concatenate %63, %66 in 0 : vector<1x8xf32>, vector<1x8xf32> -> vector<2x8xf32>
    %c0_36 = arith.constant 0 : index
    %c0_37 = arith.constant 0 : index
    %c0_38 = arith.constant 0 : index
    %68 = vector.load %arg6[%c0_36, %c0_37, %c0_38] : memref<1x2x8xf32, #tpu.memory_space<vmem>>, vector<1x2x8xf32>
    %69 = vector.shape_cast %68 : vector<1x2x8xf32> to vector<2x8xf32>
    %70 = vector.shape_cast %67 : vector<2x8xf32> to vector<1x2x8xf32>
    tpu.vector_store %arg6[%c0_36, %c0_37, %c0_38], %70 {strides = array<i32>} : memref<1x2x8xf32, #tpu.memory_space<vmem>>, vector<1x2x8xf32>,
    return
  }
  func.func @transform_0(%arg0: i32) -> (i32, i32) {
    %c0_i32 = arith.constant 0 : i32
    %c0_i32_0 = arith.constant 0 : i32
    return %arg0, %c0_i32 : i32, i32
  }
  func.func @transform_1(%arg0: i32) -> (i32, i32) {
    %c1_i32 = arith.constant 1 : i32
    %0 = arith.addi %arg0, %c1_i32 : i32
    %c4_i32 = arith.constant 4 : i32
    %1 = arith.muli %0, %c4_i32 : i32
    %c0_i32 = arith.constant 0 : i32
    %c0_i32_0 = arith.constant 0 : i32
    return %1, %c0_i32 : i32, i32
  }
  func.func @transform_2(%arg0: i32) -> (i32, i32, i32) {
    %c0_i32 = arith.constant 0 : i32
    %c0_i32_0 = arith.constant 0 : i32
    %c0_i32_1 = arith.constant 0 : i32
    %c0_i32_2 = arith.constant 0 : i32
    return %c0_i32, %c0_i32_0, %c0_i32_1 : i32, i32, i32
  }
  func.func @transform_3(%arg0: i32) -> (i32, i32) {
    %c0_i32 = arith.constant 0 : i32
    %c0_i32_0 = arith.constant 0 : i32
    return %arg0, %c0_i32 : i32, i32
  }
  func.func @transform_4(%arg0: i32) -> (i32, i32) {
    %c0_i32 = arith.constant 0 : i32
    %c0_i32_0 = arith.constant 0 : i32
    return %arg0, %c0_i32 : i32, i32
  }
  func.func @transform_5(%arg0: i32) -> (i32, i32, i32) {
    %c0_i32 = arith.constant 0 : i32
    %c0_i32_0 = arith.constant 0 : i32
    %c0_i32_1 = arith.constant 0 : i32
    return %arg0, %c0_i32, %c0_i32_0 : i32, i32, i32
  }
}

module attributes {stable_mosaic.version = 11 : i64} {
  func.func @_bn_lrelu_kernel(%arg0: i32, %arg1: memref<256x8xbf16, #tpu.memory_space<vmem>>, %arg2: memref<1x8xf32, #tpu.memory_space<vmem>>, %arg3: memref<1x8xf32, #tpu.memory_space<vmem>>, %arg4: memref<256x8xf32, #tpu.memory_space<vmem>>) attributes {dimension_semantics = [#tpu.dimension_semantics<parallel>], iteration_bounds = array<i64: 3>, scalar_prefetch = 0 : i64, scratch_operands = 0 : i64, tpu.core_type = #tpu.core_type<tc>, window_params = [{transform_indices = @transform_0, window_bounds = array<i64: 256, 8>}, {pipeline_mode = #tpu.pipeline_mode<synchronous>, transform_indices = @transform_1, window_bounds = array<i64: 1, 8>}, {pipeline_mode = #tpu.pipeline_mode<synchronous>, transform_indices = @transform_2, window_bounds = array<i64: 1, 8>}, {transform_indices = @transform_3, window_bounds = array<i64: 256, 8>}]} {
    %c0 = arith.constant 0 : index
    %c0_0 = arith.constant 0 : index
    %0 = vector.load %arg1[%c0, %c0_0] : memref<256x8xbf16, #tpu.memory_space<vmem>>, vector<256x8xbf16>
    %1 = arith.extf %0 : vector<256x8xbf16> to vector<256x8xf32>
    %c0_1 = arith.constant 0 : index
    %c0_2 = arith.constant 0 : index
    %2 = vector.load %arg2[%c0_1, %c0_2] : memref<1x8xf32, #tpu.memory_space<vmem>>, vector<1x8xf32>
    %3 = vector.broadcast %2 : vector<1x8xf32> to vector<256x8xf32>
    %4 = arith.mulf %1, %3 : vector<256x8xf32>
    %c0_3 = arith.constant 0 : index
    %c0_4 = arith.constant 0 : index
    %5 = vector.load %arg3[%c0_3, %c0_4] : memref<1x8xf32, #tpu.memory_space<vmem>>, vector<1x8xf32>
    %6 = vector.broadcast %5 : vector<1x8xf32> to vector<256x8xf32>
    %7 = arith.addf %4, %6 : vector<256x8xf32>
    %cst = arith.constant 0.000000e+00 : f32
    %8 = vector.broadcast %cst : f32 to vector<256x8xf32>
    %9 = arith.cmpf ogt, %7, %8 : vector<256x8xf32>
    %cst_5 = arith.constant 2.000000e-01 : f32
    %10 = vector.broadcast %cst_5 : f32 to vector<256x8xf32>
    %11 = arith.mulf %10, %7 : vector<256x8xf32>
    %12 = arith.select %9, %7, %11 : vector<256x8xi1>, vector<256x8xf32>
    %c0_6 = arith.constant 0 : index
    %c0_7 = arith.constant 0 : index
    %13 = vector.load %arg4[%c0_6, %c0_7] : memref<256x8xf32, #tpu.memory_space<vmem>>, vector<256x8xf32>
    tpu.vector_store %arg4[%c0_6, %c0_7], %12 {strides = array<i32>} : memref<256x8xf32, #tpu.memory_space<vmem>>, vector<256x8xf32>,
    return
  }
  func.func @transform_0(%arg0: i32) -> (i32, i32) {
    %c0_i32 = arith.constant 0 : i32
    %c0_i32_0 = arith.constant 0 : i32
    return %arg0, %c0_i32 : i32, i32
  }
  func.func @transform_1(%arg0: i32) -> (i32, i32) {
    %c0_i32 = arith.constant 0 : i32
    %c0_i32_0 = arith.constant 0 : i32
    %c0_i32_1 = arith.constant 0 : i32
    return %c0_i32, %c0_i32_0 : i32, i32
  }
  func.func @transform_2(%arg0: i32) -> (i32, i32) {
    %c0_i32 = arith.constant 0 : i32
    %c0_i32_0 = arith.constant 0 : i32
    %c0_i32_1 = arith.constant 0 : i32
    return %c0_i32, %c0_i32_0 : i32, i32
  }
  func.func @transform_3(%arg0: i32) -> (i32, i32) {
    %c0_i32 = arith.constant 0 : i32
    %c0_i32_0 = arith.constant 0 : i32
    return %arg0, %c0_i32 : i32, i32
  }
}

</mosaic_0001>

<llo_original>
// kernel: bnlrcnn_forward.3
$region0: #{bnlrcnn_forward.3}
  #allocation0 [shape = 'u32[]', space=smem, size = 0x4, offset = 0x4, fixed_abs, tag = 'smem constant byte address 0x4 - core index']
  #allocation1 [shape = 'u32[72,128]{1,0:T(1,128)}', space=vmem, size = 0x9000, scoped, tag = 'internal scratch']
  %s0 = inlined_call_operand.vmem [shape: bf16[768,8], index: 0, kind: input, shape index: {}]
  %s1 = inlined_call_operand.vmem [shape: f32[1,8], index: 1, kind: input, shape index: {}]
  %s2 = inlined_call_operand.vmem [shape: f32[1,8], index: 2, kind: input, shape index: {}]
  %s3 = inlined_call_operand.vmem [shape: f32[768,8], index: 3, kind: output, shape index: {}]
  %s4 = sld [smem:[#allocation0]]
  $region45: #{bnlrcnn_forward.3} parent=0
    _
  %s6 = ssub.s32 1, %s4
  %s7 = scalar_select 0, %s6, %s4
  loop: start=0, step=1, limit=5
  $region2: #{bnlrcnn_forward.3} parent=0 // loop_pre_header
    _
  $region3: #{bnlrcnn_forward.3} parent=0 // loop_header
    %s9 = sphi 0, %s13
    %p10 = scmp.ge.s32.totalorder %s9, 5
    %s19 = sphi 0, %s21
    %s22 = sphi 0, %s19
    %s23 = sphi 0, %s22
    %s39 = sphi 0, %s23
    %s43 = sphi 0, %s43
    %s45 = sphi 0, %s43
    %s46 = sphi 0, %s45
    %s60 = sphi 0, %s46
    %s64 = sphi 0, %s64
    %s66 = sphi 0, %s64
    %s67 = sphi 0, %s66
    %s81 = sphi 0, %s67
    %s87 = sphi 0, %s89
    %s90 = sphi 0, %s87
    %s91 = sphi 0, %s90
    %s107 = sphi 0, %s91
  $region4: #{bnlrcnn_forward.3} parent=0 // loop_header_branch
    %12 = sbr.rel (%p10) target = $region8
  $region5: #{bnlrcnn_forward.3} parent=0 // loop_body
    %s14 = ssub.s32 %s9, 1
    %s15 = ssub.s32 %s9, 2
    %s16 = sadd.s32 %s9, 1
    %s17 = ssub.s32 %s9, %s16
    %p18 = scmp.eq.s32.totalorder %s17, 0
    %s20 = sadd.s32 %s19, 1
    %s21 = scalar_select %p18, %s19, %s20
    %p24 = pneg %p18
    %p25 = scmp.eq.s32.totalorder %s9, 2
    %p26 = por %p24, %p25
    %p27 = scmp.ne.s32.totalorder %s19, %s22
    %p28 = scmp.eq.s32.totalorder %s9, 0
    %p29 = por %p27, %p28
    %p30 = scmp.ne.s32.totalorder %s19, %s22
    %p31 = scmp.eq.s32.totalorder %s14, 2
    %p32 = por %p30, %p31
    %p33 = scmp.ne.s32.totalorder %s22, %s23
    %p34 = scmp.eq.s32.totalorder %s14, 0
    %p35 = por %p33, %p34
    %p36 = scmp.ne.s32.totalorder %s22, %s23
    %p37 = scmp.eq.s32.totalorder %s15, 2
    %p38 = por %p36, %p37
    %p40 = scmp.ne.s32.totalorder %s23, %s39
    %p41 = scmp.eq.s32.totalorder %s15, 0
    %p42 = por %p40, %p41
    %s44 = sadd.s32 %s43, 1
    %p47 = scmp.eq.s32.totalorder %s9, 2
    %p48 = scmp.ne.s32.totalorder %s43, %s45
    %p49 = scmp.eq.s32.totalorder %s9, 0
    %p50 = por %p48, %p49
    %p51 = scmp.ne.s32.totalorder %s43, %s45
    %p52 = scmp.eq.s32.totalorder %s14, 2
    %p53 = por %p51, %p52
    %p54 = scmp.ne.s32.totalorder %s45, %s46
    %p55 = scmp.eq.s32.totalorder %s14, 0
    %p56 = por %p54, %p55
    %p57 = scmp.ne.s32.totalorder %s45, %s46
    %p58 = scmp.eq.s32.totalorder %s15, 2
    %p59 = por %p57, %p58
    %p61 = scmp.ne.s32.totalorder %s46, %s60
    %p62 = scmp.eq.s32.totalorder %s15, 0
    %p63 = por %p61, %p62
    %s65 = sadd.s32 %s64, 1
    %p68 = scmp.eq.s32.totalorder %s9, 2
    %p69 = scmp.ne.s32.totalorder %s64, %s66
    %p70 = scmp.eq.s32.totalorder %s9, 0
    %p71 = por %p69, %p70
    %p72 = scmp.ne.s32.totalorder %s64, %s66
    %p73 = scmp.eq.s32.totalorder %s14, 2
    %p74 = por %p72, %p73
    %p75 = scmp.ne.s32.totalorder %s66, %s67
    %p76 = scmp.eq.s32.totalorder %s14, 0
    %p77 = por %p75, %p76
    %p78 = scmp.ne.s32.totalorder %s66, %s67
    %p79 = scmp.eq.s32.totalorder %s15, 2
    %p80 = por %p78, %p79
    %p82 = scmp.ne.s32.totalorder %s67, %s81
    %p83 = scmp.eq.s32.totalorder %s15, 0
    %p84 = por %p82, %p83
    %s85 = ssub.s32 %s9, %s16
    %p86 = scmp.eq.s32.totalorder %s85, 0
    %s88 = sadd.s32 %s87, 1
    %s89 = scalar_select %p86, %s87, %s88
    %p92 = pneg %p86
    %p93 = scmp.eq.s32.totalorder %s9, 2
    %p94 = por %p92, %p93
    %p95 = scmp.ne.s32.totalorder %s87, %s90
    %p96 = scmp.eq.s32.totalorder %s9, 0
    %p97 = por %p95, %p96
    %p98 = scmp.ne.s32.totalorder %s87, %s90
    %p99 = scmp.eq.s32.totalorder %s14, 2
    %p100 = por %p98, %p99
    %p101 = scmp.ne.s32.totalorder %s90, %s91
    %p102 = scmp.eq.s32.totalorder %s14, 0
    %p103 = por %p101, %p102
    %p104 = scmp.ne.s32.totalorder %s90, %s91
    %p105 = scmp.eq.s32.totalorder %s15, 2
    %p106 = por %p104, %p105
    %p108 = scmp.ne.s32.totalorder %s91, %s107
    %p109 = scmp.eq.s32.totalorder %s15, 0
    %p110 = por %p108, %p109
    %p111 = scmp.le.s32.totalorder 1, %s9
    %p112 = scmp.lt.s32.totalorder %s9, 4
    %p113 = pnand %p111, %p112
    %p114 = pneg %p113
    // Predicated region
    $region9: #{bnlrcnn_forward.3} parent=5 // pred_check
      _
    $region10: #{bnlrcnn_forward.3} parent=5 // pred_check_branch
      %116 = sbr.rel (%p113) target = $region12
    $region11: #{bnlrcnn_forward.3} parent=5 // pred_region
      %s117 = ssub.s32 %s9, 1
      // Predicated region
      $region13: #{bnlrcnn_forward.3} parent=11 // pred_check
        %p118 = pneg %p56
      $region14: #{bnlrcnn_forward.3} parent=11 // pred_check_branch
        %120 = sbr.rel (%p118) target = $region16
      $region15: #{bnlrcnn_forward.3} parent=11 // pred_region
        _
      $region16: #{bnlrcnn_forward.3} parent=11 // pred_fallthru
        _
      // Predicated region
      $region17: #{bnlrcnn_forward.3} parent=11 // pred_check
        %p121 = pneg %p77
      $region18: #{bnlrcnn_forward.3} parent=11 // pred_check_branch
        %123 = sbr.rel (%p121) target = $region20
      $region19: #{bnlrcnn_forward.3} parent=11 // pred_region
        _
      $region20: #{bnlrcnn_forward.3} parent=11 // pred_fallthru
        _
    $region12: #{bnlrcnn_forward.3} parent=5 // pred_fallthru
      _
    %p124 = scmp.lt.s32.totalorder %s9, 3
    // Predicated region
    $region21: #{bnlrcnn_forward.3} parent=5 // pred_check
      %p125 = pneg %p124
    $region22: #{bnlrcnn_forward.3} parent=5 // pred_check_branch
      %127 = sbr.rel (%p125) target = $region24
    $region23: #{bnlrcnn_forward.3} parent=5 // pred_region
      // Predicated region
      $region25: #{bnlrcnn_forward.3} parent=23 // pred_check
        %p128 = pneg %p29
      $region26: #{bnlrcnn_forward.3} parent=23 // pred_check_branch
        %130 = sbr.rel (%p128) target = $region28
      $region27: #{bnlrcnn_forward.3} parent=23 // pred_region
        %s131 = smul.u32 32, %s9
        %p132 = scmp.lt.s32.totalorder %s131, 95
        %s133 = scalar_select %p132, %s131, 95
        %s134 = smul.addr %s133, 4
        %s135 = scalar_lea.vmem %s0, %s134
        %s136 = smul.u32 32, %s9
      $region28: #{bnlrcnn_forward.3} parent=23 // pred_fallthru
        _
    $region24: #{bnlrcnn_forward.3} parent=5 // pred_fallthru
      _
    %p137 = scmp.le.s32.totalorder 1, %s9
    %p138 = scmp.lt.s32.totalorder %s9, 4
    %p139 = pnand %p137, %p138
    %p140 = pneg %p139
    // Predicated region
    $region29: #{bnlrcnn_forward.3} parent=5 // pred_check
      _
    $region30: #{bnlrcnn_forward.3} parent=5 // pred_check_branch
      %142 = sbr.rel (%p139) target = $region32
    $region31: #{bnlrcnn_forward.3} parent=5 // pred_region
      %s143 = ssub.s32 %s9, 1
      %s144 = smul.u32 32, %s14
      %p145 = scmp.lt.s32.totalorder %s144, 95
      %s146 = scalar_select %p145, %s144, 95
      %s147 = smul.addr %s146, 4
      %s148 = scalar_lea.vmem %s0, %s147
      %p149 = pneg %p35
      %p150 = pneg %p32
      %p151 = pneg %p56
      %p152 = pneg %p53
      %p153 = pneg %p77
      %p154 = pneg %p74
      %p155 = pneg %p103
      %p156 = pneg %p100
      %s157 = smul.u32 32, %s14
      %p158 = scmp.lt.s32.totalorder %s157, 95
      %s159 = scalar_select %p158, %s157, 95
      %s160 = smul.addr %s159, 8
      %s161 = scalar_lea.vmem %s3, %s160
      %s162 = smul.u32 32, %s14
      %p163 = scmp.lt.s32.totalorder %s162, 95
      %s164 = scalar_select %p163, %s162, 95
      %s165 = smul.addr %s164, 4
      %s166 = scalar_lea.vmem %s0, %s165
      %s167 = smul.u32 32, %s14
      %s168 = smul.u32 32, %s14
      %p169 = scmp.lt.s32.totalorder %s168, 95
      %s170 = scalar_select %p169, %s168, 95
      %s171 = smul.addr %s170, 8
      %s172 = scalar_lea.vmem %s3, %s171
      %s173 = smul.u32 32, %s14
      %v174 = vld [vmem:[%s166] sm:$0xf]
      %v175 = vld [vmem:[%s166 + $0x4] sm:$0xf]
      %v176 = vld [vmem:[%s166 + $0x8] sm:$0xf]
      %v177 = vld [vmem:[%s166 + $0xc] sm:$0xf]
      %v178 = vld [vmem:[%s166 + $0x10] sm:$0xf]
      %v179 = vld [vmem:[%s166 + $0x14] sm:$0xf]
      %v180 = vld [vmem:[%s166 + $0x18] sm:$0xf]
      %v181 = vld [vmem:[%s166 + $0x1c] sm:$0xf]
      %v182 = vld [vmem:[%s166 + $0x20] sm:$0xf]
      %v183 = vld [vmem:[%s166 + $0x24] sm:$0xf]
      %v184 = vld [vmem:[%s166 + $0x28] sm:$0xf]
      %v185 = vld [vmem:[%s166 + $0x2c] sm:$0xf]
      %v186 = vld [vmem:[%s166 + $0x30] sm:$0xf]
      %v187 = vld [vmem:[%s166 + $0x34] sm:$0xf]
      %v188 = vld [vmem:[%s166 + $0x38] sm:$0xf]
      %v189 = vld [vmem:[%s166 + $0x3c] sm:$0xf]
      %v190 = vld [vmem:[%s166 + $0x40] sm:$0xf]
      %v191 = vld [vmem:[%s166 + $0x44] sm:$0xf]
      %v192 = vld [vmem:[%s166 + $0x48] sm:$0xf]
      %v193 = vld [vmem:[%s166 + $0x4c] sm:$0xf]
      %v194 = vld [vmem:[%s166 + $0x50] sm:$0xf]
      %v195 = vld [vmem:[%s166 + $0x54] sm:$0xf]
      %v196 = vld [vmem:[%s166 + $0x58] sm:$0xf]
      %v197 = vld [vmem:[%s166 + $0x5c] sm:$0xf]
      %v198 = vld [vmem:[%s166 + $0x60] sm:$0xf]
      %v199 = vld [vmem:[%s166 + $0x64] sm:$0xf]
      %v200 = vld [vmem:[%s166 + $0x68] sm:$0xf]
      %v201 = vld [vmem:[%s166 + $0x6c] sm:$0xf]
      %v202 = vld [vmem:[%s166 + $0x70] sm:$0xf]
      %v203 = vld [vmem:[%s166 + $0x74] sm:$0xf]
      %v204 = vld [vmem:[%s166 + $0x78] sm:$0xf]
      %v205 = vld [vmem:[%s166 + $0x7c] sm:$0xf]
      %v206 = vunpack.c.l.bf16 %v174
      %v207 = vunpack.c.l.bf16 %v175
      %v208 = vunpack.c.l.bf16 %v176
      %v209 = vunpack.c.l.bf16 %v177
      %v210 = vunpack.c.l.bf16 %v178
      %v211 = vunpack.c.l.bf16 %v179
      %v212 = vunpack.c.l.bf16 %v180
      %v213 = vunpack.c.l.bf16 %v181
      %v214 = vunpack.c.l.bf16 %v182
      %v215 = vunpack.c.l.bf16 %v183
      %v216 = vunpack.c.l.bf16 %v184
      %v217 = vunpack.c.l.bf16 %v185
      %v218 = vunpack.c.l.bf16 %v186
      %v219 = vunpack.c.l.bf16 %v187
      %v220 = vunpack.c.l.bf16 %v188
      %v221 = vunpack.c.l.bf16 %v189
      %v222 = vunpack.c.l.bf16 %v190
      %v223 = vunpack.c.l.bf16 %v191
      %v224 = vunpack.c.l.bf16 %v192
      %v225 = vunpack.c.l.bf16 %v193
      %v226 = vunpack.c.l.bf16 %v194
      %v227 = vunpack.c.l.bf16 %v195
      %v228 = vunpack.c.l.bf16 %v196
      %v229 = vunpack.c.l.bf16 %v197
      %v230 = vunpack.c.l.bf16 %v198
      %v231 = vunpack.c.l.bf16 %v199
      %v232 = vunpack.c.l.bf16 %v200
      %v233 = vunpack.c.l.bf16 %v201
      %v234 = vunpack.c.l.bf16 %v202
      %v235 = vunpack.c.l.bf16 %v203
      %v236 = vunpack.c.l.bf16 %v204
      %v237 = vunpack.c.l.bf16 %v205
      %v238 = vld [vmem:[%s1] sm:$0x1]
      %v240 = vperm.slane %v238, 0
      %v242 = vmul.f32 %v206, %v240
      %v243 = vmul.f32 %v207, %v240
      %v244 = vmul.f32 %v208, %v240
      %v245 = vmul.f32 %v209, %v240
      %v246 = vmul.f32 %v210, %v240
      %v247 = vmul.f32 %v211, %v240
      %v248 = vmul.f32 %v212, %v240
      %v249 = vmul.f32 %v213, %v240
      %v250 = vmul.f32 %v214, %v240
      %v251 = vmul.f32 %v215, %v240
      %v252 = vmul.f32 %v216, %v240
      %v253 = vmul.f32 %v217, %v240
      %v254 = vmul.f32 %v218, %v240
      %v255 = vmul.f32 %v219, %v240
      %v256 = vmul.f32 %v220, %v240
      %v257 = vmul.f32 %v221, %v240
      %v258 = vmul.f32 %v222, %v240
      %v259 = vmul.f32 %v223, %v240
      %v260 = vmul.f32 %v224, %v240
      %v261 = vmul.f32 %v225, %v240
      %v262 = vmul.f32 %v226, %v240
      %v263 = vmul.f32 %v227, %v240
      %v264 = vmul.f32 %v228, %v240
      %v265 = vmul.f32 %v229, %v240
      %v266 = vmul.f32 %v230, %v240
      %v267 = vmul.f32 %v231, %v240
      %v268 = vmul.f32 %v232, %v240
      %v269 = vmul.f32 %v233, %v240
      %v270 = vmul.f32 %v234, %v240
      %v271 = vmul.f32 %v235, %v240
      %v272 = vmul.f32 %v236, %v240
      %v273 = vmul.f32 %v237, %v240
      %v274 = vld [vmem:[%s2] sm:$0x1]
      %v276 = vperm.slane %v274, 0
      %v278 = vadd.f32 %v242, %v276
      %v279 = vadd.f32 %v243, %v276
      %v280 = vadd.f32 %v244, %v276
      %v281 = vadd.f32 %v245, %v276
      %v282 = vadd.f32 %v246, %v276
      %v283 = vadd.f32 %v247, %v276
      %v284 = vadd.f32 %v248, %v276
      %v285 = vadd.f32 %v249, %v276
      %v286 = vadd.f32 %v250, %v276
      %v287 = vadd.f32 %v251, %v276
      %v288 = vadd.f32 %v252, %v276
      %v289 = vadd.f32 %v253, %v276
      %v290 = vadd.f32 %v254, %v276
      %v291 = vadd.f32 %v255, %v276
      %v292 = vadd.f32 %v256, %v276
      %v293 = vadd.f32 %v257, %v276
      %v294 = vadd.f32 %v258, %v276
      %v295 = vadd.f32 %v259, %v276
      %v296 = vadd.f32 %v260, %v276
      %v297 = vadd.f32 %v261, %v276
      %v298 = vadd.f32 %v262, %v276
      %v299 = vadd.f32 %v263, %v276
      %v300 = vadd.f32 %v264, %v276
      %v301 = vadd.f32 %v265, %v276
      %v302 = vadd.f32 %v266, %v276
      %v303 = vadd.f32 %v267, %v276
      %v304 = vadd.f32 %v268, %v276
      %v305 = vadd.f32 %v269, %v276
      %v306 = vadd.f32 %v270, %v276
      %v307 = vadd.f32 %v271, %v276
      %v308 = vadd.f32 %v272, %v276
      %v309 = vadd.f32 %v273, %v276
      %vm310 = vcmp.gt.f32.partialorder %v278, 0.0
      %vm311 = vcmp.gt.f32.partialorder %v279, 0.0
      %vm312 = vcmp.gt.f32.partialorder %v280, 0.0
      %vm313 = vcmp.gt.f32.partialorder %v281, 0.0
      %vm314 = vcmp.gt.f32.partialorder %v282, 0.0
      %vm315 = vcmp.gt.f32.partialorder %v283, 0.0
      %vm316 = vcmp.gt.f32.partialorder %v284, 0.0
      %vm317 = vcmp.gt.f32.partialorder %v285, 0.0
      %vm318 = vcmp.gt.f32.partialorder %v286, 0.0
      %vm319 = vcmp.gt.f32.partialorder %v287, 0.0
      %vm320 = vcmp.gt.f32.partialorder %v288, 0.0
      %vm321 = vcmp.gt.f32.partialorder %v289, 0.0
      %vm322 = vcmp.gt.f32.partialorder %v290, 0.0
      %vm323 = vcmp.gt.f32.partialorder %v291, 0.0
      %vm324 = vcmp.gt.f32.partialorder %v292, 0.0
      %vm325 = vcmp.gt.f32.partialorder %v293, 0.0
      %vm326 = vcmp.gt.f32.partialorder %v294, 0.0
      %vm327 = vcmp.gt.f32.partialorder %v295, 0.0
      %vm328 = vcmp.gt.f32.partialorder %v296, 0.0
      %vm329 = vcmp.gt.f32.partialorder %v297, 0.0
      %vm330 = vcmp.gt.f32.partialorder %v298, 0.0
      %vm331 = vcmp.gt.f32.partialorder %v299, 0.0
      %vm332 = vcmp.gt.f32.partialorder %v300, 0.0
      %vm333 = vcmp.gt.f32.partialorder %v301, 0.0
      %vm334 = vcmp.gt.f32.partialorder %v302, 0.0
      %vm335 = vcmp.gt.f32.partialorder %v303, 0.0
      %vm336 = vcmp.gt.f32.partialorder %v304, 0.0
      %vm337 = vcmp.gt.f32.partialorder %v305, 0.0
      %vm338 = vcmp.gt.f32.partialorder %v306, 0.0
      %vm339 = vcmp.gt.f32.partialorder %v307, 0.0
      %vm340 = vcmp.gt.f32.partialorder %v308, 0.0
      %vm341 = vcmp.gt.f32.partialorder %v309, 0.0
      %v342 = vmul.f32 %v278, 0.2
      %v343 = vmul.f32 %v279, 0.2
      %v344 = vmul.f32 %v280, 0.2
      %v345 = vmul.f32 %v281, 0.2
      %v346 = vmul.f32 %v282, 0.2
      %v347 = vmul.f32 %v283, 0.2
      %v348 = vmul.f32 %v284, 0.2
      %v349 = vmul.f32 %v285, 0.2
      %v350 = vmul.f32 %v286, 0.2
      %v351 = vmul.f32 %v287, 0.2
      %v352 = vmul.f32 %v288, 0.2
      %v353 = vmul.f32 %v289, 0.2
      %v354 = vmul.f32 %v290, 0.2
      %v355 = vmul.f32 %v291, 0.2
      %v356 = vmul.f32 %v292, 0.2
      %v357 = vmul.f32 %v293, 0.2
      %v358 = vmul.f32 %v294, 0.2
      %v359 = vmul.f32 %v295, 0.2
      %v360 = vmul.f32 %v296, 0.2
      %v361 = vmul.f32 %v297, 0.2
      %v362 = vmul.f32 %v298, 0.2
      %v363 = vmul.f32 %v299, 0.2
      %v364 = vmul.f32 %v300, 0.2
      %v365 = vmul.f32 %v301, 0.2
      %v366 = vmul.f32 %v302, 0.2
      %v367 = vmul.f32 %v303, 0.2
      %v368 = vmul.f32 %v304, 0.2
      %v369 = vmul.f32 %v305, 0.2
      %v370 = vmul.f32 %v306, 0.2
      %v371 = vmul.f32 %v307, 0.2
      %v372 = vmul.f32 %v308, 0.2
      %v373 = vmul.f32 %v309, 0.2
      %v374 = vsel %vm310, %v278, %v342
      %v375 = vsel %vm311, %v279, %v343
      %v376 = vsel %vm312, %v280, %v344
      %v377 = vsel %vm313, %v281, %v345
      %v378 = vsel %vm314, %v282, %v346
      %v379 = vsel %vm315, %v283, %v347
      %v380 = vsel %vm316, %v284, %v348
      %v381 = vsel %vm317, %v285, %v349
      %v382 = vsel %vm318, %v286, %v350
      %v383 = vsel %vm319, %v287, %v351
      %v384 = vsel %vm320, %v288, %v352
      %v385 = vsel %vm321, %v289, %v353
      %v386 = vsel %vm322, %v290, %v354
      %v387 = vsel %vm323, %v291, %v355
      %v388 = vsel %vm324, %v292, %v356
      %v389 = vsel %vm325, %v293, %v357
      %v390 = vsel %vm326, %v294, %v358
      %v391 = vsel %vm327, %v295, %v359
      %v392 = vsel %vm328, %v296, %v360
      %v393 = vsel %vm329, %v297, %v361
      %v394 = vsel %vm330, %v298, %v362
      %v395 = vsel %vm331, %v299, %v363
      %v396 = vsel %vm332, %v300, %v364
      %v397 = vsel %vm333, %v301, %v365
      %v398 = vsel %vm334, %v302, %v366
      %v399 = vsel %vm335, %v303, %v367
      %v400 = vsel %vm336, %v304, %v368
      %v401 = vsel %vm337, %v305, %v369
      %v402 = vsel %vm338, %v306, %v370
      %v403 = vsel %vm339, %v307, %v371
      %v404 = vsel %vm340, %v308, %v372
      %v405 = vsel %vm341, %v309, %v373
      %vm406 = vcmask 64512
      %407 = vst.msk [vmem:[%s172] sm:$0xff] %vm406, %v374
      %408 = vst.msk [vmem:[%s172 + $0x8] sm:$0xff] %vm406, %v375
      %409 = vst.msk [vmem:[%s172 + $0x10] sm:$0xff] %vm406, %v376
      %410 = vst.msk [vmem:[%s172 + $0x18] sm:$0xff] %vm406, %v377
      %411 = vst.msk [vmem:[%s172 + $0x20] sm:$0xff] %vm406, %v378
      %412 = vst.msk [vmem:[%s172 + $0x28] sm:$0xff] %vm406, %v379
      %413 = vst.msk [vmem:[%s172 + $0x30] sm:$0xff] %vm406, %v380
      %414 = vst.msk [vmem:[%s172 + $0x38] sm:$0xff] %vm406, %v381
      %415 = vst.msk [vmem:[%s172 + $0x40] sm:$0xff] %vm406, %v382
      %416 = vst.msk [vmem:[%s172 + $0x48] sm:$0xff] %vm406, %v383
      %417 = vst.msk [vmem:[%s172 + $0x50] sm:$0xff] %vm406, %v384
      %418 = vst.msk [vmem:[%s172 + $0x58] sm:$0xff] %vm406, %v385
      %419 = vst.msk [vmem:[%s172 + $0x60] sm:$0xff] %vm406, %v386
      %420 = vst.msk [vmem:[%s172 + $0x68] sm:$0xff] %vm406, %v387
      %421 = vst.msk [vmem:[%s172 + $0x70] sm:$0xff] %vm406, %v388
      %422 = vst.msk [vmem:[%s172 + $0x78] sm:$0xff] %vm406, %v389
      %423 = vst.msk [vmem:[%s172 + $0x80] sm:$0xff] %vm406, %v390
      %424 = vst.msk [vmem:[%s172 + $0x88] sm:$0xff] %vm406, %v391
      %425 = vst.msk [vmem:[%s172 + $0x90] sm:$0xff] %vm406, %v392
      %426 = vst.msk [vmem:[%s172 + $0x98] sm:$0xff] %vm406, %v393
      %427 = vst.msk [vmem:[%s172 + $0xa0] sm:$0xff] %vm406, %v394
      %428 = vst.msk [vmem:[%s172 + $0xa8] sm:$0xff] %vm406, %v395
      %429 = vst.msk [vmem:[%s172 + $0xb0] sm:$0xff] %vm406, %v396
      %430 = vst.msk [vmem:[%s172 + $0xb8] sm:$0xff] %vm406, %v397
      %431 = vst.msk [vmem:[%s172 + $0xc0] sm:$0xff] %vm406, %v398
      %432 = vst.msk [vmem:[%s172 + $0xc8] sm:$0xff] %vm406, %v399
      %433 = vst.msk [vmem:[%s172 + $0xd0] sm:$0xff] %vm406, %v400
      %434 = vst.msk [vmem:[%s172 + $0xd8] sm:$0xff] %vm406, %v401
      %435 = vst.msk [vmem:[%s172 + $0xe0] sm:$0xff] %vm406, %v402
      %436 = vst.msk [vmem:[%s172 + $0xe8] sm:$0xff] %vm406, %v403
      %437 = vst.msk [vmem:[%s172 + $0xf0] sm:$0xff] %vm406, %v404
      %438 = vst.msk [vmem:[%s172 + $0xf8] sm:$0xff] %vm406, %v405
      %s439 = smul.u32 32, %s14
      %p440 = scmp.lt.s32.totalorder %s439, 95
      %s441 = scalar_select %p440, %s439, 95
      %s442 = smul.addr %s441, 8
      %s443 = scalar_lea.vmem %s3, %s442
      // Predicated region
      $region33: #{bnlrcnn_forward.3} parent=31 // pred_check
        %p444 = pneg %p100
      $region34: #{bnlrcnn_forward.3} parent=31 // pred_check_branch
        %446 = sbr.rel (%p444) target = $region36
      $region35: #{bnlrcnn_forward.3} parent=31 // pred_region
        %s447 = smul.u32 32, %s14
      $region36: #{bnlrcnn_forward.3} parent=31 // pred_fallthru
        _
    $region32: #{bnlrcnn_forward.3} parent=5 // pred_fallthru
      _
    %p448 = scmp.le.s32.totalorder 2, %s9
    // Predicated region
    $region37: #{bnlrcnn_forward.3} parent=5 // pred_check
      %p449 = pneg %p448
    $region38: #{bnlrcnn_forward.3} parent=5 // pred_check_branch
      %451 = sbr.rel (%p449) target = $region40
    $region39: #{bnlrcnn_forward.3} parent=5 // pred_region
      %s452 = ssub.s32 %s9, 2
      // Predicated region
      $region41: #{bnlrcnn_forward.3} parent=39 // pred_check
        %p453 = pneg %p106
      $region42: #{bnlrcnn_forward.3} parent=39 // pred_check_branch
        %455 = sbr.rel (%p453) target = $region44
      $region43: #{bnlrcnn_forward.3} parent=39 // pred_region
        %s456 = smul.u32 32, %s15
        %p457 = scmp.lt.s32.totalorder %s456, 95
        %s458 = scalar_select %p457, %s456, 95
        %s459 = smul.addr %s458, 8
        %s460 = scalar_lea.vmem %s3, %s459
      $region44: #{bnlrcnn_forward.3} parent=39 // pred_fallthru
        _
    $region40: #{bnlrcnn_forward.3} parent=5 // pred_fallthru
      _
  $region6: #{bnlrcnn_forward.3} parent=0 // loop_footer
    %s13 = sadd.s32 1, %s9
  $region7: #{bnlrcnn_forward.3} parent=0 // loop_footer_branch
    %8 = sbr.rel target = $region3
  $region8: #{bnlrcnn_forward.3} parent=0 // loop_exit
    _

// kernel: bnlrcnn_forward.2
$region0: #{bnlrcnn_forward.2}
  #allocation0 [shape = 'u32[]', space=smem, size = 0x4, offset = 0x4, fixed_abs, tag = 'smem constant byte address 0x4 - core index']
  #allocation1 [shape = 'u32[72,128]{1,0:T(1,128)}', space=vmem, size = 0x9000, scoped, tag = 'internal scratch']
  %s0 = inlined_call_operand.vmem [shape: bf16[832,4], index: 0, kind: input, shape index: {}, may-alias: {0,1}]
  %s1 = inlined_call_operand.vmem [shape: bf16[832,4], index: 1, kind: input, shape index: {}, may-alias: {0,1}]
  %s2 = inlined_call_operand.vmem [shape: bf16[9,4,8], index: 2, kind: input, shape index: {}]
  %s3 = inlined_call_operand.vmem [shape: f32[768,1], index: 3, kind: input, shape index: {}]
  %s4 = inlined_call_operand.vmem [shape: bf16[768,8], index: 4, kind: output, shape index: {0}]
  %s5 = inlined_call_operand.vmem [shape: f32[3,2,8], index: 5, kind: output, shape index: {1}]
  %6 = xla_tuple %s4, %s5
  %s7 = sld [smem:[#allocation0]]
  $region57: #{bnlrcnn_forward.2} parent=0
    _
  %s9 = ssub.s32 1, %s7
  %s10 = scalar_select 0, %s9, %s7
  loop: start=0, step=1, limit=5
  $region2: #{bnlrcnn_forward.2} parent=0 // loop_pre_header
    _
  $region3: #{bnlrcnn_forward.2} parent=0 // loop_header
    %s12 = sphi 0, %s16
    %p13 = scmp.ge.s32.totalorder %s12, 5
    %s22 = sphi 0, %s24
    %s25 = sphi 0, %s22
    %s26 = sphi 0, %s25
    %s42 = sphi 0, %s26
    %s52 = sphi 0, %s54
    %s55 = sphi 0, %s52
    %s56 = sphi 0, %s55
    %s72 = sphi 0, %s56
    %s76 = sphi 0, %s76
    %s78 = sphi 0, %s76
    %s79 = sphi 0, %s78
    %s93 = sphi 0, %s79
    %s99 = sphi 0, %s101
    %s102 = sphi 0, %s99
    %s103 = sphi 0, %s102
    %s119 = sphi 0, %s103
    %s125 = sphi 0, %s127
    %s128 = sphi 0, %s125
    %s129 = sphi 0, %s128
    %s145 = sphi 0, %s129
    %s151 = sphi 0, %s153
    %s154 = sphi 0, %s151
    %s155 = sphi 0, %s154
    %s171 = sphi 0, %s155
  $region4: #{bnlrcnn_forward.2} parent=0 // loop_header_branch
    %15 = sbr.rel (%p13) target = $region8
  $region5: #{bnlrcnn_forward.2} parent=0 // loop_body
    %s17 = ssub.s32 %s12, 1
    %s18 = ssub.s32 %s12, 2
    %s19 = sadd.s32 %s12, 1
    %s20 = ssub.s32 %s12, %s19
    %p21 = scmp.eq.s32.totalorder %s20, 0
    %s23 = sadd.s32 %s22, 1
    %s24 = scalar_select %p21, %s22, %s23
    %p27 = pneg %p21
    %p28 = scmp.eq.s32.totalorder %s12, 2
    %p29 = por %p27, %p28
    %p30 = scmp.ne.s32.totalorder %s22, %s25
    %p31 = scmp.eq.s32.totalorder %s12, 0
    %p32 = por %p30, %p31
    %p33 = scmp.ne.s32.totalorder %s22, %s25
    %p34 = scmp.eq.s32.totalorder %s17, 2
    %p35 = por %p33, %p34
    %p36 = scmp.ne.s32.totalorder %s25, %s26
    %p37 = scmp.eq.s32.totalorder %s17, 0
    %p38 = por %p36, %p37
    %p39 = scmp.ne.s32.totalorder %s25, %s26
    %p40 = scmp.eq.s32.totalorder %s18, 2
    %p41 = por %p39, %p40
    %p43 = scmp.ne.s32.totalorder %s26, %s42
    %p44 = scmp.eq.s32.totalorder %s18, 0
    %p45 = por %p43, %p44
    %s46 = sadd.s32 %s12, 1
    %s47 = smul.u32 %s46, 4
    %s48 = sadd.s32 %s19, 1
    %s49 = smul.u32 %s48, 4
    %s50 = ssub.s32 %s47, %s49
    %p51 = scmp.eq.s32.totalorder %s50, 0
    %s53 = sadd.s32 %s52, 1
    %s54 = scalar_select %p51, %s52, %s53
    %p57 = pneg %p51
    %p58 = scmp.eq.s32.totalorder %s12, 2
    %p59 = por %p57, %p58
    %p60 = scmp.ne.s32.totalorder %s52, %s55
    %p61 = scmp.eq.s32.totalorder %s12, 0
    %p62 = por %p60, %p61
    %p63 = scmp.ne.s32.totalorder %s52, %s55
    %p64 = scmp.eq.s32.totalorder %s17, 2
    %p65 = por %p63, %p64
    %p66 = scmp.ne.s32.totalorder %s55, %s56
    %p67 = scmp.eq.s32.totalorder %s17, 0
    %p68 = por %p66, %p67
    %p69 = scmp.ne.s32.totalorder %s55, %s56
    %p70 = scmp.eq.s32.totalorder %s18, 2
    %p71 = por %p69, %p70
    %p73 = scmp.ne.s32.totalorder %s56, %s72
    %p74 = scmp.eq.s32.totalorder %s18, 0
    %p75 = por %p73, %p74
    %s77 = sadd.s32 %s76, 1
    %p80 = scmp.eq.s32.totalorder %s12, 2
    %p81 = scmp.ne.s32.totalorder %s76, %s78
    %p82 = scmp.eq.s32.totalorder %s12, 0
    %p83 = por %p81, %p82
    %p84 = scmp.ne.s32.totalorder %s76, %s78
    %p85 = scmp.eq.s32.totalorder %s17, 2
    %p86 = por %p84, %p85
    %p87 = scmp.ne.s32.totalorder %s78, %s79
    %p88 = scmp.eq.s32.totalorder %s17, 0
    %p89 = por %p87, %p88
    %p90 = scmp.ne.s32.totalorder %s78, %s79
    %p91 = scmp.eq.s32.totalorder %s18, 2
    %p92 = por %p90, %p91
    %p94 = scmp.ne.s32.totalorder %s79, %s93
    %p95 = scmp.eq.s32.totalorder %s18, 0
    %p96 = por %p94, %p95
    %s97 = ssub.s32 %s12, %s19
    %p98 = scmp.eq.s32.totalorder %s97, 0
    %s100 = sadd.s32 %s99, 1
    %s101 = scalar_select %p98, %s99, %s100
    %p104 = pneg %p98
    %p105 = scmp.eq.s32.totalorder %s12, 2
    %p106 = por %p104, %p105
    %p107 = scmp.ne.s32.totalorder %s99, %s102
    %p108 = scmp.eq.s32.totalorder %s12, 0
    %p109 = por %p107, %p108
    %p110 = scmp.ne.s32.totalorder %s99, %s102
    %p111 = scmp.eq.s32.totalorder %s17, 2
    %p112 = por %p110, %p111
    %p113 = scmp.ne.s32.totalorder %s102, %s103
    %p114 = scmp.eq.s32.totalorder %s17, 0
    %p115 = por %p113, %p114
    %p116 = scmp.ne.s32.totalorder %s102, %s103
    %p117 = scmp.eq.s32.totalorder %s18, 2
    %p118 = por %p116, %p117
    %p120 = scmp.ne.s32.totalorder %s103, %s119
    %p121 = scmp.eq.s32.totalorder %s18, 0
    %p122 = por %p120, %p121
    %s123 = ssub.s32 %s12, %s19
    %p124 = scmp.eq.s32.totalorder %s123, 0
    %s126 = sadd.s32 %s125, 1
    %s127 = scalar_select %p124, %s125, %s126
    %p130 = pneg %p124
    %p131 = scmp.eq.s32.totalorder %s12, 2
    %p132 = por %p130, %p131
    %p133 = scmp.ne.s32.totalorder %s125, %s128
    %p134 = scmp.eq.s32.totalorder %s12, 0
    %p135 = por %p133, %p134
    %p136 = scmp.ne.s32.totalorder %s125, %s128
    %p137 = scmp.eq.s32.totalorder %s17, 2
    %p138 = por %p136, %p137
    %p139 = scmp.ne.s32.totalorder %s128, %s129
    %p140 = scmp.eq.s32.totalorder %s17, 0
    %p141 = por %p139, %p140
    %p142 = scmp.ne.s32.totalorder %s128, %s129
    %p143 = scmp.eq.s32.totalorder %s18, 2
    %p144 = por %p142, %p143
    %p146 = scmp.ne.s32.totalorder %s129, %s145
    %p147 = scmp.eq.s32.totalorder %s18, 0
    %p148 = por %p146, %p147
    %s149 = ssub.s32 %s12, %s19
    %p150 = scmp.eq.s32.totalorder %s149, 0
    %s152 = sadd.s32 %s151, 1
    %s153 = scalar_select %p150, %s151, %s152
    %p156 = pneg %p150
    %p157 = scmp.eq.s32.totalorder %s12, 2
    %p158 = por %p156, %p157
    %p159 = scmp.ne.s32.totalorder %s151, %s154
    %p160 = scmp.eq.s32.totalorder %s12, 0
    %p161 = por %p159, %p160
    %p162 = scmp.ne.s32.totalorder %s151, %s154
    %p163 = scmp.eq.s32.totalorder %s17, 2
    %p164 = por %p162, %p163
    %p165 = scmp.ne.s32.totalorder %s154, %s155
    %p166 = scmp.eq.s32.totalorder %s17, 0
    %p167 = por %p165, %p166
    %p168 = scmp.ne.s32.totalorder %s154, %s155
    %p169 = scmp.eq.s32.totalorder %s18, 2
    %p170 = por %p168, %p169
    %p172 = scmp.ne.s32.totalorder %s155, %s171
    %p173 = scmp.eq.s32.totalorder %s18, 0
    %p174 = por %p172, %p173
    %p175 = scmp.le.s32.totalorder 1, %s12
    %p176 = scmp.lt.s32.totalorder %s12, 4
    %p177 = pnand %p175, %p176
    %p178 = pneg %p177
    // Predicated region
    $region9: #{bnlrcnn_forward.2} parent=5 // pred_check
      _
    $region10: #{bnlrcnn_forward.2} parent=5 // pred_check_branch
      %180 = sbr.rel (%p177) target = $region12
    $region11: #{bnlrcnn_forward.2} parent=5 // pred_region
      %s181 = ssub.s32 %s12, 1
      // Predicated region
      $region13: #{bnlrcnn_forward.2} parent=11 // pred_check
        %p182 = pneg %p89
      $region14: #{bnlrcnn_forward.2} parent=11 // pred_check_branch
        %184 = sbr.rel (%p182) target = $region16
      $region15: #{bnlrcnn_forward.2} parent=11 // pred_region
        _
      $region16: #{bnlrcnn_forward.2} parent=11 // pred_fallthru
        _
    $region12: #{bnlrcnn_forward.2} parent=5 // pred_fallthru
      _
    %p185 = scmp.lt.s32.totalorder %s12, 3
    // Predicated region
    $region17: #{bnlrcnn_forward.2} parent=5 // pred_check
      %p186 = pneg %p185
    $region18: #{bnlrcnn_forward.2} parent=5 // pred_check_branch
      %188 = sbr.rel (%p186) target = $region20
    $region19: #{bnlrcnn_forward.2} parent=5 // pred_region
      // Predicated region
      $region21: #{bnlrcnn_forward.2} parent=19 // pred_check
        %p189 = pneg %p32
      $region22: #{bnlrcnn_forward.2} parent=19 // pred_check_branch
        %191 = sbr.rel (%p189) target = $region24
      $region23: #{bnlrcnn_forward.2} parent=19 // pred_region
        %s192 = smul.u32 32, %s12
        %s193 = ssub.s32 104, %s192
        %p194 = scmp.lt.s32.totalorder %s193, 32
        %s195 = scalar_select %p194, %s193, 32
        %s196 = smul.u32 4, %s195
        %p197 = scmp.lt.s32.totalorder %s192, 103
        %s198 = scalar_select %p197, %s192, 103
        %s199 = smul.addr %s198, 4
        %s200 = scalar_lea.vmem %s0, %s199
        %s201 = smul.u32 32, %s12
        %s202 = ssub.s32 104, %s201
        %p203 = scmp.lt.s32.totalorder %s202, 32
        %s204 = scalar_select %p203, %s202, 32
        %s205 = smul.u32 4, %s204
      $region24: #{bnlrcnn_forward.2} parent=19 // pred_fallthru
        _
      // Predicated region
      $region25: #{bnlrcnn_forward.2} parent=19 // pred_check
        %p206 = pneg %p62
      $region26: #{bnlrcnn_forward.2} parent=19 // pred_check_branch
        %208 = sbr.rel (%p206) target = $region28
      $region27: #{bnlrcnn_forward.2} parent=19 // pred_region
        %s209 = sadd.s32 %s12, 1
        %s210 = smul.u32 %s209, 4
        %s211 = smul.u32 8, %s210
        %p212 = scmp.lt.s32.totalorder %s211, 103
        %s213 = scalar_select %p212, %s211, 103
        %s214 = smul.addr %s213, 4
        %s215 = scalar_lea.vmem %s1, %s214
        %s216 = sadd.s32 %s12, 1
        %s217 = smul.u32 %s216, 4
        %s218 = smul.u32 8, %s217
      $region28: #{bnlrcnn_forward.2} parent=19 // pred_fallthru
        _
      // Predicated region
      $region29: #{bnlrcnn_forward.2} parent=19 // pred_check
        %p219 = pneg %p109
      $region30: #{bnlrcnn_forward.2} parent=19 // pred_check_branch
        %221 = sbr.rel (%p219) target = $region32
      $region31: #{bnlrcnn_forward.2} parent=19 // pred_region
        %s222 = smul.u32 32, %s12
        %p223 = scmp.lt.s32.totalorder %s222, 95
        %s224 = scalar_select %p223, %s222, 95
        %s225 = smul.addr %s224, 8
        %s226 = scalar_lea.vmem %s3, %s225
        %s227 = smul.u32 32, %s12
      $region32: #{bnlrcnn_forward.2} parent=19 // pred_fallthru
        _
    $region20: #{bnlrcnn_forward.2} parent=5 // pred_fallthru
      _
    %p228 = scmp.le.s32.totalorder 1, %s12
    %p229 = scmp.lt.s32.totalorder %s12, 4
    %p230 = pnand %p228, %p229
    %p231 = pneg %p230
    // Predicated region
    $region33: #{bnlrcnn_forward.2} parent=5 // pred_check
      _
    $region34: #{bnlrcnn_forward.2} parent=5 // pred_check_branch
      %233 = sbr.rel (%p230) target = $region36
    $region35: #{bnlrcnn_forward.2} parent=5 // pred_region
      %s234 = ssub.s32 %s12, 1
      %s235 = smul.u32 32, %s17
      %s236 = ssub.s32 104, %s235
      %p237 = scmp.lt.s32.totalorder %s236, 32
      %s238 = scalar_select %p237, %s236, 32
      %s239 = smul.u32 4, %s238
      %p240 = scmp.lt.s32.totalorder %s235, 103
      %s241 = scalar_select %p240, %s235, 103
      %s242 = smul.addr %s241, 4
      %s243 = scalar_lea.vmem %s0, %s242
      %p244 = pneg %p38
      %p245 = pneg %p35
      %s246 = sadd.s32 %s17, 1
      %s247 = smul.u32 %s246, 4
      %s248 = smul.u32 8, %s247
      %p249 = scmp.lt.s32.totalorder %s248, 103
      %s250 = scalar_select %p249, %s248, 103
      %s251 = smul.addr %s250, 4
      %s252 = scalar_lea.vmem %s1, %s251
      %p253 = pneg %p68
      %p254 = pneg %p65
      %p255 = pneg %p89
      %p256 = pneg %p86
      %s257 = smul.u32 32, %s17
      %p258 = scmp.lt.s32.totalorder %s257, 95
      %s259 = scalar_select %p258, %s257, 95
      %s260 = smul.addr %s259, 8
      %s261 = scalar_lea.vmem %s3, %s260
      %p262 = pneg %p115
      %p263 = pneg %p112
      %p264 = pneg %p141
      %p265 = pneg %p138
      %s266 = smul.u32 32, %s17
      %p267 = scmp.lt.s32.totalorder %s266, 95
      %s268 = scalar_select %p267, %s266, 95
      %s269 = smul.addr %s268, 4
      %s270 = scalar_lea.vmem %s4, %s269
      %p271 = pneg %p167
      %p272 = pneg %p164
      %p273 = scmp.lt.s32.totalorder %s17, 2
      %s274 = scalar_select %p273, %s17, 2
      %s275 = smul.addr %s274, 2
      %s276 = scalar_lea.vmem %s5, %s275
      %s277 = smul.u32 32, %s17
      %s278 = ssub.s32 104, %s277
      %p279 = scmp.lt.s32.totalorder %s278, 32
      %s280 = scalar_select %p279, %s278, 32
      %s281 = smul.u32 4, %s280
      %p282 = scmp.lt.s32.totalorder %s277, 103
      %s283 = scalar_select %p282, %s277, 103
      %s284 = smul.addr %s283, 4
      %s285 = scalar_lea.vmem %s0, %s284
      %s286 = smul.u32 32, %s17
      %s287 = ssub.s32 104, %s286
      %p288 = scmp.lt.s32.totalorder %s287, 32
      %s289 = scalar_select %p288, %s287, 32
      %s290 = smul.u32 4, %s289
      %s291 = sadd.s32 %s17, 1
      %s292 = smul.u32 %s291, 4
      %s293 = smul.u32 8, %s292
      %p294 = scmp.lt.s32.totalorder %s293, 103
      %s295 = scalar_select %p294, %s293, 103
      %s296 = smul.addr %s295, 4
      %s297 = scalar_lea.vmem %s1, %s296
      %s298 = sadd.s32 %s17, 1
      %s299 = smul.u32 %s298, 4
      %s300 = smul.u32 8, %s299
      %s301 = smul.u32 32, %s17
      %p302 = scmp.lt.s32.totalorder %s301, 95
      %s303 = scalar_select %p302, %s301, 95
      %s304 = smul.addr %s303, 8
      %s305 = scalar_lea.vmem %s3, %s304
      %s306 = smul.u32 32, %s17
      %s307 = smul.u32 32, %s17
      %p308 = scmp.lt.s32.totalorder %s307, 95
      %s309 = scalar_select %p308, %s307, 95
      %s310 = smul.addr %s309, 4
      %s311 = scalar_lea.vmem %s4, %s310
      %s312 = smul.u32 32, %s17
      %p313 = scmp.lt.s32.totalorder %s17, 2
      %s314 = scalar_select %p313, %s17, 2
      %s315 = smul.addr %s314, 2
      %s316 = scalar_lea.vmem %s5, %s315
      %v318 = vld [vmem:[%s285] sm:$0xf]
      %v319 = vld [vmem:[%s285 + $0x4] sm:$0xf]
      %v320 = vld [vmem:[%s285 + $0x8] sm:$0xf]
      %v321 = vld [vmem:[%s285 + $0xc] sm:$0xf]
      %v322 = vld [vmem:[%s285 + $0x10] sm:$0xf]
      %v323 = vld [vmem:[%s285 + $0x14] sm:$0xf]
      %v324 = vld [vmem:[%s285 + $0x18] sm:$0xf]
      %v325 = vld [vmem:[%s285 + $0x1c] sm:$0xf]
      %v326 = vld [vmem:[%s285 + $0x20] sm:$0xf]
      %v327 = vld [vmem:[%s285 + $0x24] sm:$0xf]
      %v328 = vld [vmem:[%s285 + $0x28] sm:$0xf]
      %v329 = vld [vmem:[%s285 + $0x2c] sm:$0xf]
      %v330 = vld [vmem:[%s285 + $0x30] sm:$0xf]
      %v331 = vld [vmem:[%s285 + $0x34] sm:$0xf]
      %v332 = vld [vmem:[%s285 + $0x38] sm:$0xf]
      %v333 = vld [vmem:[%s285 + $0x3c] sm:$0xf]
      %v334 = vld [vmem:[%s285 + $0x40] sm:$0xf]
      %v335 = vld [vmem:[%s285 + $0x44] sm:$0xf]
      %v336 = vld [vmem:[%s285 + $0x48] sm:$0xf]
      %v337 = vld [vmem:[%s285 + $0x4c] sm:$0xf]
      %v338 = vld [vmem:[%s285 + $0x50] sm:$0xf]
      %v339 = vld [vmem:[%s285 + $0x54] sm:$0xf]
      %v340 = vld [vmem:[%s285 + $0x58] sm:$0xf]
      %v341 = vld [vmem:[%s285 + $0x5c] sm:$0xf]
      %v342 = vld [vmem:[%s285 + $0x60] sm:$0xf]
      %v343 = vld [vmem:[%s285 + $0x64] sm:$0xf]
      %v344 = vld [vmem:[%s285 + $0x68] sm:$0xf]
      %v345 = vld [vmem:[%s285 + $0x6c] sm:$0xf]
      %v346 = vld [vmem:[%s285 + $0x70] sm:$0xf]
      %v347 = vld [vmem:[%s285 + $0x74] sm:$0xf]
      %v348 = vld [vmem:[%s285 + $0x78] sm:$0xf]
      %v349 = vld [vmem:[%s285 + $0x7c] sm:$0xf]
      %v350 = vld [vmem:[%s297] sm:$0xf]
      %v351 = vld [vmem:[%s297 + $0x4] sm:$0xf]
      %v352 = vld [vmem:[%s297 + $0x8] sm:$0xf]
      %v353 = vld [vmem:[%s297 + $0xc] sm:$0xf]
      %v354 = vld [vmem:[%s297 + $0x10] sm:$0xf]
      %v355 = vld [vmem:[%s297 + $0x14] sm:$0xf]
      %v388 = vunpack.c.l.b16 %v318
      %v389 = vunpack.c.l.b16 %v319
      %v390 = vunpack.c.l.b16 %v320
      %v391 = vunpack.c.l.b16 %v321
      %v392 = vunpack.c.l.b16 %v322
      %v393 = vunpack.c.l.b16 %v323
      %v394 = vunpack.c.l.b16 %v324
      %v395 = vunpack.c.l.b16 %v325
      %v396 = vunpack.c.l.b16 %v326
      %v397 = vunpack.c.l.b16 %v327
      %v398 = vunpack.c.l.b16 %v328
      %v399 = vunpack.c.l.b16 %v329
      %v400 = vunpack.c.l.b16 %v330
      %v401 = vunpack.c.l.b16 %v331
      %v402 = vunpack.c.l.b16 %v332
      %v403 = vunpack.c.l.b16 %v333
      %v404 = vunpack.c.l.b16 %v334
      %v405 = vunpack.c.l.b16 %v335
      %v406 = vunpack.c.l.b16 %v336
      %v407 = vunpack.c.l.b16 %v337
      %v408 = vunpack.c.l.b16 %v338
      %v409 = vunpack.c.l.b16 %v339
      %v410 = vunpack.c.l.b16 %v340
      %v411 = vunpack.c.l.b16 %v341
      %v412 = vunpack.c.l.b16 %v342
      %v413 = vunpack.c.l.b16 %v343
      %v414 = vunpack.c.l.b16 %v344
      %v415 = vunpack.c.l.b16 %v345
      %v416 = vunpack.c.l.b16 %v346
      %v417 = vunpack.c.l.b16 %v347
      %v418 = vunpack.c.l.b16 %v348
      %v419 = vunpack.c.l.b16 %v349
      %v420 = vpack.c.b16 %v389, %v388
      %v421 = vpack.c.b16 %v391, %v390
      %v422 = vpack.c.b16 %v393, %v392
      %v423 = vpack.c.b16 %v395, %v394
      %v424 = vpack.c.b16 %v397, %v396
      %v425 = vpack.c.b16 %v399, %v398
      %v426 = vpack.c.b16 %v401, %v400
      %v427 = vpack.c.b16 %v403, %v402
      %v428 = vpack.c.b16 %v405, %v404
      %v429 = vpack.c.b16 %v407, %v406
      %v430 = vpack.c.b16 %v409, %v408
      %v431 = vpack.c.b16 %v411, %v410
      %v432 = vpack.c.b16 %v413, %v412
      %v433 = vpack.c.b16 %v415, %v414
      %v434 = vpack.c.b16 %v417, %v416
      %v435 = vpack.c.b16 %v419, %v418
      %v458 = vunpack.c.l.b16 %v350
      %v459 = vunpack.c.l.b16 %v351
      %v460 = vunpack.c.l.b16 %v352
      %v461 = vunpack.c.l.b16 %v353
      %v462 = vunpack.c.l.b16 %v354
      %v463 = vunpack.c.l.b16 %v355
      %v464 = vpack.c.b16 %v459, %v458
      %v465 = vpack.c.b16 %v461, %v460
      %v466 = vpack.c.b16 %v463, %v462
      %v470 = vunpack.c.l.bf16 %v420
      %v471 = vunpack.c.h.bf16 %v420
      %v472 = vunpack.c.l.bf16 %v421
      %v473 = vunpack.c.h.bf16 %v421
      %v474 = vunpack.c.l.bf16 %v422
      %v475 = vunpack.c.h.bf16 %v422
      %v476 = vunpack.c.l.bf16 %v423
      %v477 = vunpack.c.h.bf16 %v423
      %v478 = vunpack.c.l.bf16 %v424
      %v479 = vunpack.c.h.bf16 %v424
      %v480 = vunpack.c.l.bf16 %v425
      %v481 = vunpack.c.h.bf16 %v425
      %v482 = vunpack.c.l.bf16 %v426
      %v483 = vunpack.c.h.bf16 %v426
      %v484 = vunpack.c.l.bf16 %v427
      %v485 = vunpack.c.h.bf16 %v427
      %v486 = vunpack.c.l.bf16 %v428
      %v487 = vunpack.c.h.bf16 %v428
      %v488 = vunpack.c.l.bf16 %v429
      %v489 = vunpack.c.h.bf16 %v429
      %v490 = vunpack.c.l.bf16 %v430
      %v491 = vunpack.c.h.bf16 %v430
      %v492 = vunpack.c.l.bf16 %v431
      %v493 = vunpack.c.h.bf16 %v431
      %v494 = vunpack.c.l.bf16 %v432
      %v495 = vunpack.c.h.bf16 %v432
      %v496 = vunpack.c.l.bf16 %v433
      %v497 = vunpack.c.h.bf16 %v433
      %v498 = vunpack.c.l.bf16 %v434
      %v499 = vunpack.c.h.bf16 %v434
      %v500 = vunpack.c.l.bf16 %v435
      %v501 = vunpack.c.h.bf16 %v435
      %v502 = vunpack.c.l.bf16 %v464
      %v503 = vunpack.c.h.bf16 %v464
      %v504 = vunpack.c.l.bf16 %v465
      %v505 = vunpack.c.h.bf16 %v465
      %v506 = vunpack.c.l.bf16 %v466
      %v507 = vpack.c.bf16 %v471, %v470
      %v508 = vpack.c.bf16 %v473, %v472
      %v509 = vpack.c.bf16 %v475, %v474
      %v510 = vpack.c.bf16 %v477, %v476
      %v511 = vpack.c.bf16 %v479, %v478
      %v512 = vpack.c.bf16 %v481, %v480
      %v513 = vpack.c.bf16 %v483, %v482
      %v514 = vpack.c.bf16 %v485, %v484
      %v515 = vpack.c.bf16 %v487, %v486
      %v516 = vpack.c.bf16 %v489, %v488
      %v517 = vpack.c.bf16 %v491, %v490
      %v518 = vpack.c.bf16 %v493, %v492
      %v519 = vpack.c.bf16 %v495, %v494
      %v520 = vpack.c.bf16 %v497, %v496
      %v521 = vpack.c.bf16 %v499, %v498
      %v522 = vpack.c.bf16 %v501, %v500
      %v523 = vld [vmem:[%s2] sm:$0x3]
      %v524 = vpack.c.bf16 %v502, %v502
      %s525 = scalar_lea.vmem %s2, 2
      %v526 = vld [vmem:[%s525] sm:$0x3]
      %vm527 = vsmask.f32 7424
      %v529 = vshrl.u32 %v507, 16
      %v531 = vshll.u32 %v507, 16
      %v533 = vrot.slane %v531, 1
      %v534 = vor.u32 %v529, %v533
      %v536 = vshll.u32 %v508, 16
      %v538 = vrot.slane %v536, 1
      %v539 = vsel %vm527, %v534, %v538
      %v540 = vshrl.u32 %v508, 16
      %v542 = vor.u32 %v540, %v538
      %v544 = vshll.u32 %v509, 16
      %v546 = vrot.slane %v544, 1
      %v547 = vsel %vm527, %v542, %v546
      %v548 = vshrl.u32 %v509, 16
      %v550 = vor.u32 %v548, %v546
      %v552 = vshll.u32 %v510, 16
      %v554 = vrot.slane %v552, 1
      %v555 = vsel %vm527, %v550, %v554
      %v556 = vshrl.u32 %v510, 16
      %v558 = vor.u32 %v556, %v554
      %v560 = vshll.u32 %v511, 16
      %v562 = vrot.slane %v560, 1
      %v563 = vsel %vm527, %v558, %v562
      %v564 = vshrl.u32 %v511, 16
      %v566 = vor.u32 %v564, %v562
      %v568 = vshll.u32 %v512, 16
      %v570 = vrot.slane %v568, 1
      %v571 = vsel %vm527, %v566, %v570
      %v572 = vshrl.u32 %v512, 16
      %v574 = vor.u32 %v572, %v570
      %v576 = vshll.u32 %v513, 16
      %v578 = vrot.slane %v576, 1
      %v579 = vsel %vm527, %v574, %v578
      %v580 = vshrl.u32 %v513, 16
      %v582 = vor.u32 %v580, %v578
      %v584 = vshll.u32 %v514, 16
      %v586 = vrot.slane %v584, 1
      %v587 = vsel %vm527, %v582, %v586
      %v588 = vshrl.u32 %v514, 16
      %v590 = vor.u32 %v588, %v586
      %v592 = vshll.u32 %v515, 16
      %v594 = vrot.slane %v592, 1
      %v595 = vsel %vm527, %v590, %v594
      %v596 = vshrl.u32 %v515, 16
      %v598 = vor.u32 %v596, %v594
      %v600 = vshll.u32 %v516, 16
      %v602 = vrot.slane %v600, 1
      %v603 = vsel %vm527, %v598, %v602
      %v604 = vshrl.u32 %v516, 16
      %v606 = vor.u32 %v604, %v602
      %v608 = vshll.u32 %v517, 16
      %v610 = vrot.slane %v608, 1
      %v611 = vsel %vm527, %v606, %v610
      %v612 = vshrl.u32 %v517, 16
      %v614 = vor.u32 %v612, %v610
      %v616 = vshll.u32 %v518, 16
      %v618 = vrot.slane %v616, 1
      %v619 = vsel %vm527, %v614, %v618
      %v620 = vshrl.u32 %v518, 16
      %v622 = vor.u32 %v620, %v618
      %v624 = vshll.u32 %v519, 16
      %v626 = vrot.slane %v624, 1
      %v627 = vsel %vm527, %v622, %v626
      %v628 = vshrl.u32 %v519, 16
      %v630 = vor.u32 %v628, %v626
      %v632 = vshll.u32 %v520, 16
      %v634 = vrot.slane %v632, 1
      %v635 = vsel %vm527, %v630, %v634
      %v636 = vshrl.u32 %v520, 16
      %v638 = vor.u32 %v636, %v634
      %v640 = vshll.u32 %v521, 16
      %v642 = vrot.slane %v640, 1
      %v643 = vsel %vm527, %v638, %v642
      %v644 = vshrl.u32 %v521, 16
      %v646 = vor.u32 %v644, %v642
      %v648 = vshll.u32 %v522, 16
      %v650 = vrot.slane %v648, 1
      %v651 = vsel %vm527, %v646, %v650
      %v652 = vshrl.u32 %v522, 16
      %v654 = vor.u32 %v652, %v650
      %v656 = vshll.u32 %v524, 16
      %v658 = vrot.slane %v656, 1
      %v659 = vsel %vm527, %v654, %v658
      %vm660 = vcmask 31744
      %v662 = vsel %vm660, %v539, 0
      %v665 = vsel %vm660, %v547, 0
      %v668 = vsel %vm660, %v555, 0
      %v671 = vsel %vm660, %v563, 0
      %v674 = vsel %vm660, %v571, 0
      %v677 = vsel %vm660, %v579, 0
      %v680 = vsel %vm660, %v587, 0
      %v683 = vsel %vm660, %v595, 0
      %v686 = vsel %vm660, %v603, 0
      %v689 = vsel %vm660, %v611, 0
      %v692 = vsel %vm660, %v619, 0
      %v695 = vsel %vm660, %v627, 0
      %v698 = vsel %vm660, %v635, 0
      %v701 = vsel %vm660, %v643, 0
      %v704 = vsel %vm660, %v651, 0
      %v707 = vsel %vm660, %v659, 0
      %vm709 = vcmask 1041408
      %v711 = vsel %vm709, %v526, 0
      %713 = vmatpush.bf16.msra.mxu0 0
      %714 = vmatpush.bf16.msra.mxu0 0
      %715 = vmatpush.bf16.msra.mxu0 0
      %716 = vmatpush.bf16.msra.mxu0 0
      %717 = vmatpush.bf16.msra.mxu0 0
      %718 = vmatpush.bf16.msra.mxu0 0
      %719 = vmatpush.bf16.msra.mxu0 0
      %720 = vmatpush.bf16.msra.mxu0 %v711
      %721 = vmatmul.bf16.gmra.mxu0 %v662
      %v722 = vpop.f32.mrf.mxu0
      %v723 = vadd.f32 0.0, %v722
      %v724 = vpop.f32.mrf.mxu0
      %v725 = vadd.f32 0.0, %v724
      %726 = vmatmul.bf16.gmra.mxu0 %v665
      %v727 = vpop.f32.mrf.mxu0
      %v728 = vadd.f32 0.0, %v727
      %v729 = vpop.f32.mrf.mxu0
      %v730 = vadd.f32 0.0, %v729
      %731 = vmatmul.bf16.gmra.mxu0 %v668
      %v732 = vpop.f32.mrf.mxu0
      %v733 = vadd.f32 0.0, %v732
      %v734 = vpop.f32.mrf.mxu0
      %v735 = vadd.f32 0.0, %v734
      %736 = vmatmul.bf16.gmra.mxu0 %v671
      %v737 = vpop.f32.mrf.mxu0
      %v738 = vadd.f32 0.0, %v737
      %v739 = vpop.f32.mrf.mxu0
      %v740 = vadd.f32 0.0, %v739
      %741 = vmatmul.bf16.gmra.mxu0 %v674
      %v742 = vpop.f32.mrf.mxu0
      %v743 = vadd.f32 0.0, %v742
      %v744 = vpop.f32.mrf.mxu0
      %v745 = vadd.f32 0.0, %v744
      %746 = vmatmul.bf16.gmra.mxu0 %v677
      %v747 = vpop.f32.mrf.mxu0
      %v748 = vadd.f32 0.0, %v747
      %v749 = vpop.f32.mrf.mxu0
      %v750 = vadd.f32 0.0, %v749
      %751 = vmatmul.bf16.gmra.mxu0 %v680
      %v752 = vpop.f32.mrf.mxu0
      %v753 = vadd.f32 0.0, %v752
      %v754 = vpop.f32.mrf.mxu0
      %v755 = vadd.f32 0.0, %v754
      %756 = vmatmul.bf16.gmra.mxu0 %v683
      %v757 = vpop.f32.mrf.mxu0
      %v758 = vadd.f32 0.0, %v757
      %v759 = vpop.f32.mrf.mxu0
      %v760 = vadd.f32 0.0, %v759
      %761 = vmatmul.bf16.gmra.mxu0 %v686
      %v762 = vpop.f32.mrf.mxu0
      %v763 = vadd.f32 0.0, %v762
      %v764 = vpop.f32.mrf.mxu0
      %v765 = vadd.f32 0.0, %v764
      %766 = vmatmul.bf16.gmra.mxu0 %v689
      %v767 = vpop.f32.mrf.mxu0
      %v768 = vadd.f32 0.0, %v767
      %v769 = vpop.f32.mrf.mxu0
      %v770 = vadd.f32 0.0, %v769
      %771 = vmatmul.bf16.gmra.mxu0 %v692
      %v772 = vpop.f32.mrf.mxu0
      %v773 = vadd.f32 0.0, %v772
      %v774 = vpop.f32.mrf.mxu0
      %v775 = vadd.f32 0.0, %v774
      %776 = vmatmul.bf16.gmra.mxu0 %v695
      %v777 = vpop.f32.mrf.mxu0
      %v778 = vadd.f32 0.0, %v777
      %v779 = vpop.f32.mrf.mxu0
      %v780 = vadd.f32 0.0, %v779
      %781 = vmatmul.bf16.gmra.mxu0 %v698
      %v782 = vpop.f32.mrf.mxu0
      %v783 = vadd.f32 0.0, %v782
      %v784 = vpop.f32.mrf.mxu0
      %v785 = vadd.f32 0.0, %v784
      %786 = vmatmul.bf16.gmra.mxu0 %v701
      %v787 = vpop.f32.mrf.mxu0
      %v788 = vadd.f32 0.0, %v787
      %v789 = vpop.f32.mrf.mxu0
      %v790 = vadd.f32 0.0, %v789
      %791 = vmatmul.bf16.gmra.mxu0 %v704
      %v792 = vpop.f32.mrf.mxu0
      %v793 = vadd.f32 0.0, %v792
      %v794 = vpop.f32.mrf.mxu0
      %v795 = vadd.f32 0.0, %v794
      %796 = vmatmul.bf16.gmra.mxu0 %v707
      %v797 = vpop.f32.mrf.mxu0
      %v798 = vadd.f32 0.0, %v797
      %v799 = vpop.f32.mrf.mxu0
      %v800 = vadd.f32 0.0, %v799
      %801 = vdwg.mxu0
      %v802 = vsel %vm660, %v507, 0
      %v804 = vsel %vm660, %v508, 0
      %v806 = vsel %vm660, %v509, 0
      %v808 = vsel %vm660, %v510, 0
      %v810 = vsel %vm660, %v511, 0
      %v812 = vsel %vm660, %v512, 0
      %v814 = vsel %vm660, %v513, 0
      %v816 = vsel %vm660, %v514, 0
      %v818 = vsel %vm660, %v515, 0
      %v820 = vsel %vm660, %v516, 0
      %v822 = vsel %vm660, %v517, 0
      %v824 = vsel %vm660, %v518, 0
      %v826 = vsel %vm660, %v519, 0
      %v828 = vsel %vm660, %v520, 0
      %v830 = vsel %vm660, %v521, 0
      %v832 = vsel %vm660, %v522, 0
      %v835 = vsel %vm709, %v523, 0
      %837 = vmatpush.bf16.msra.mxu0 0
      %838 = vmatpush.bf16.msra.mxu0 0
      %839 = vmatpush.bf16.msra.mxu0 0
      %840 = vmatpush.bf16.msra.mxu0 0
      %841 = vmatpush.bf16.msra.mxu0 0
      %842 = vmatpush.bf16.msra.mxu0 0
      %843 = vmatpush.bf16.msra.mxu0 0
      %844 = vmatpush.bf16.msra.mxu0 %v835
      %845 = vmatmul.bf16.gmra.mxu0 %v802
      %v846 = vpop.f32.mrf.mxu0
      %v847 = vadd.f32 %v723, %v846
      %v848 = vpop.f32.mrf.mxu0
      %v849 = vadd.f32 %v725, %v848
      %850 = vmatmul.bf16.gmra.mxu0 %v804
      %v851 = vpop.f32.mrf.mxu0
      %v852 = vadd.f32 %v728, %v851
      %v853 = vpop.f32.mrf.mxu0
      %v854 = vadd.f32 %v730, %v853
      %855 = vmatmul.bf16.gmra.mxu0 %v806
      %v856 = vpop.f32.mrf.mxu0
      %v857 = vadd.f32 %v733, %v856
      %v858 = vpop.f32.mrf.mxu0
      %v859 = vadd.f32 %v735, %v858
      %860 = vmatmul.bf16.gmra.mxu0 %v808
      %v861 = vpop.f32.mrf.mxu0
      %v862 = vadd.f32 %v738, %v861
      %v863 = vpop.f32.mrf.mxu0
      %v864 = vadd.f32 %v740, %v863
      %865 = vmatmul.bf16.gmra.mxu0 %v810
      %v866 = vpop.f32.mrf.mxu0
      %v867 = vadd.f32 %v743, %v866
      %v868 = vpop.f32.mrf.mxu0
      %v869 = vadd.f32 %v745, %v868
      %870 = vmatmul.bf16.gmra.mxu0 %v812
      %v871 = vpop.f32.mrf.mxu0
      %v872 = vadd.f32 %v748, %v871
      %v873 = vpop.f32.mrf.mxu0
      %v874 = vadd.f32 %v750, %v873
      %875 = vmatmul.bf16.gmra.mxu0 %v814
      %v876 = vpop.f32.mrf.mxu0
      %v877 = vadd.f32 %v753, %v876
      %v878 = vpop.f32.mrf.mxu0
      %v879 = vadd.f32 %v755, %v878
      %880 = vmatmul.bf16.gmra.mxu0 %v816
      %v881 = vpop.f32.mrf.mxu0
      %v882 = vadd.f32 %v758, %v881
      %v883 = vpop.f32.mrf.mxu0
      %v884 = vadd.f32 %v760, %v883
      %885 = vmatmul.bf16.gmra.mxu0 %v818
      %v886 = vpop.f32.mrf.mxu0
      %v887 = vadd.f32 %v763, %v886
      %v888 = vpop.f32.mrf.mxu0
      %v889 = vadd.f32 %v765, %v888
      %890 = vmatmul.bf16.gmra.mxu0 %v820
      %v891 = vpop.f32.mrf.mxu0
      %v892 = vadd.f32 %v768, %v891
      %v893 = vpop.f32.mrf.mxu0
      %v894 = vadd.f32 %v770, %v893
      %895 = vmatmul.bf16.gmra.mxu0 %v822
      %v896 = vpop.f32.mrf.mxu0
      %v897 = vadd.f32 %v773, %v896
      %v898 = vpop.f32.mrf.mxu0
      %v899 = vadd.f32 %v775, %v898
      %900 = vmatmul.bf16.gmra.mxu0 %v824
      %v901 = vpop.f32.mrf.mxu0
      %v902 = vadd.f32 %v778, %v901
      %v903 = vpop.f32.mrf.mxu0
      %v904 = vadd.f32 %v780, %v903
      %905 = vmatmul.bf16.gmra.mxu0 %v826
      %v906 = vpop.f32.mrf.mxu0
      %v907 = vadd.f32 %v783, %v906
      %v908 = vpop.f32.mrf.mxu0
      %v909 = vadd.f32 %v785, %v908
      %910 = vmatmul.bf16.gmra.mxu0 %v828
      %v911 = vpop.f32.mrf.mxu0
      %v912 = vadd.f32 %v788, %v911
      %v913 = vpop.f32.mrf.mxu0
      %v914 = vadd.f32 %v790, %v913
      %915 = vmatmul.bf16.gmra.mxu0 %v830
      %v916 = vpop.f32.mrf.mxu0
      %v917 = vadd.f32 %v793, %v916
      %v918 = vpop.f32.mrf.mxu0
      %v919 = vadd.f32 %v795, %v918
      %920 = vmatmul.bf16.gmra.mxu0 %v832
      %v921 = vpop.f32.mrf.mxu0
      %v922 = vadd.f32 %v798, %v921
      %v923 = vpop.f32.mrf.mxu0
      %v924 = vadd.f32 %v800, %v923
      %925 = vdwg.mxu0
      %s926 = scalar_lea.vmem %s2, 4
      %v927 = vld [vmem:[%s926] sm:$0x3]
      %vm945 = vcmask 1046528
      %v946 = vrot.slane %v507, 1
      %v947 = vrot.slane %v508, 1
      %v948 = vsel %vm945, %v946, %v947
      %v949 = vrot.slane %v509, 1
      %v950 = vsel %vm945, %v947, %v949
      %v951 = vrot.slane %v510, 1
      %v952 = vsel %vm945, %v949, %v951
      %v953 = vrot.slane %v511, 1
      %v954 = vsel %vm945, %v951, %v953
      %v955 = vrot.slane %v512, 1
      %v956 = vsel %vm945, %v953, %v955
      %v957 = vrot.slane %v513, 1
      %v958 = vsel %vm945, %v955, %v957
      %v959 = vrot.slane %v514, 1
      %v960 = vsel %vm945, %v957, %v959
      %v961 = vrot.slane %v515, 1
      %v962 = vsel %vm945, %v959, %v961
      %v963 = vrot.slane %v516, 1
      %v964 = vsel %vm945, %v961, %v963
      %v965 = vrot.slane %v517, 1
      %v966 = vsel %vm945, %v963, %v965
      %v967 = vrot.slane %v518, 1
      %v968 = vsel %vm945, %v965, %v967
      %v969 = vrot.slane %v519, 1
      %v970 = vsel %vm945, %v967, %v969
      %v971 = vrot.slane %v520, 1
      %v972 = vsel %vm945, %v969, %v971
      %v973 = vrot.slane %v521, 1
      %v974 = vsel %vm945, %v971, %v973
      %v975 = vrot.slane %v522, 1
      %v976 = vsel %vm945, %v973, %v975
      %v977 = vrot.slane %v524, 1
      %v978 = vsel %vm945, %v975, %v977
      %v980 = vsel %vm660, %v948, 0
      %v983 = vsel %vm660, %v950, 0
      %v986 = vsel %vm660, %v952, 0
      %v989 = vsel %vm660, %v954, 0
      %v992 = vsel %vm660, %v956, 0
      %v995 = vsel %vm660, %v958, 0
      %v998 = vsel %vm660, %v960, 0
      %v1001 = vsel %vm660, %v962, 0
      %v1004 = vsel %vm660, %v964, 0
      %v1007 = vsel %vm660, %v966, 0
      %v1010 = vsel %vm660, %v968, 0
      %v1013 = vsel %vm660, %v970, 0
      %v1016 = vsel %vm660, %v972, 0
      %v1019 = vsel %vm660, %v974, 0
      %v1022 = vsel %vm660, %v976, 0
      %v1025 = vsel %vm660, %v978, 0
      %v1028 = vsel %vm709, %v927, 0
      %1030 = vmatpush.bf16.msra.mxu0 0
      %1031 = vmatpush.bf16.msra.mxu0 0
      %1032 = vmatpush.bf16.msra.mxu0 0
      %1033 = vmatpush.bf16.msra.mxu0 0
      %1034 = vmatpush.bf16.msra.mxu0 0
      %1035 = vmatpush.bf16.msra.mxu0 0
      %1036 = vmatpush.bf16.msra.mxu0 0
      %1037 = vmatpush.bf16.msra.mxu0 %v1028
      %1038 = vmatmul.bf16.gmra.mxu0 %v980
      %v1039 = vpop.f32.mrf.mxu0
      %v1040 = vadd.f32 0.0, %v1039
      %v1041 = vpop.f32.mrf.mxu0
      %v1042 = vadd.f32 0.0, %v1041
      %1043 = vmatmul.bf16.gmra.mxu0 %v983
      %v1044 = vpop.f32.mrf.mxu0
      %v1045 = vadd.f32 0.0, %v1044
      %v1046 = vpop.f32.mrf.mxu0
      %v1047 = vadd.f32 0.0, %v1046
      %1048 = vmatmul.bf16.gmra.mxu0 %v986
      %v1049 = vpop.f32.mrf.mxu0
      %v1050 = vadd.f32 0.0, %v1049
      %v1051 = vpop.f32.mrf.mxu0
      %v1052 = vadd.f32 0.0, %v1051
      %1053 = vmatmul.bf16.gmra.mxu0 %v989
      %v1054 = vpop.f32.mrf.mxu0
      %v1055 = vadd.f32 0.0, %v1054
      %v1056 = vpop.f32.mrf.mxu0
      %v1057 = vadd.f32 0.0, %v1056
      %1058 = vmatmul.bf16.gmra.mxu0 %v992
      %v1059 = vpop.f32.mrf.mxu0
      %v1060 = vadd.f32 0.0, %v1059
      %v1061 = vpop.f32.mrf.mxu0
      %v1062 = vadd.f32 0.0, %v1061
      %1063 = vmatmul.bf16.gmra.mxu0 %v995
      %v1064 = vpop.f32.mrf.mxu0
      %v1065 = vadd.f32 0.0, %v1064
      %v1066 = vpop.f32.mrf.mxu0
      %v1067 = vadd.f32 0.0, %v1066
      %1068 = vmatmul.bf16.gmra.mxu0 %v998
      %v1069 = vpop.f32.mrf.mxu0
      %v1070 = vadd.f32 0.0, %v1069
      %v1071 = vpop.f32.mrf.mxu0
      %v1072 = vadd.f32 0.0, %v1071
      %1073 = vmatmul.bf16.gmra.mxu0 %v1001
      %v1074 = vpop.f32.mrf.mxu0
      %v1075 = vadd.f32 0.0, %v1074
      %v1076 = vpop.f32.mrf.mxu0
      %v1077 = vadd.f32 0.0, %v1076
      %1078 = vmatmul.bf16.gmra.mxu0 %v1004
      %v1079 = vpop.f32.mrf.mxu0
      %v1080 = vadd.f32 0.0, %v1079
      %v1081 = vpop.f32.mrf.mxu0
      %v1082 = vadd.f32 0.0, %v1081
      %1083 = vmatmul.bf16.gmra.mxu0 %v1007
      %v1084 = vpop.f32.mrf.mxu0
      %v1085 = vadd.f32 0.0, %v1084
      %v1086 = vpop.f32.mrf.mxu0
      %v1087 = vadd.f32 0.0, %v1086
      %1088 = vmatmul.bf16.gmra.mxu0 %v1010
      %v1089 = vpop.f32.mrf.mxu0
      %v1090 = vadd.f32 0.0, %v1089
      %v1091 = vpop.f32.mrf.mxu0
      %v1092 = vadd.f32 0.0, %v1091
      %1093 = vmatmul.bf16.gmra.mxu0 %v1013
      %v1094 = vpop.f32.mrf.mxu0
      %v1095 = vadd.f32 0.0, %v1094
      %v1096 = vpop.f32.mrf.mxu0
      %v1097 = vadd.f32 0.0, %v1096
      %1098 = vmatmul.bf16.gmra.mxu0 %v1016
      %v1099 = vpop.f32.mrf.mxu0
      %v1100 = vadd.f32 0.0, %v1099
      %v1101 = vpop.f32.mrf.mxu0
      %v1102 = vadd.f32 0.0, %v1101
      %1103 = vmatmul.bf16.gmra.mxu0 %v1019
      %v1104 = vpop.f32.mrf.mxu0
      %v1105 = vadd.f32 0.0, %v1104
      %v1106 = vpop.f32.mrf.mxu0
      %v1107 = vadd.f32 0.0, %v1106
      %1108 = vmatmul.bf16.gmra.mxu0 %v1022
      %v1109 = vpop.f32.mrf.mxu0
      %v1110 = vadd.f32 0.0, %v1109
      %v1111 = vpop.f32.mrf.mxu0
      %v1112 = vadd.f32 0.0, %v1111
      %1113 = vmatmul.bf16.gmra.mxu0 %v1025
      %v1114 = vpop.f32.mrf.mxu0
      %v1115 = vadd.f32 0.0, %v1114
      %v1116 = vpop.f32.mrf.mxu0
      %v1117 = vadd.f32 0.0, %v1116
      %1118 = vdwg.mxu0
      %v1119 = vadd.f32 %v847, %v1040
      %v1120 = vadd.f32 %v849, %v1042
      %v1121 = vadd.f32 %v852, %v1045
      %v1122 = vadd.f32 %v854, %v1047
      %v1123 = vadd.f32 %v857, %v1050
      %v1124 = vadd.f32 %v859, %v1052
      %v1125 = vadd.f32 %v862, %v1055
      %v1126 = vadd.f32 %v864, %v1057
      %v1127 = vadd.f32 %v867, %v1060
      %v1128 = vadd.f32 %v869, %v1062
      %v1129 = vadd.f32 %v872, %v1065
      %v1130 = vadd.f32 %v874, %v1067
      %v1131 = vadd.f32 %v877, %v1070
      %v1132 = vadd.f32 %v879, %v1072
      %v1133 = vadd.f32 %v882, %v1075
      %v1134 = vadd.f32 %v884, %v1077
      %v1135 = vadd.f32 %v887, %v1080
      %v1136 = vadd.f32 %v889, %v1082
      %v1137 = vadd.f32 %v892, %v1085
      %v1138 = vadd.f32 %v894, %v1087
      %v1139 = vadd.f32 %v897, %v1090
      %v1140 = vadd.f32 %v899, %v1092
      %v1141 = vadd.f32 %v902, %v1095
      %v1142 = vadd.f32 %v904, %v1097
      %v1143 = vadd.f32 %v907, %v1100
      %v1144 = vadd.f32 %v909, %v1102
      %v1145 = vadd.f32 %v912, %v1105
      %v1146 = vadd.f32 %v914, %v1107
      %v1147 = vadd.f32 %v917, %v1110
      %v1148 = vadd.f32 %v919, %v1112
      %v1149 = vadd.f32 %v922, %v1115
      %v1150 = vadd.f32 %v924, %v1117
      %v1151 = vpack.c.bf16 %v503, %v502
      %v1152 = vpack.c.bf16 %v504, %v504
      %s1153 = scalar_lea.vmem %s2, 6
      %v1154 = vld [vmem:[%s1153] sm:$0x3]
      %v1157 = vrot.slane %v1151, 1
      %v1158 = vsel %vm945, %v975, %v1157
      %v1159 = vrot.slane %v1152, 1
      %v1160 = vsel %vm945, %v1157, %v1159
      %v1162 = vsel %vm660, %v1158, 0
      %v1165 = vsel %vm660, %v1160, 0
      %v1168 = vsel %vm709, %v1154, 0
      %1170 = vmatpush.bf16.msra.mxu0 0
      %1171 = vmatpush.bf16.msra.mxu0 0
      %1172 = vmatpush.bf16.msra.mxu0 0
      %1173 = vmatpush.bf16.msra.mxu0 0
      %1174 = vmatpush.bf16.msra.mxu0 0
      %1175 = vmatpush.bf16.msra.mxu0 0
      %1176 = vmatpush.bf16.msra.mxu0 0
      %1177 = vmatpush.bf16.msra.mxu0 %v1168
      %1178 = vmatmul.bf16.gmra.mxu0 %v983
      %v1179 = vpop.f32.mrf.mxu0
      %v1180 = vadd.f32 0.0, %v1179
      %v1181 = vpop.f32.mrf.mxu0
      %v1182 = vadd.f32 0.0, %v1181
      %1183 = vmatmul.bf16.gmra.mxu0 %v986
      %v1184 = vpop.f32.mrf.mxu0
      %v1185 = vadd.f32 0.0, %v1184
      %v1186 = vpop.f32.mrf.mxu0
      %v1187 = vadd.f32 0.0, %v1186
      %1188 = vmatmul.bf16.gmra.mxu0 %v989
      %v1189 = vpop.f32.mrf.mxu0
      %v1190 = vadd.f32 0.0, %v1189
      %v1191 = vpop.f32.mrf.mxu0
      %v1192 = vadd.f32 0.0, %v1191
      %1193 = vmatmul.bf16.gmra.mxu0 %v992
      %v1194 = vpop.f32.mrf.mxu0
      %v1195 = vadd.f32 0.0, %v1194
      %v1196 = vpop.f32.mrf.mxu0
      %v1197 = vadd.f32 0.0, %v1196
      %1198 = vmatmul.bf16.gmra.mxu0 %v995
      %v1199 = vpop.f32.mrf.mxu0
      %v1200 = vadd.f32 0.0, %v1199
      %v1201 = vpop.f32.mrf.mxu0
      %v1202 = vadd.f32 0.0, %v1201
      %1203 = vmatmul.bf16.gmra.mxu0 %v998
      %v1204 = vpop.f32.mrf.mxu0
      %v1205 = vadd.f32 0.0, %v1204
      %v1206 = vpop.f32.mrf.mxu0
      %v1207 = vadd.f32 0.0, %v1206
      %1208 = vmatmul.bf16.gmra.mxu0 %v1001
      %v1209 = vpop.f32.mrf.mxu0
      %v1210 = vadd.f32 0.0, %v1209
      %v1211 = vpop.f32.mrf.mxu0
      %v1212 = vadd.f32 0.0, %v1211
      %1213 = vmatmul.bf16.gmra.mxu0 %v1004
      %v1214 = vpop.f32.mrf.mxu0
      %v1215 = vadd.f32 0.0, %v1214
      %v1216 = vpop.f32.mrf.mxu0
      %v1217 = vadd.f32 0.0, %v1216
      %1218 = vmatmul.bf16.gmra.mxu0 %v1007
      %v1219 = vpop.f32.mrf.mxu0
      %v1220 = vadd.f32 0.0, %v1219
      %v1221 = vpop.f32.mrf.mxu0
      %v1222 = vadd.f32 0.0, %v1221
      %1223 = vmatmul.bf16.gmra.mxu0 %v1010
      %v1224 = vpop.f32.mrf.mxu0
      %v1225 = vadd.f32 0.0, %v1224
      %v1226 = vpop.f32.mrf.mxu0
      %v1227 = vadd.f32 0.0, %v1226
      %1228 = vmatmul.bf16.gmra.mxu0 %v1013
      %v1229 = vpop.f32.mrf.mxu0
      %v1230 = vadd.f32 0.0, %v1229
      %v1231 = vpop.f32.mrf.mxu0
      %v1232 = vadd.f32 0.0, %v1231
      %1233 = vmatmul.bf16.gmra.mxu0 %v1016
      %v1234 = vpop.f32.mrf.mxu0
      %v1235 = vadd.f32 0.0, %v1234
      %v1236 = vpop.f32.mrf.mxu0
      %v1237 = vadd.f32 0.0, %v1236
      %1238 = vmatmul.bf16.gmra.mxu0 %v1019
      %v1239 = vpop.f32.mrf.mxu0
      %v1240 = vadd.f32 0.0, %v1239
      %v1241 = vpop.f32.mrf.mxu0
      %v1242 = vadd.f32 0.0, %v1241
      %1243 = vmatmul.bf16.gmra.mxu0 %v1022
      %v1244 = vpop.f32.mrf.mxu0
      %v1245 = vadd.f32 0.0, %v1244
      %v1246 = vpop.f32.mrf.mxu0
      %v1247 = vadd.f32 0.0, %v1246
      %1248 = vmatmul.bf16.gmra.mxu0 %v1162
      %v1249 = vpop.f32.mrf.mxu0
      %v1250 = vadd.f32 0.0, %v1249
      %v1251 = vpop.f32.mrf.mxu0
      %v1252 = vadd.f32 0.0, %v1251
      %1253 = vmatmul.bf16.gmra.mxu0 %v1165
      %v1254 = vpop.f32.mrf.mxu0
      %v1255 = vadd.f32 0.0, %v1254
      %v1256 = vpop.f32.mrf.mxu0
      %v1257 = vadd.f32 0.0, %v1256
      %1258 = vdwg.mxu0
      %v1259 = vadd.f32 %v1119, %v1180
      %v1260 = vadd.f32 %v1120, %v1182
      %v1261 = vadd.f32 %v1121, %v1185
      %v1262 = vadd.f32 %v1122, %v1187
      %v1263 = vadd.f32 %v1123, %v1190
      %v1264 = vadd.f32 %v1124, %v1192
      %v1265 = vadd.f32 %v1125, %v1195
      %v1266 = vadd.f32 %v1126, %v1197
      %v1267 = vadd.f32 %v1127, %v1200
      %v1268 = vadd.f32 %v1128, %v1202
      %v1269 = vadd.f32 %v1129, %v1205
      %v1270 = vadd.f32 %v1130, %v1207
      %v1271 = vadd.f32 %v1131, %v1210
      %v1272 = vadd.f32 %v1132, %v1212
      %v1273 = vadd.f32 %v1133, %v1215
      %v1274 = vadd.f32 %v1134, %v1217
      %v1275 = vadd.f32 %v1135, %v1220
      %v1276 = vadd.f32 %v1136, %v1222
      %v1277 = vadd.f32 %v1137, %v1225
      %v1278 = vadd.f32 %v1138, %v1227
      %v1279 = vadd.f32 %v1139, %v1230
      %v1280 = vadd.f32 %v1140, %v1232
      %v1281 = vadd.f32 %v1141, %v1235
      %v1282 = vadd.f32 %v1142, %v1237
      %v1283 = vadd.f32 %v1143, %v1240
      %v1284 = vadd.f32 %v1144, %v1242
      %v1285 = vadd.f32 %v1145, %v1245
      %v1286 = vadd.f32 %v1146, %v1247
      %v1287 = vadd.f32 %v1147, %v1250
      %v1288 = vadd.f32 %v1148, %v1252
      %v1289 = vadd.f32 %v1149, %v1255
      %v1290 = vadd.f32 %v1150, %v1257
      %s1291 = scalar_lea.vmem %s2, 8
      %v1292 = vld [vmem:[%s1291] sm:$0x3]
      %vm1293 = vsmask.f32 6400
      %v1294 = vrot.slane %v540, 1
      %v1295 = vrot.slane %v536, 2
      %v1296 = vor.u32 %v1294, %v1295
      %v1297 = vrot.slane %v548, 1
      %v1298 = vrot.slane %v544, 2
      %v1299 = vor.u32 %v1297, %v1298
      %v1300 = vsel %vm1293, %v1296, %v1299
      %v1301 = vrot.slane %v556, 1
      %v1302 = vrot.slane %v552, 2
      %v1303 = vor.u32 %v1301, %v1302
      %v1304 = vsel %vm1293, %v1299, %v1303
      %v1305 = vrot.slane %v564, 1
      %v1306 = vrot.slane %v560, 2
      %v1307 = vor.u32 %v1305, %v1306
      %v1308 = vsel %vm1293, %v1303, %v1307
      %v1309 = vrot.slane %v572, 1
      %v1310 = vrot.slane %v568, 2
      %v1311 = vor.u32 %v1309, %v1310
      %v1312 = vsel %vm1293, %v1307, %v1311
      %v1313 = vrot.slane %v580, 1
      %v1314 = vrot.slane %v576, 2
      %v1315 = vor.u32 %v1313, %v1314
      %v1316 = vsel %vm1293, %v1311, %v1315
      %v1317 = vrot.slane %v588, 1
      %v1318 = vrot.slane %v584, 2
      %v1319 = vor.u32 %v1317, %v1318
      %v1320 = vsel %vm1293, %v1315, %v1319
      %v1321 = vrot.slane %v596, 1
      %v1322 = vrot.slane %v592, 2
      %v1323 = vor.u32 %v1321, %v1322
      %v1324 = vsel %vm1293, %v1319, %v1323
      %v1325 = vrot.slane %v604, 1
      %v1326 = vrot.slane %v600, 2
      %v1327 = vor.u32 %v1325, %v1326
      %v1328 = vsel %vm1293, %v1323, %v1327
      %v1329 = vrot.slane %v612, 1
      %v1330 = vrot.slane %v608, 2
      %v1331 = vor.u32 %v1329, %v1330
      %v1332 = vsel %vm1293, %v1327, %v1331
      %v1333 = vrot.slane %v620, 1
      %v1334 = vrot.slane %v616, 2
      %v1335 = vor.u32 %v1333, %v1334
      %v1336 = vsel %vm1293, %v1331, %v1335
      %v1337 = vrot.slane %v628, 1
      %v1338 = vrot.slane %v624, 2
      %v1339 = vor.u32 %v1337, %v1338
      %v1340 = vsel %vm1293, %v1335, %v1339
      %v1341 = vrot.slane %v636, 1
      %v1342 = vrot.slane %v632, 2
      %v1343 = vor.u32 %v1341, %v1342
      %v1344 = vsel %vm1293, %v1339, %v1343
      %v1345 = vrot.slane %v644, 1
      %v1346 = vrot.slane %v640, 2
      %v1347 = vor.u32 %v1345, %v1346
      %v1348 = vsel %vm1293, %v1343, %v1347
      %v1349 = vrot.slane %v652, 1
      %v1350 = vrot.slane %v648, 2
      %v1351 = vor.u32 %v1349, %v1350
      %v1352 = vsel %vm1293, %v1347, %v1351
      %v1354 = vshrl.u32 %v1151, 16
      %v1356 = vrot.slane %v1354, 1
      %v1357 = vshll.u32 %v1151, 16
      %v1359 = vrot.slane %v1357, 2
      %v1360 = vor.u32 %v1356, %v1359
      %v1361 = vsel %vm1293, %v1351, %v1360
      %v1363 = vshrl.u32 %v1152, 16
      %v1365 = vrot.slane %v1363, 1
      %v1366 = vshll.u32 %v1152, 16
      %v1368 = vrot.slane %v1366, 2
      %v1369 = vor.u32 %v1365, %v1368
      %v1370 = vsel %vm1293, %v1360, %v1369
      %v1372 = vsel %vm660, %v1300, 0
      %v1375 = vsel %vm660, %v1304, 0
      %v1378 = vsel %vm660, %v1308, 0
      %v1381 = vsel %vm660, %v1312, 0
      %v1384 = vsel %vm660, %v1316, 0
      %v1387 = vsel %vm660, %v1320, 0
      %v1390 = vsel %vm660, %v1324, 0
      %v1393 = vsel %vm660, %v1328, 0
      %v1396 = vsel %vm660, %v1332, 0
      %v1399 = vsel %vm660, %v1336, 0
      %v1402 = vsel %vm660, %v1340, 0
      %v1405 = vsel %vm660, %v1344, 0
      %v1408 = vsel %vm660, %v1348, 0
      %v1411 = vsel %vm660, %v1352, 0
      %v1414 = vsel %vm660, %v1361, 0
      %v1417 = vsel %vm660, %v1370, 0
      %v1420 = vsel %vm709, %v1292, 0
      %1422 = vmatpush.bf16.msra.mxu0 0
      %1423 = vmatpush.bf16.msra.mxu0 0
      %1424 = vmatpush.bf16.msra.mxu0 0
      %1425 = vmatpush.bf16.msra.mxu0 0
      %1426 = vmatpush.bf16.msra.mxu0 0
      %1427 = vmatpush.bf16.msra.mxu0 0
      %1428 = vmatpush.bf16.msra.mxu0 0
      %1429 = vmatpush.bf16.msra.mxu0 %v1420
      %1430 = vmatmul.bf16.gmra.mxu0 %v1372
      %v1431 = vpop.f32.mrf.mxu0
      %v1432 = vadd.f32 0.0, %v1431
      %v1433 = vpop.f32.mrf.mxu0
      %v1434 = vadd.f32 0.0, %v1433
      %1435 = vmatmul.bf16.gmra.mxu0 %v1375
      %v1436 = vpop.f32.mrf.mxu0
      %v1437 = vadd.f32 0.0, %v1436
      %v1438 = vpop.f32.mrf.mxu0
      %v1439 = vadd.f32 0.0, %v1438
      %1440 = vmatmul.bf16.gmra.mxu0 %v1378
      %v1441 = vpop.f32.mrf.mxu0
      %v1442 = vadd.f32 0.0, %v1441
      %v1443 = vpop.f32.mrf.mxu0
      %v1444 = vadd.f32 0.0, %v1443
      %1445 = vmatmul.bf16.gmra.mxu0 %v1381
      %v1446 = vpop.f32.mrf.mxu0
      %v1447 = vadd.f32 0.0, %v1446
      %v1448 = vpop.f32.mrf.mxu0
      %v1449 = vadd.f32 0.0, %v1448
      %1450 = vmatmul.bf16.gmra.mxu0 %v1384
      %v1451 = vpop.f32.mrf.mxu0
      %v1452 = vadd.f32 0.0, %v1451
      %v1453 = vpop.f32.mrf.mxu0
      %v1454 = vadd.f32 0.0, %v1453
      %1455 = vmatmul.bf16.gmra.mxu0 %v1387
      %v1456 = vpop.f32.mrf.mxu0
      %v1457 = vadd.f32 0.0, %v1456
      %v1458 = vpop.f32.mrf.mxu0
      %v1459 = vadd.f32 0.0, %v1458
      %1460 = vmatmul.bf16.gmra.mxu0 %v1390
      %v1461 = vpop.f32.mrf.mxu0
      %v1462 = vadd.f32 0.0, %v1461
      %v1463 = vpop.f32.mrf.mxu0
      %v1464 = vadd.f32 0.0, %v1463
      %1465 = vmatmul.bf16.gmra.mxu0 %v1393
      %v1466 = vpop.f32.mrf.mxu0
      %v1467 = vadd.f32 0.0, %v1466
      %v1468 = vpop.f32.mrf.mxu0
      %v1469 = vadd.f32 0.0, %v1468
      %1470 = vmatmul.bf16.gmra.mxu0 %v1396
      %v1471 = vpop.f32.mrf.mxu0
      %v1472 = vadd.f32 0.0, %v1471
      %v1473 = vpop.f32.mrf.mxu0
      %v1474 = vadd.f32 0.0, %v1473
      %1475 = vmatmul.bf16.gmra.mxu0 %v1399
      %v1476 = vpop.f32.mrf.mxu0
      %v1477 = vadd.f32 0.0, %v1476
      %v1478 = vpop.f32.mrf.mxu0
      %v1479 = vadd.f32 0.0, %v1478
      %1480 = vmatmul.bf16.gmra.mxu0 %v1402
      %v1481 = vpop.f32.mrf.mxu0
      %v1482 = vadd.f32 0.0, %v1481
      %v1483 = vpop.f32.mrf.mxu0
      %v1484 = vadd.f32 0.0, %v1483
      %1485 = vmatmul.bf16.gmra.mxu0 %v1405
      %v1486 = vpop.f32.mrf.mxu0
      %v1487 = vadd.f32 0.0, %v1486
      %v1488 = vpop.f32.mrf.mxu0
      %v1489 = vadd.f32 0.0, %v1488
      %1490 = vmatmul.bf16.gmra.mxu0 %v1408
      %v1491 = vpop.f32.mrf.mxu0
      %v1492 = vadd.f32 0.0, %v1491
      %v1493 = vpop.f32.mrf.mxu0
      %v1494 = vadd.f32 0.0, %v1493
      %1495 = vmatmul.bf16.gmra.mxu0 %v1411
      %v1496 = vpop.f32.mrf.mxu0
      %v1497 = vadd.f32 0.0, %v1496
      %v1498 = vpop.f32.mrf.mxu0
      %v1499 = vadd.f32 0.0, %v1498
      %1500 = vmatmul.bf16.gmra.mxu0 %v1414
      %v1501 = vpop.f32.mrf.mxu0
      %v1502 = vadd.f32 0.0, %v1501
      %v1503 = vpop.f32.mrf.mxu0
      %v1504 = vadd.f32 0.0, %v1503
      %1505 = vmatmul.bf16.gmra.mxu0 %v1417
      %v1506 = vpop.f32.mrf.mxu0
      %v1507 = vadd.f32 0.0, %v1506
      %v1508 = vpop.f32.mrf.mxu0
      %v1509 = vadd.f32 0.0, %v1508
      %1510 = vdwg.mxu0
      %v1511 = vadd.f32 %v1259, %v1432
      %v1512 = vadd.f32 %v1260, %v1434
      %v1513 = vadd.f32 %v1261, %v1437
      %v1514 = vadd.f32 %v1262, %v1439
      %v1515 = vadd.f32 %v1263, %v1442
      %v1516 = vadd.f32 %v1264, %v1444
      %v1517 = vadd.f32 %v1265, %v1447
      %v1518 = vadd.f32 %v1266, %v1449
      %v1519 = vadd.f32 %v1267, %v1452
      %v1520 = vadd.f32 %v1268, %v1454
      %v1521 = vadd.f32 %v1269, %v1457
      %v1522 = vadd.f32 %v1270, %v1459
      %v1523 = vadd.f32 %v1271, %v1462
      %v1524 = vadd.f32 %v1272, %v1464
      %v1525 = vadd.f32 %v1273, %v1467
      %v1526 = vadd.f32 %v1274, %v1469
      %v1527 = vadd.f32 %v1275, %v1472
      %v1528 = vadd.f32 %v1276, %v1474
      %v1529 = vadd.f32 %v1277, %v1477
      %v1530 = vadd.f32 %v1278, %v1479
      %v1531 = vadd.f32 %v1279, %v1482
      %v1532 = vadd.f32 %v1280, %v1484
      %v1533 = vadd.f32 %v1281, %v1487
      %v1534 = vadd.f32 %v1282, %v1489
      %v1535 = vadd.f32 %v1283, %v1492
      %v1536 = vadd.f32 %v1284, %v1494
      %v1537 = vadd.f32 %v1285, %v1497
      %v1538 = vadd.f32 %v1286, %v1499
      %v1539 = vadd.f32 %v1287, %v1502
      %v1540 = vadd.f32 %v1288, %v1504
      %v1541 = vadd.f32 %v1289, %v1507
      %v1542 = vadd.f32 %v1290, %v1509
      %s1543 = scalar_lea.vmem %s2, 10
      %v1544 = vld [vmem:[%s1543] sm:$0x3]
      %vm1545 = vcmask 1045504
      %v1546 = vrot.slane %v508, 2
      %v1547 = vrot.slane %v509, 2
      %v1548 = vsel %vm1545, %v1546, %v1547
      %v1549 = vrot.slane %v510, 2
      %v1550 = vsel %vm1545, %v1547, %v1549
      %v1551 = vrot.slane %v511, 2
      %v1552 = vsel %vm1545, %v1549, %v1551
      %v1553 = vrot.slane %v512, 2
      %v1554 = vsel %vm1545, %v1551, %v1553
      %v1555 = vrot.slane %v513, 2
      %v1556 = vsel %vm1545, %v1553, %v1555
      %v1557 = vrot.slane %v514, 2
      %v1558 = vsel %vm1545, %v1555, %v1557
      %v1559 = vrot.slane %v515, 2
      %v1560 = vsel %vm1545, %v1557, %v1559
      %v1561 = vrot.slane %v516, 2
      %v1562 = vsel %vm1545, %v1559, %v1561
      %v1563 = vrot.slane %v517, 2
      %v1564 = vsel %vm1545, %v1561, %v1563
      %v1565 = vrot.slane %v518, 2
      %v1566 = vsel %vm1545, %v1563, %v1565
      %v1567 = vrot.slane %v519, 2
      %v1568 = vsel %vm1545, %v1565, %v1567
      %v1569 = vrot.slane %v520, 2
      %v1570 = vsel %vm1545, %v1567, %v1569
      %v1571 = vrot.slane %v521, 2
      %v1572 = vsel %vm1545, %v1569, %v1571
      %v1573 = vrot.slane %v522, 2
      %v1574 = vsel %vm1545, %v1571, %v1573
      %v1575 = vrot.slane %v1151, 2
      %v1576 = vsel %vm1545, %v1573, %v1575
      %v1577 = vrot.slane %v1152, 2
      %v1578 = vsel %vm1545, %v1575, %v1577
      %v1580 = vsel %vm660, %v1548, 0
      %v1583 = vsel %vm660, %v1550, 0
      %v1586 = vsel %vm660, %v1552, 0
      %v1589 = vsel %vm660, %v1554, 0
      %v1592 = vsel %vm660, %v1556, 0
      %v1595 = vsel %vm660, %v1558, 0
      %v1598 = vsel %vm660, %v1560, 0
      %v1601 = vsel %vm660, %v1562, 0
      %v1604 = vsel %vm660, %v1564, 0
      %v1607 = vsel %vm660, %v1566, 0
      %v1610 = vsel %vm660, %v1568, 0
      %v1613 = vsel %vm660, %v1570, 0
      %v1616 = vsel %vm660, %v1572, 0
      %v1619 = vsel %vm660, %v1574, 0
      %v1622 = vsel %vm660, %v1576, 0
      %v1625 = vsel %vm660, %v1578, 0
      %v1628 = vsel %vm709, %v1544, 0
      %1630 = vmatpush.bf16.msra.mxu0 0
      %1631 = vmatpush.bf16.msra.mxu0 0
      %1632 = vmatpush.bf16.msra.mxu0 0
      %1633 = vmatpush.bf16.msra.mxu0 0
      %1634 = vmatpush.bf16.msra.mxu0 0
      %1635 = vmatpush.bf16.msra.mxu0 0
      %1636 = vmatpush.bf16.msra.mxu0 0
      %1637 = vmatpush.bf16.msra.mxu0 %v1628
      %1638 = vmatmul.bf16.gmra.mxu0 %v1580
      %v1639 = vpop.f32.mrf.mxu0
      %v1640 = vadd.f32 0.0, %v1639
      %v1641 = vpop.f32.mrf.mxu0
      %v1642 = vadd.f32 0.0, %v1641
      %1643 = vmatmul.bf16.gmra.mxu0 %v1583
      %v1644 = vpop.f32.mrf.mxu0
      %v1645 = vadd.f32 0.0, %v1644
      %v1646 = vpop.f32.mrf.mxu0
      %v1647 = vadd.f32 0.0, %v1646
      %1648 = vmatmul.bf16.gmra.mxu0 %v1586
      %v1649 = vpop.f32.mrf.mxu0
      %v1650 = vadd.f32 0.0, %v1649
      %v1651 = vpop.f32.mrf.mxu0
      %v1652 = vadd.f32 0.0, %v1651
      %1653 = vmatmul.bf16.gmra.mxu0 %v1589
      %v1654 = vpop.f32.mrf.mxu0
      %v1655 = vadd.f32 0.0, %v1654
      %v1656 = vpop.f32.mrf.mxu0
      %v1657 = vadd.f32 0.0, %v1656
      %1658 = vmatmul.bf16.gmra.mxu0 %v1592
      %v1659 = vpop.f32.mrf.mxu0
      %v1660 = vadd.f32 0.0, %v1659
      %v1661 = vpop.f32.mrf.mxu0
      %v1662 = vadd.f32 0.0, %v1661
      %1663 = vmatmul.bf16.gmra.mxu0 %v1595
      %v1664 = vpop.f32.mrf.mxu0
      %v1665 = vadd.f32 0.0, %v1664
      %v1666 = vpop.f32.mrf.mxu0
      %v1667 = vadd.f32 0.0, %v1666
      %1668 = vmatmul.bf16.gmra.mxu0 %v1598
      %v1669 = vpop.f32.mrf.mxu0
      %v1670 = vadd.f32 0.0, %v1669
      %v1671 = vpop.f32.mrf.mxu0
      %v1672 = vadd.f32 0.0, %v1671
      %1673 = vmatmul.bf16.gmra.mxu0 %v1601
      %v1674 = vpop.f32.mrf.mxu0
      %v1675 = vadd.f32 0.0, %v1674
      %v1676 = vpop.f32.mrf.mxu0
      %v1677 = vadd.f32 0.0, %v1676
      %1678 = vmatmul.bf16.gmra.mxu0 %v1604
      %v1679 = vpop.f32.mrf.mxu0
      %v1680 = vadd.f32 0.0, %v1679
      %v1681 = vpop.f32.mrf.mxu0
      %v1682 = vadd.f32 0.0, %v1681
      %1683 = vmatmul.bf16.gmra.mxu0 %v1607
      %v1684 = vpop.f32.mrf.mxu0
      %v1685 = vadd.f32 0.0, %v1684
      %v1686 = vpop.f32.mrf.mxu0
      %v1687 = vadd.f32 0.0, %v1686
      %1688 = vmatmul.bf16.gmra.mxu0 %v1610
      %v1689 = vpop.f32.mrf.mxu0
      %v1690 = vadd.f32 0.0, %v1689
      %v1691 = vpop.f32.mrf.mxu0
      %v1692 = vadd.f32 0.0, %v1691
      %1693 = vmatmul.bf16.gmra.mxu0 %v1613
      %v1694 = vpop.f32.mrf.mxu0
      %v1695 = vadd.f32 0.0, %v1694
      %v1696 = vpop.f32.mrf.mxu0
      %v1697 = vadd.f32 0.0, %v1696
      %1698 = vmatmul.bf16.gmra.mxu0 %v1616
      %v1699 = vpop.f32.mrf.mxu0
      %v1700 = vadd.f32 0.0, %v1699
      %v1701 = vpop.f32.mrf.mxu0
      %v1702 = vadd.f32 0.0, %v1701
      %1703 = vmatmul.bf16.gmra.mxu0 %v1619
      %v1704 = vpop.f32.mrf.mxu0
      %v1705 = vadd.f32 0.0, %v1704
      %v1706 = vpop.f32.mrf.mxu0
      %v1707 = vadd.f32 0.0, %v1706
      %1708 = vmatmul.bf16.gmra.mxu0 %v1622
      %v1709 = vpop.f32.mrf.mxu0
      %v1710 = vadd.f32 0.0, %v1709
      %v1711 = vpop.f32.mrf.mxu0
      %v1712 = vadd.f32 0.0, %v1711
      %1713 = vmatmul.bf16.gmra.mxu0 %v1625
      %v1714 = vpop.f32.mrf.mxu0
      %v1715 = vadd.f32 0.0, %v1714
      %v1716 = vpop.f32.mrf.mxu0
      %v1717 = vadd.f32 0.0, %v1716
      %1718 = vdwg.mxu0
      %v1719 = vadd.f32 %v1511, %v1640
      %v1720 = vadd.f32 %v1512, %v1642
      %v1721 = vadd.f32 %v1513, %v1645
      %v1722 = vadd.f32 %v1514, %v1647
      %v1723 = vadd.f32 %v1515, %v1650
      %v1724 = vadd.f32 %v1516, %v1652
      %v1725 = vadd.f32 %v1517, %v1655
      %v1726 = vadd.f32 %v1518, %v1657
      %v1727 = vadd.f32 %v1519, %v1660
      %v1728 = vadd.f32 %v1520, %v1662
      %v1729 = vadd.f32 %v1521, %v1665
      %v1730 = vadd.f32 %v1522, %v1667
      %v1731 = vadd.f32 %v1523, %v1670
      %v1732 = vadd.f32 %v1524, %v1672
      %v1733 = vadd.f32 %v1525, %v1675
      %v1734 = vadd.f32 %v1526, %v1677
      %v1735 = vadd.f32 %v1527, %v1680
      %v1736 = vadd.f32 %v1528, %v1682
      %v1737 = vadd.f32 %v1529, %v1685
      %v1738 = vadd.f32 %v1530, %v1687
      %v1739 = vadd.f32 %v1531, %v1690
      %v1740 = vadd.f32 %v1532, %v1692
      %v1741 = vadd.f32 %v1533, %v1695
      %v1742 = vadd.f32 %v1534, %v1697
      %v1743 = vadd.f32 %v1535, %v1700
      %v1744 = vadd.f32 %v1536, %v1702
      %v1745 = vadd.f32 %v1537, %v1705
      %v1746 = vadd.f32 %v1538, %v1707
      %v1747 = vadd.f32 %v1539, %v1710
      %v1748 = vadd.f32 %v1540, %v1712
      %v1749 = vadd.f32 %v1541, %v1715
      %v1750 = vadd.f32 %v1542, %v1717
      %v1751 = vpack.c.bf16 %v505, %v504
      %v1752 = vpack.c.bf16 %v506, %v506
      %s1753 = scalar_lea.vmem %s2, 12
      %v1754 = vld [vmem:[%s1753] sm:$0x3]
      %v1757 = vrot.slane %v1751, 2
      %v1758 = vsel %vm1545, %v1575, %v1757
      %v1759 = vrot.slane %v1752, 2
      %v1760 = vsel %vm1545, %v1757, %v1759
      %v1762 = vsel %vm660, %v1758, 0
      %v1765 = vsel %vm660, %v1760, 0
      %v1768 = vsel %vm709, %v1754, 0
      %1770 = vmatpush.bf16.msra.mxu0 0
      %1771 = vmatpush.bf16.msra.mxu0 0
      %1772 = vmatpush.bf16.msra.mxu0 0
      %1773 = vmatpush.bf16.msra.mxu0 0
      %1774 = vmatpush.bf16.msra.mxu0 0
      %1775 = vmatpush.bf16.msra.mxu0 0
      %1776 = vmatpush.bf16.msra.mxu0 0
      %1777 = vmatpush.bf16.msra.mxu0 %v1768
      %1778 = vmatmul.bf16.gmra.mxu0 %v1583
      %v1779 = vpop.f32.mrf.mxu0
      %v1780 = vadd.f32 0.0, %v1779
      %v1781 = vpop.f32.mrf.mxu0
      %v1782 = vadd.f32 0.0, %v1781
      %1783 = vmatmul.bf16.gmra.mxu0 %v1586
      %v1784 = vpop.f32.mrf.mxu0
      %v1785 = vadd.f32 0.0, %v1784
      %v1786 = vpop.f32.mrf.mxu0
      %v1787 = vadd.f32 0.0, %v1786
      %1788 = vmatmul.bf16.gmra.mxu0 %v1589
      %v1789 = vpop.f32.mrf.mxu0
      %v1790 = vadd.f32 0.0, %v1789
      %v1791 = vpop.f32.mrf.mxu0
      %v1792 = vadd.f32 0.0, %v1791
      %1793 = vmatmul.bf16.gmra.mxu0 %v1592
      %v1794 = vpop.f32.mrf.mxu0
      %v1795 = vadd.f32 0.0, %v1794
      %v1796 = vpop.f32.mrf.mxu0
      %v1797 = vadd.f32 0.0, %v1796
      %1798 = vmatmul.bf16.gmra.mxu0 %v1595
      %v1799 = vpop.f32.mrf.mxu0
      %v1800 = vadd.f32 0.0, %v1799
      %v1801 = vpop.f32.mrf.mxu0
      %v1802 = vadd.f32 0.0, %v1801
      %1803 = vmatmul.bf16.gmra.mxu0 %v1598
      %v1804 = vpop.f32.mrf.mxu0
      %v1805 = vadd.f32 0.0, %v1804
      %v1806 = vpop.f32.mrf.mxu0
      %v1807 = vadd.f32 0.0, %v1806
      %1808 = vmatmul.bf16.gmra.mxu0 %v1601
      %v1809 = vpop.f32.mrf.mxu0
      %v1810 = vadd.f32 0.0, %v1809
      %v1811 = vpop.f32.mrf.mxu0
      %v1812 = vadd.f32 0.0, %v1811
      %1813 = vmatmul.bf16.gmra.mxu0 %v1604
      %v1814 = vpop.f32.mrf.mxu0
      %v1815 = vadd.f32 0.0, %v1814
      %v1816 = vpop.f32.mrf.mxu0
      %v1817 = vadd.f32 0.0, %v1816
      %1818 = vmatmul.bf16.gmra.mxu0 %v1607
      %v1819 = vpop.f32.mrf.mxu0
      %v1820 = vadd.f32 0.0, %v1819
      %v1821 = vpop.f32.mrf.mxu0
      %v1822 = vadd.f32 0.0, %v1821
      %1823 = vmatmul.bf16.gmra.mxu0 %v1610
      %v1824 = vpop.f32.mrf.mxu0
      %v1825 = vadd.f32 0.0, %v1824
      %v1826 = vpop.f32.mrf.mxu0
      %v1827 = vadd.f32 0.0, %v1826
      %1828 = vmatmul.bf16.gmra.mxu0 %v1613
      %v1829 = vpop.f32.mrf.mxu0
      %v1830 = vadd.f32 0.0, %v1829
      %v1831 = vpop.f32.mrf.mxu0
      %v1832 = vadd.f32 0.0, %v1831
      %1833 = vmatmul.bf16.gmra.mxu0 %v1616
      %v1834 = vpop.f32.mrf.mxu0
      %v1835 = vadd.f32 0.0, %v1834
      %v1836 = vpop.f32.mrf.mxu0
      %v1837 = vadd.f32 0.0, %v1836
      %1838 = vmatmul.bf16.gmra.mxu0 %v1619
      %v1839 = vpop.f32.mrf.mxu0
      %v1840 = vadd.f32 0.0, %v1839
      %v1841 = vpop.f32.mrf.mxu0
      %v1842 = vadd.f32 0.0, %v1841
      %1843 = vmatmul.bf16.gmra.mxu0 %v1622
      %v1844 = vpop.f32.mrf.mxu0
      %v1845 = vadd.f32 0.0, %v1844
      %v1846 = vpop.f32.mrf.mxu0
      %v1847 = vadd.f32 0.0, %v1846
      %1848 = vmatmul.bf16.gmra.mxu0 %v1762
      %v1849 = vpop.f32.mrf.mxu0
      %v1850 = vadd.f32 0.0, %v1849
      %v1851 = vpop.f32.mrf.mxu0
      %v1852 = vadd.f32 0.0, %v1851
      %1853 = vmatmul.bf16.gmra.mxu0 %v1765
      %v1854 = vpop.f32.mrf.mxu0
      %v1855 = vadd.f32 0.0, %v1854
      %v1856 = vpop.f32.mrf.mxu0
      %v1857 = vadd.f32 0.0, %v1856
      %1858 = vdwg.mxu0
      %v1859 = vadd.f32 %v1719, %v1780
      %v1860 = vadd.f32 %v1720, %v1782
      %v1861 = vadd.f32 %v1721, %v1785
      %v1862 = vadd.f32 %v1722, %v1787
      %v1863 = vadd.f32 %v1723, %v1790
      %v1864 = vadd.f32 %v1724, %v1792
      %v1865 = vadd.f32 %v1725, %v1795
      %v1866 = vadd.f32 %v1726, %v1797
      %v1867 = vadd.f32 %v1727, %v1800
      %v1868 = vadd.f32 %v1728, %v1802
      %v1869 = vadd.f32 %v1729, %v1805
      %v1870 = vadd.f32 %v1730, %v1807
      %v1871 = vadd.f32 %v1731, %v1810
      %v1872 = vadd.f32 %v1732, %v1812
      %v1873 = vadd.f32 %v1733, %v1815
      %v1874 = vadd.f32 %v1734, %v1817
      %v1875 = vadd.f32 %v1735, %v1820
      %v1876 = vadd.f32 %v1736, %v1822
      %v1877 = vadd.f32 %v1737, %v1825
      %v1878 = vadd.f32 %v1738, %v1827
      %v1879 = vadd.f32 %v1739, %v1830
      %v1880 = vadd.f32 %v1740, %v1832
      %v1881 = vadd.f32 %v1741, %v1835
      %v1882 = vadd.f32 %v1742, %v1837
      %v1883 = vadd.f32 %v1743, %v1840
      %v1884 = vadd.f32 %v1744, %v1842
      %v1885 = vadd.f32 %v1745, %v1845
      %v1886 = vadd.f32 %v1746, %v1847
      %v1887 = vadd.f32 %v1747, %v1850
      %v1888 = vadd.f32 %v1748, %v1852
      %v1889 = vadd.f32 %v1749, %v1855
      %v1890 = vadd.f32 %v1750, %v1857
      %s1891 = scalar_lea.vmem %s2, 14
      %v1892 = vld [vmem:[%s1891] sm:$0x3]
      %vm1893 = vsmask.f32 5376
      %v1894 = vrot.slane %v548, 2
      %v1895 = vrot.slane %v544, 3
      %v1896 = vor.u32 %v1894, %v1895
      %v1897 = vrot.slane %v556, 2
      %v1898 = vrot.slane %v552, 3
      %v1899 = vor.u32 %v1897, %v1898
      %v1900 = vsel %vm1893, %v1896, %v1899
      %v1901 = vrot.slane %v564, 2
      %v1902 = vrot.slane %v560, 3
      %v1903 = vor.u32 %v1901, %v1902
      %v1904 = vsel %vm1893, %v1899, %v1903
      %v1905 = vrot.slane %v572, 2
      %v1906 = vrot.slane %v568, 3
      %v1907 = vor.u32 %v1905, %v1906
      %v1908 = vsel %vm1893, %v1903, %v1907
      %v1909 = vrot.slane %v580, 2
      %v1910 = vrot.slane %v576, 3
      %v1911 = vor.u32 %v1909, %v1910
      %v1912 = vsel %vm1893, %v1907, %v1911
      %v1913 = vrot.slane %v588, 2
      %v1914 = vrot.slane %v584, 3
      %v1915 = vor.u32 %v1913, %v1914
      %v1916 = vsel %vm1893, %v1911, %v1915
      %v1917 = vrot.slane %v596, 2
      %v1918 = vrot.slane %v592, 3
      %v1919 = vor.u32 %v1917, %v1918
      %v1920 = vsel %vm1893, %v1915, %v1919
      %v1921 = vrot.slane %v604, 2
      %v1922 = vrot.slane %v600, 3
      %v1923 = vor.u32 %v1921, %v1922
      %v1924 = vsel %vm1893, %v1919, %v1923
      %v1925 = vrot.slane %v612, 2
      %v1926 = vrot.slane %v608, 3
      %v1927 = vor.u32 %v1925, %v1926
      %v1928 = vsel %vm1893, %v1923, %v1927
      %v1929 = vrot.slane %v620, 2
      %v1930 = vrot.slane %v616, 3
      %v1931 = vor.u32 %v1929, %v1930
      %v1932 = vsel %vm1893, %v1927, %v1931
      %v1933 = vrot.slane %v628, 2
      %v1934 = vrot.slane %v624, 3
      %v1935 = vor.u32 %v1933, %v1934
      %v1936 = vsel %vm1893, %v1931, %v1935
      %v1937 = vrot.slane %v636, 2
      %v1938 = vrot.slane %v632, 3
      %v1939 = vor.u32 %v1937, %v1938
      %v1940 = vsel %vm1893, %v1935, %v1939
      %v1941 = vrot.slane %v644, 2
      %v1942 = vrot.slane %v640, 3
      %v1943 = vor.u32 %v1941, %v1942
      %v1944 = vsel %vm1893, %v1939, %v1943
      %v1945 = vrot.slane %v652, 2
      %v1946 = vrot.slane %v648, 3
      %v1947 = vor.u32 %v1945, %v1946
      %v1948 = vsel %vm1893, %v1943, %v1947
      %v1949 = vrot.slane %v1354, 2
      %v1950 = vrot.slane %v1357, 3
      %v1951 = vor.u32 %v1949, %v1950
      %v1952 = vsel %vm1893, %v1947, %v1951
      %v1954 = vshrl.u32 %v1751, 16
      %v1956 = vrot.slane %v1954, 2
      %v1957 = vshll.u32 %v1751, 16
      %v1959 = vrot.slane %v1957, 3
      %v1960 = vor.u32 %v1956, %v1959
      %v1961 = vsel %vm1893, %v1951, %v1960
      %v1963 = vshrl.u32 %v1752, 16
      %v1965 = vrot.slane %v1963, 2
      %v1966 = vshll.u32 %v1752, 16
      %v1968 = vrot.slane %v1966, 3
      %v1969 = vor.u32 %v1965, %v1968
      %v1970 = vsel %vm1893, %v1960, %v1969
      %v1972 = vsel %vm660, %v1900, 0
      %v1975 = vsel %vm660, %v1904, 0
      %v1978 = vsel %vm660, %v1908, 0
      %v1981 = vsel %vm660, %v1912, 0
      %v1984 = vsel %vm660, %v1916, 0
      %v1987 = vsel %vm660, %v1920, 0
      %v1990 = vsel %vm660, %v1924, 0
      %v1993 = vsel %vm660, %v1928, 0
      %v1996 = vsel %vm660, %v1932, 0
      %v1999 = vsel %vm660, %v1936, 0
      %v2002 = vsel %vm660, %v1940, 0
      %v2005 = vsel %vm660, %v1944, 0
      %v2008 = vsel %vm660, %v1948, 0
      %v2011 = vsel %vm660, %v1952, 0
      %v2014 = vsel %vm660, %v1961, 0
      %v2017 = vsel %vm660, %v1970, 0
      %v2020 = vsel %vm709, %v1892, 0
      %2022 = vmatpush.bf16.msra.mxu0 0
      %2023 = vmatpush.bf16.msra.mxu0 0
      %2024 = vmatpush.bf16.msra.mxu0 0
      %2025 = vmatpush.bf16.msra.mxu0 0
      %2026 = vmatpush.bf16.msra.mxu0 0
      %2027 = vmatpush.bf16.msra.mxu0 0
      %2028 = vmatpush.bf16.msra.mxu0 0
      %2029 = vmatpush.bf16.msra.mxu0 %v2020
      %2030 = vmatmul.bf16.gmra.mxu0 %v1972
      %v2031 = vpop.f32.mrf.mxu0
      %v2032 = vadd.f32 0.0, %v2031
      %v2033 = vpop.f32.mrf.mxu0
      %v2034 = vadd.f32 0.0, %v2033
      %2035 = vmatmul.bf16.gmra.mxu0 %v1975
      %v2036 = vpop.f32.mrf.mxu0
      %v2037 = vadd.f32 0.0, %v2036
      %v2038 = vpop.f32.mrf.mxu0
      %v2039 = vadd.f32 0.0, %v2038
      %2040 = vmatmul.bf16.gmra.mxu0 %v1978
      %v2041 = vpop.f32.mrf.mxu0
      %v2042 = vadd.f32 0.0, %v2041
      %v2043 = vpop.f32.mrf.mxu0
      %v2044 = vadd.f32 0.0, %v2043
      %2045 = vmatmul.bf16.gmra.mxu0 %v1981
      %v2046 = vpop.f32.mrf.mxu0
      %v2047 = vadd.f32 0.0, %v2046
      %v2048 = vpop.f32.mrf.mxu0
      %v2049 = vadd.f32 0.0, %v2048
      %2050 = vmatmul.bf16.gmra.mxu0 %v1984
      %v2051 = vpop.f32.mrf.mxu0
      %v2052 = vadd.f32 0.0, %v2051
      %v2053 = vpop.f32.mrf.mxu0
      %v2054 = vadd.f32 0.0, %v2053
      %2055 = vmatmul.bf16.gmra.mxu0 %v1987
      %v2056 = vpop.f32.mrf.mxu0
      %v2057 = vadd.f32 0.0, %v2056
      %v2058 = vpop.f32.mrf.mxu0
      %v2059 = vadd.f32 0.0, %v2058
      %2060 = vmatmul.bf16.gmra.mxu0 %v1990
      %v2061 = vpop.f32.mrf.mxu0
      %v2062 = vadd.f32 0.0, %v2061
      %v2063 = vpop.f32.mrf.mxu0
      %v2064 = vadd.f32 0.0, %v2063
      %2065 = vmatmul.bf16.gmra.mxu0 %v1993
      %v2066 = vpop.f32.mrf.mxu0
      %v2067 = vadd.f32 0.0, %v2066
      %v2068 = vpop.f32.mrf.mxu0
      %v2069 = vadd.f32 0.0, %v2068
      %2070 = vmatmul.bf16.gmra.mxu0 %v1996
      %v2071 = vpop.f32.mrf.mxu0
      %v2072 = vadd.f32 0.0, %v2071
      %v2073 = vpop.f32.mrf.mxu0
      %v2074 = vadd.f32 0.0, %v2073
      %2075 = vmatmul.bf16.gmra.mxu0 %v1999
      %v2076 = vpop.f32.mrf.mxu0
      %v2077 = vadd.f32 0.0, %v2076
      %v2078 = vpop.f32.mrf.mxu0
      %v2079 = vadd.f32 0.0, %v2078
      %2080 = vmatmul.bf16.gmra.mxu0 %v2002
      %v2081 = vpop.f32.mrf.mxu0
      %v2082 = vadd.f32 0.0, %v2081
      %v2083 = vpop.f32.mrf.mxu0
      %v2084 = vadd.f32 0.0, %v2083
      %2085 = vmatmul.bf16.gmra.mxu0 %v2005
      %v2086 = vpop.f32.mrf.mxu0
      %v2087 = vadd.f32 0.0, %v2086
      %v2088 = vpop.f32.mrf.mxu0
      %v2089 = vadd.f32 0.0, %v2088
      %2090 = vmatmul.bf16.gmra.mxu0 %v2008
      %v2091 = vpop.f32.mrf.mxu0
      %v2092 = vadd.f32 0.0, %v2091
      %v2093 = vpop.f32.mrf.mxu0
      %v2094 = vadd.f32 0.0, %v2093
      %2095 = vmatmul.bf16.gmra.mxu0 %v2011
      %v2096 = vpop.f32.mrf.mxu0
      %v2097 = vadd.f32 0.0, %v2096
      %v2098 = vpop.f32.mrf.mxu0
      %v2099 = vadd.f32 0.0, %v2098
      %2100 = vmatmul.bf16.gmra.mxu0 %v2014
      %v2101 = vpop.f32.mrf.mxu0
      %v2102 = vadd.f32 0.0, %v2101
      %v2103 = vpop.f32.mrf.mxu0
      %v2104 = vadd.f32 0.0, %v2103
      %2105 = vmatmul.bf16.gmra.mxu0 %v2017
      %v2106 = vpop.f32.mrf.mxu0
      %v2107 = vadd.f32 0.0, %v2106
      %v2108 = vpop.f32.mrf.mxu0
      %v2109 = vadd.f32 0.0, %v2108
      %2110 = vdwg.mxu0
      %v2111 = vadd.f32 %v1859, %v2032
      %v2112 = vadd.f32 %v1860, %v2034
      %v2113 = vadd.f32 %v1861, %v2037
      %v2114 = vadd.f32 %v1862, %v2039
      %v2115 = vadd.f32 %v1863, %v2042
      %v2116 = vadd.f32 %v1864, %v2044
      %v2117 = vadd.f32 %v1865, %v2047
      %v2118 = vadd.f32 %v1866, %v2049
      %v2119 = vadd.f32 %v1867, %v2052
      %v2120 = vadd.f32 %v1868, %v2054
      %v2121 = vadd.f32 %v1869, %v2057
      %v2122 = vadd.f32 %v1870, %v2059
      %v2123 = vadd.f32 %v1871, %v2062
      %v2124 = vadd.f32 %v1872, %v2064
      %v2125 = vadd.f32 %v1873, %v2067
      %v2126 = vadd.f32 %v1874, %v2069
      %v2127 = vadd.f32 %v1875, %v2072
      %v2128 = vadd.f32 %v1876, %v2074
      %v2129 = vadd.f32 %v1877, %v2077
      %v2130 = vadd.f32 %v1878, %v2079
      %v2131 = vadd.f32 %v1879, %v2082
      %v2132 = vadd.f32 %v1880, %v2084
      %v2133 = vadd.f32 %v1881, %v2087
      %v2134 = vadd.f32 %v1882, %v2089
      %v2135 = vadd.f32 %v1883, %v2092
      %v2136 = vadd.f32 %v1884, %v2094
      %v2137 = vadd.f32 %v1885, %v2097
      %v2138 = vadd.f32 %v1886, %v2099
      %v2139 = vadd.f32 %v1887, %v2102
      %v2140 = vadd.f32 %v1888, %v2104
      %v2141 = vadd.f32 %v1889, %v2107
      %v2142 = vadd.f32 %v1890, %v2109
      %s2143 = scalar_lea.vmem %s2, 16
      %v2144 = vld [vmem:[%s2143] sm:$0x3]
      %vm2145 = vcmask 1044480
      %v2146 = vrot.slane %v509, 3
      %v2147 = vrot.slane %v510, 3
      %v2148 = vsel %vm2145, %v2146, %v2147
      %v2149 = vrot.slane %v511, 3
      %v2150 = vsel %vm2145, %v2147, %v2149
      %v2151 = vrot.slane %v512, 3
      %v2152 = vsel %vm2145, %v2149, %v2151
      %v2153 = vrot.slane %v513, 3
      %v2154 = vsel %vm2145, %v2151, %v2153
      %v2155 = vrot.slane %v514, 3
      %v2156 = vsel %vm2145, %v2153, %v2155
      %v2157 = vrot.slane %v515, 3
      %v2158 = vsel %vm2145, %v2155, %v2157
      %v2159 = vrot.slane %v516, 3
      %v2160 = vsel %vm2145, %v2157, %v2159
      %v2161 = vrot.slane %v517, 3
      %v2162 = vsel %vm2145, %v2159, %v2161
      %v2163 = vrot.slane %v518, 3
      %v2164 = vsel %vm2145, %v2161, %v2163
      %v2165 = vrot.slane %v519, 3
      %v2166 = vsel %vm2145, %v2163, %v2165
      %v2167 = vrot.slane %v520, 3
      %v2168 = vsel %vm2145, %v2165, %v2167
      %v2169 = vrot.slane %v521, 3
      %v2170 = vsel %vm2145, %v2167, %v2169
      %v2171 = vrot.slane %v522, 3
      %v2172 = vsel %vm2145, %v2169, %v2171
      %v2173 = vrot.slane %v1151, 3
      %v2174 = vsel %vm2145, %v2171, %v2173
      %v2175 = vrot.slane %v1751, 3
      %v2176 = vsel %vm2145, %v2173, %v2175
      %v2177 = vrot.slane %v1752, 3
      %v2178 = vsel %vm2145, %v2175, %v2177
      %v2180 = vsel %vm660, %v2148, 0
      %v2183 = vsel %vm660, %v2150, 0
      %v2186 = vsel %vm660, %v2152, 0
      %v2189 = vsel %vm660, %v2154, 0
      %v2192 = vsel %vm660, %v2156, 0
      %v2195 = vsel %vm660, %v2158, 0
      %v2198 = vsel %vm660, %v2160, 0
      %v2201 = vsel %vm660, %v2162, 0
      %v2204 = vsel %vm660, %v2164, 0
      %v2207 = vsel %vm660, %v2166, 0
      %v2210 = vsel %vm660, %v2168, 0
      %v2213 = vsel %vm660, %v2170, 0
      %v2216 = vsel %vm660, %v2172, 0
      %v2219 = vsel %vm660, %v2174, 0
      %v2222 = vsel %vm660, %v2176, 0
      %v2225 = vsel %vm660, %v2178, 0
      %v2228 = vsel %vm709, %v2144, 0
      %2230 = vmatpush.bf16.msra.mxu0 0
      %2231 = vmatpush.bf16.msra.mxu0 0
      %2232 = vmatpush.bf16.msra.mxu0 0
      %2233 = vmatpush.bf16.msra.mxu0 0
      %2234 = vmatpush.bf16.msra.mxu0 0
      %2235 = vmatpush.bf16.msra.mxu0 0
      %2236 = vmatpush.bf16.msra.mxu0 0
      %2237 = vmatpush.bf16.msra.mxu0 %v2228
      %2238 = vmatmul.bf16.gmra.mxu0 %v2180
      %v2239 = vpop.f32.mrf.mxu0
      %v2240 = vadd.f32 0.0, %v2239
      %v2241 = vpop.f32.mrf.mxu0
      %v2242 = vadd.f32 0.0, %v2241
      %2243 = vmatmul.bf16.gmra.mxu0 %v2183
      %v2244 = vpop.f32.mrf.mxu0
      %v2245 = vadd.f32 0.0, %v2244
      %v2246 = vpop.f32.mrf.mxu0
      %v2247 = vadd.f32 0.0, %v2246
      %2248 = vmatmul.bf16.gmra.mxu0 %v2186
      %v2249 = vpop.f32.mrf.mxu0
      %v2250 = vadd.f32 0.0, %v2249
      %v2251 = vpop.f32.mrf.mxu0
      %v2252 = vadd.f32 0.0, %v2251
      %2253 = vmatmul.bf16.gmra.mxu0 %v2189
      %v2254 = vpop.f32.mrf.mxu0
      %v2255 = vadd.f32 0.0, %v2254
      %v2256 = vpop.f32.mrf.mxu0
      %v2257 = vadd.f32 0.0, %v2256
      %2258 = vmatmul.bf16.gmra.mxu0 %v2192
      %v2259 = vpop.f32.mrf.mxu0
      %v2260 = vadd.f32 0.0, %v2259
      %v2261 = vpop.f32.mrf.mxu0
      %v2262 = vadd.f32 0.0, %v2261
      %2263 = vmatmul.bf16.gmra.mxu0 %v2195
      %v2264 = vpop.f32.mrf.mxu0
      %v2265 = vadd.f32 0.0, %v2264
      %v2266 = vpop.f32.mrf.mxu0
      %v2267 = vadd.f32 0.0, %v2266
      %2268 = vmatmul.bf16.gmra.mxu0 %v2198
      %v2269 = vpop.f32.mrf.mxu0
      %v2270 = vadd.f32 0.0, %v2269
      %v2271 = vpop.f32.mrf.mxu0
      %v2272 = vadd.f32 0.0, %v2271
      %2273 = vmatmul.bf16.gmra.mxu0 %v2201
      %v2274 = vpop.f32.mrf.mxu0
      %v2275 = vadd.f32 0.0, %v2274
      %v2276 = vpop.f32.mrf.mxu0
      %v2277 = vadd.f32 0.0, %v2276
      %2278 = vmatmul.bf16.gmra.mxu0 %v2204
      %v2279 = vpop.f32.mrf.mxu0
      %v2280 = vadd.f32 0.0, %v2279
      %v2281 = vpop.f32.mrf.mxu0
      %v2282 = vadd.f32 0.0, %v2281
      %2283 = vmatmul.bf16.gmra.mxu0 %v2207
      %v2284 = vpop.f32.mrf.mxu0
      %v2285 = vadd.f32 0.0, %v2284
      %v2286 = vpop.f32.mrf.mxu0
      %v2287 = vadd.f32 0.0, %v2286
      %2288 = vmatmul.bf16.gmra.mxu0 %v2210
      %v2289 = vpop.f32.mrf.mxu0
      %v2290 = vadd.f32 0.0, %v2289
      %v2291 = vpop.f32.mrf.mxu0
      %v2292 = vadd.f32 0.0, %v2291
      %2293 = vmatmul.bf16.gmra.mxu0 %v2213
      %v2294 = vpop.f32.mrf.mxu0
      %v2295 = vadd.f32 0.0, %v2294
      %v2296 = vpop.f32.mrf.mxu0
      %v2297 = vadd.f32 0.0, %v2296
      %2298 = vmatmul.bf16.gmra.mxu0 %v2216
      %v2299 = vpop.f32.mrf.mxu0
      %v2300 = vadd.f32 0.0, %v2299
      %v2301 = vpop.f32.mrf.mxu0
      %v2302 = vadd.f32 0.0, %v2301
      %2303 = vmatmul.bf16.gmra.mxu0 %v2219
      %v2304 = vpop.f32.mrf.mxu0
      %v2305 = vadd.f32 0.0, %v2304
      %v2306 = vpop.f32.mrf.mxu0
      %v2307 = vadd.f32 0.0, %v2306
      %2308 = vmatmul.bf16.gmra.mxu0 %v2222
      %v2309 = vpop.f32.mrf.mxu0
      %v2310 = vadd.f32 0.0, %v2309
      %v2311 = vpop.f32.mrf.mxu0
      %v2312 = vadd.f32 0.0, %v2311
      %2313 = vmatmul.bf16.gmra.mxu0 %v2225
      %v2314 = vpop.f32.mrf.mxu0
      %v2315 = vadd.f32 0.0, %v2314
      %v2316 = vpop.f32.mrf.mxu0
      %v2317 = vadd.f32 0.0, %v2316
      %2318 = vdwg.mxu0
      %v2319 = vadd.f32 %v2111, %v2240
      %v2320 = vadd.f32 %v2112, %v2242
      %v2321 = vadd.f32 %v2113, %v2245
      %v2322 = vadd.f32 %v2114, %v2247
      %v2323 = vadd.f32 %v2115, %v2250
      %v2324 = vadd.f32 %v2116, %v2252
      %v2325 = vadd.f32 %v2117, %v2255
      %v2326 = vadd.f32 %v2118, %v2257
      %v2327 = vadd.f32 %v2119, %v2260
      %v2328 = vadd.f32 %v2120, %v2262
      %v2329 = vadd.f32 %v2121, %v2265
      %v2330 = vadd.f32 %v2122, %v2267
      %v2331 = vadd.f32 %v2123, %v2270
      %v2332 = vadd.f32 %v2124, %v2272
      %v2333 = vadd.f32 %v2125, %v2275
      %v2334 = vadd.f32 %v2126, %v2277
      %v2335 = vadd.f32 %v2127, %v2280
      %v2336 = vadd.f32 %v2128, %v2282
      %v2337 = vadd.f32 %v2129, %v2285
      %v2338 = vadd.f32 %v2130, %v2287
      %v2339 = vadd.f32 %v2131, %v2290
      %v2340 = vadd.f32 %v2132, %v2292
      %v2341 = vadd.f32 %v2133, %v2295
      %v2342 = vadd.f32 %v2134, %v2297
      %v2343 = vadd.f32 %v2135, %v2300
      %v2344 = vadd.f32 %v2136, %v2302
      %v2345 = vadd.f32 %v2137, %v2305
      %v2346 = vadd.f32 %v2138, %v2307
      %v2347 = vadd.f32 %v2139, %v2310
      %v2348 = vadd.f32 %v2140, %v2312
      %v2349 = vadd.f32 %v2141, %v2315
      %v2350 = vadd.f32 %v2142, %v2317
      %v2351 = vpack.c.bf16 %v2319, %v2319
      %v2352 = vpack.c.bf16 %v2320, %v2320
      %v2353 = vpack.c.bf16 %v2321, %v2321
      %v2354 = vpack.c.bf16 %v2322, %v2322
      %v2355 = vpack.c.bf16 %v2323, %v2323
      %v2356 = vpack.c.bf16 %v2324, %v2324
      %v2357 = vpack.c.bf16 %v2325, %v2325
      %v2358 = vpack.c.bf16 %v2326, %v2326
      %v2359 = vpack.c.bf16 %v2327, %v2327
      %v2360 = vpack.c.bf16 %v2328, %v2328
      %v2361 = vpack.c.bf16 %v2329, %v2329
      %v2362 = vpack.c.bf16 %v2330, %v2330
      %v2363 = vpack.c.bf16 %v2331, %v2331
      %v2364 = vpack.c.bf16 %v2332, %v2332
      %v2365 = vpack.c.bf16 %v2333, %v2333
      %v2366 = vpack.c.bf16 %v2334, %v2334
      %v2367 = vpack.c.bf16 %v2335, %v2335
      %v2368 = vpack.c.bf16 %v2336, %v2336
      %v2369 = vpack.c.bf16 %v2337, %v2337
      %v2370 = vpack.c.bf16 %v2338, %v2338
      %v2371 = vpack.c.bf16 %v2339, %v2339
      %v2372 = vpack.c.bf16 %v2340, %v2340
      %v2373 = vpack.c.bf16 %v2341, %v2341
      %v2374 = vpack.c.bf16 %v2342, %v2342
      %v2375 = vpack.c.bf16 %v2343, %v2343
      %v2376 = vpack.c.bf16 %v2344, %v2344
      %v2377 = vpack.c.bf16 %v2345, %v2345
      %v2378 = vpack.c.bf16 %v2346, %v2346
      %v2379 = vpack.c.bf16 %v2347, %v2347
      %v2380 = vpack.c.bf16 %v2348, %v2348
      %v2381 = vpack.c.bf16 %v2349, %v2349
      %v2382 = vpack.c.bf16 %v2350, %v2350
      %vm2383 = vcmask 60416
      %2384 = vst.msk [vmem:[%s311] sm:$0xf] %vm2383, %v2351
      %2385 = vst.msk [vmem:[%s311 + $0x4] sm:$0xf] %vm2383, %v2352
      %2386 = vst.msk [vmem:[%s311 + $0x8] sm:$0xf] %vm2383, %v2353
      %2387 = vst.msk [vmem:[%s311 + $0xc] sm:$0xf] %vm2383, %v2354
      %2388 = vst.msk [vmem:[%s311 + $0x10] sm:$0xf] %vm2383, %v2355
      %2389 = vst.msk [vmem:[%s311 + $0x14] sm:$0xf] %vm2383, %v2356
      %2390 = vst.msk [vmem:[%s311 + $0x18] sm:$0xf] %vm2383, %v2357
      %2391 = vst.msk [vmem:[%s311 + $0x1c] sm:$0xf] %vm2383, %v2358
      %2392 = vst.msk [vmem:[%s311 + $0x20] sm:$0xf] %vm2383, %v2359
      %2393 = vst.msk [vmem:[%s311 + $0x24] sm:$0xf] %vm2383, %v2360
      %2394 = vst.msk [vmem:[%s311 + $0x28] sm:$0xf] %vm2383, %v2361
      %2395 = vst.msk [vmem:[%s311 + $0x2c] sm:$0xf] %vm2383, %v2362
      %2396 = vst.msk [vmem:[%s311 + $0x30] sm:$0xf] %vm2383, %v2363
      %2397 = vst.msk [vmem:[%s311 + $0x34] sm:$0xf] %vm2383, %v2364
      %2398 = vst.msk [vmem:[%s311 + $0x38] sm:$0xf] %vm2383, %v2365
      %2399 = vst.msk [vmem:[%s311 + $0x3c] sm:$0xf] %vm2383, %v2366
      %2400 = vst.msk [vmem:[%s311 + $0x40] sm:$0xf] %vm2383, %v2367
      %2401 = vst.msk [vmem:[%s311 + $0x44] sm:$0xf] %vm2383, %v2368
      %2402 = vst.msk [vmem:[%s311 + $0x48] sm:$0xf] %vm2383, %v2369
      %2403 = vst.msk [vmem:[%s311 + $0x4c] sm:$0xf] %vm2383, %v2370
      %2404 = vst.msk [vmem:[%s311 + $0x50] sm:$0xf] %vm2383, %v2371
      %2405 = vst.msk [vmem:[%s311 + $0x54] sm:$0xf] %vm2383, %v2372
      %2406 = vst.msk [vmem:[%s311 + $0x58] sm:$0xf] %vm2383, %v2373
      %2407 = vst.msk [vmem:[%s311 + $0x5c] sm:$0xf] %vm2383, %v2374
      %2408 = vst.msk [vmem:[%s311 + $0x60] sm:$0xf] %vm2383, %v2375
      %2409 = vst.msk [vmem:[%s311 + $0x64] sm:$0xf] %vm2383, %v2376
      %2410 = vst.msk [vmem:[%s311 + $0x68] sm:$0xf] %vm2383, %v2377
      %2411 = vst.msk [vmem:[%s311 + $0x6c] sm:$0xf] %vm2383, %v2378
      %2412 = vst.msk [vmem:[%s311 + $0x70] sm:$0xf] %vm2383, %v2379
      %2413 = vst.msk [vmem:[%s311 + $0x74] sm:$0xf] %vm2383, %v2380
      %2414 = vst.msk [vmem:[%s311 + $0x78] sm:$0xf] %vm2383, %v2381
      %2415 = vst.msk [vmem:[%s311 + $0x7c] sm:$0xf] %vm2383, %v2382
      %v2416 = vld [vmem:[%s305] sm:$0xff]
      %v2417 = vld [vmem:[%s305 + $0x8] sm:$0xff]
      %v2418 = vld [vmem:[%s305 + $0x10] sm:$0xff]
      %v2419 = vld [vmem:[%s305 + $0x18] sm:$0xff]
      %v2420 = vld [vmem:[%s305 + $0x20] sm:$0xff]
      %v2421 = vld [vmem:[%s305 + $0x28] sm:$0xff]
      %v2422 = vld [vmem:[%s305 + $0x30] sm:$0xff]
      %v2423 = vld [vmem:[%s305 + $0x38] sm:$0xff]
      %v2424 = vld [vmem:[%s305 + $0x40] sm:$0xff]
      %v2425 = vld [vmem:[%s305 + $0x48] sm:$0xff]
      %v2426 = vld [vmem:[%s305 + $0x50] sm:$0xff]
      %v2427 = vld [vmem:[%s305 + $0x58] sm:$0xff]
      %v2428 = vld [vmem:[%s305 + $0x60] sm:$0xff]
      %v2429 = vld [vmem:[%s305 + $0x68] sm:$0xff]
      %v2430 = vld [vmem:[%s305 + $0x70] sm:$0xff]
      %v2431 = vld [vmem:[%s305 + $0x78] sm:$0xff]
      %v2432 = vld [vmem:[%s305 + $0x80] sm:$0xff]
      %v2433 = vld [vmem:[%s305 + $0x88] sm:$0xff]
      %v2434 = vld [vmem:[%s305 + $0x90] sm:$0xff]
      %v2435 = vld [vmem:[%s305 + $0x98] sm:$0xff]
      %v2436 = vld [vmem:[%s305 + $0xa0] sm:$0xff]
      %v2437 = vld [vmem:[%s305 + $0xa8] sm:$0xff]
      %v2438 = vld [vmem:[%s305 + $0xb0] sm:$0xff]
      %v2439 = vld [vmem:[%s305 + $0xb8] sm:$0xff]
      %v2440 = vld [vmem:[%s305 + $0xc0] sm:$0xff]
      %v2441 = vld [vmem:[%s305 + $0xc8] sm:$0xff]
      %v2442 = vld [vmem:[%s305 + $0xd0] sm:$0xff]
      %v2443 = vld [vmem:[%s305 + $0xd8] sm:$0xff]
      %v2444 = vld [vmem:[%s305 + $0xe0] sm:$0xff]
      %v2445 = vld [vmem:[%s305 + $0xe8] sm:$0xff]
      %v2446 = vld [vmem:[%s305 + $0xf0] sm:$0xff]
      %v2447 = vld [vmem:[%s305 + $0xf8] sm:$0xff]
      %2449 = vset.pattern.permute.xlu0 0
      %2450 = vperm.xlu0 %2449, %v2416
      %v2451 = vpop.permute.xlu0 %2450
      %2454 = vset.pattern.permute.xlu0 0
      %2455 = vperm.xlu0 %2454, %v2417
      %v2456 = vpop.permute.xlu0 %2455
      %2459 = vset.pattern.permute.xlu0 0
      %2460 = vperm.xlu0 %2459, %v2418
      %v2461 = vpop.permute.xlu0 %2460
      %2464 = vset.pattern.permute.xlu0 0
      %2465 = vperm.xlu0 %2464, %v2419
      %v2466 = vpop.permute.xlu0 %2465
      %2469 = vset.pattern.permute.xlu0 0
      %2470 = vperm.xlu0 %2469, %v2420
      %v2471 = vpop.permute.xlu0 %2470
      %2474 = vset.pattern.permute.xlu0 0
      %2475 = vperm.xlu0 %2474, %v2421
      %v2476 = vpop.permute.xlu0 %2475
      %2479 = vset.pattern.permute.xlu0 0
      %2480 = vperm.xlu0 %2479, %v2422
      %v2481 = vpop.permute.xlu0 %2480
      %2484 = vset.pattern.permute.xlu0 0
      %2485 = vperm.xlu0 %2484, %v2423
      %v2486 = vpop.permute.xlu0 %2485
      %2489 = vset.pattern.permute.xlu0 0
      %2490 = vperm.xlu0 %2489, %v2424
      %v2491 = vpop.permute.xlu0 %2490
      %2494 = vset.pattern.permute.xlu0 0
      %2495 = vperm.xlu0 %2494, %v2425
      %v2496 = vpop.permute.xlu0 %2495
      %2499 = vset.pattern.permute.xlu0 0
      %2500 = vperm.xlu0 %2499, %v2426
      %v2501 = vpop.permute.xlu0 %2500
      %2504 = vset.pattern.permute.xlu0 0
      %2505 = vperm.xlu0 %2504, %v2427
      %v2506 = vpop.permute.xlu0 %2505
      %2509 = vset.pattern.permute.xlu0 0
      %2510 = vperm.xlu0 %2509, %v2428
      %v2511 = vpop.permute.xlu0 %2510
      %2514 = vset.pattern.permute.xlu0 0
      %2515 = vperm.xlu0 %2514, %v2429
      %v2516 = vpop.permute.xlu0 %2515
      %2519 = vset.pattern.permute.xlu0 0
      %2520 = vperm.xlu0 %2519, %v2430
      %v2521 = vpop.permute.xlu0 %2520
      %2524 = vset.pattern.permute.xlu0 0
      %2525 = vperm.xlu0 %2524, %v2431
      %v2526 = vpop.permute.xlu0 %2525
      %2529 = vset.pattern.permute.xlu0 0
      %2530 = vperm.xlu0 %2529, %v2432
      %v2531 = vpop.permute.xlu0 %2530
      %2534 = vset.pattern.permute.xlu0 0
      %2535 = vperm.xlu0 %2534, %v2433
      %v2536 = vpop.permute.xlu0 %2535
      %2539 = vset.pattern.permute.xlu0 0
      %2540 = vperm.xlu0 %2539, %v2434
      %v2541 = vpop.permute.xlu0 %2540
      %2544 = vset.pattern.permute.xlu0 0
      %2545 = vperm.xlu0 %2544, %v2435
      %v2546 = vpop.permute.xlu0 %2545
      %2549 = vset.pattern.permute.xlu0 0
      %2550 = vperm.xlu0 %2549, %v2436
      %v2551 = vpop.permute.xlu0 %2550
      %2554 = vset.pattern.permute.xlu0 0
      %2555 = vperm.xlu0 %2554, %v2437
      %v2556 = vpop.permute.xlu0 %2555
      %2559 = vset.pattern.permute.xlu0 0
      %2560 = vperm.xlu0 %2559, %v2438
      %v2561 = vpop.permute.xlu0 %2560
      %2564 = vset.pattern.permute.xlu0 0
      %2565 = vperm.xlu0 %2564, %v2439
      %v2566 = vpop.permute.xlu0 %2565
      %2569 = vset.pattern.permute.xlu0 0
      %2570 = vperm.xlu0 %2569, %v2440
      %v2571 = vpop.permute.xlu0 %2570
      %2574 = vset.pattern.permute.xlu0 0
      %2575 = vperm.xlu0 %2574, %v2441
      %v2576 = vpop.permute.xlu0 %2575
      %2579 = vset.pattern.permute.xlu0 0
      %2580 = vperm.xlu0 %2579, %v2442
      %v2581 = vpop.permute.xlu0 %2580
      %2584 = vset.pattern.permute.xlu0 0
      %2585 = vperm.xlu0 %2584, %v2443
      %v2586 = vpop.permute.xlu0 %2585
      %2589 = vset.pattern.permute.xlu0 0
      %2590 = vperm.xlu0 %2589, %v2444
      %v2591 = vpop.permute.xlu0 %2590
      %2594 = vset.pattern.permute.xlu0 0
      %2595 = vperm.xlu0 %2594, %v2445
      %v2596 = vpop.permute.xlu0 %2595
      %2599 = vset.pattern.permute.xlu0 0
      %2600 = vperm.xlu0 %2599, %v2446
      %v2601 = vpop.permute.xlu0 %2600
      %2604 = vset.pattern.permute.xlu0 0
      %2605 = vperm.xlu0 %2604, %v2447
      %v2606 = vpop.permute.xlu0 %2605
      %v2608 = vmul.f32 %v2319, %v2451
      %v2609 = vmul.f32 %v2320, %v2456
      %v2610 = vmul.f32 %v2321, %v2461
      %v2611 = vmul.f32 %v2322, %v2466
      %v2612 = vmul.f32 %v2323, %v2471
      %v2613 = vmul.f32 %v2324, %v2476
      %v2614 = vmul.f32 %v2325, %v2481
      %v2615 = vmul.f32 %v2326, %v2486
      %v2616 = vmul.f32 %v2327, %v2491
      %v2617 = vmul.f32 %v2328, %v2496
      %v2618 = vmul.f32 %v2329, %v2501
      %v2619 = vmul.f32 %v2330, %v2506
      %v2620 = vmul.f32 %v2331, %v2511
      %v2621 = vmul.f32 %v2332, %v2516
      %v2622 = vmul.f32 %v2333, %v2521
      %v2623 = vmul.f32 %v2334, %v2526
      %v2624 = vmul.f32 %v2335, %v2531
      %v2625 = vmul.f32 %v2336, %v2536
      %v2626 = vmul.f32 %v2337, %v2541
      %v2627 = vmul.f32 %v2338, %v2546
      %v2628 = vmul.f32 %v2339, %v2551
      %v2629 = vmul.f32 %v2340, %v2556
      %v2630 = vmul.f32 %v2341, %v2561
      %v2631 = vmul.f32 %v2342, %v2566
      %v2632 = vmul.f32 %v2343, %v2571
      %v2633 = vmul.f32 %v2344, %v2576
      %v2634 = vmul.f32 %v2345, %v2581
      %v2635 = vmul.f32 %v2346, %v2586
      %v2636 = vmul.f32 %v2347, %v2591
      %v2637 = vmul.f32 %v2348, %v2596
      %v2638 = vmul.f32 %v2349, %v2601
      %v2639 = vmul.f32 %v2350, %v2606
      %vm2640 = vcmask 64512
      %v2641 = vsel %vm2640, %v2608, 0.0
      %v2642 = vsel %vm2640, %v2609, 0.0
      %v2643 = vadd.f32 %v2641, %v2642
      %v2644 = vsel %vm2640, %v2610, 0.0
      %v2645 = vadd.f32 %v2643, %v2644
      %v2646 = vsel %vm2640, %v2611, 0.0
      %v2647 = vadd.f32 %v2645, %v2646
      %v2648 = vsel %vm2640, %v2612, 0.0
      %v2649 = vadd.f32 %v2647, %v2648
      %v2650 = vsel %vm2640, %v2613, 0.0
      %v2651 = vadd.f32 %v2649, %v2650
      %v2652 = vsel %vm2640, %v2614, 0.0
      %v2653 = vadd.f32 %v2651, %v2652
      %v2654 = vsel %vm2640, %v2615, 0.0
      %v2655 = vadd.f32 %v2653, %v2654
      %v2656 = vsel %vm2640, %v2616, 0.0
      %v2657 = vadd.f32 %v2655, %v2656
      %v2658 = vsel %vm2640, %v2617, 0.0
      %v2659 = vadd.f32 %v2657, %v2658
      %v2660 = vsel %vm2640, %v2618, 0.0
      %v2661 = vadd.f32 %v2659, %v2660
      %v2662 = vsel %vm2640, %v2619, 0.0
      %v2663 = vadd.f32 %v2661, %v2662
      %v2664 = vsel %vm2640, %v2620, 0.0
      %v2665 = vadd.f32 %v2663, %v2664
      %v2666 = vsel %vm2640, %v2621, 0.0
      %v2667 = vadd.f32 %v2665, %v2666
      %v2668 = vsel %vm2640, %v2622, 0.0
      %v2669 = vadd.f32 %v2667, %v2668
      %v2670 = vsel %vm2640, %v2623, 0.0
      %v2671 = vadd.f32 %v2669, %v2670
      %v2672 = vsel %vm2640, %v2624, 0.0
      %v2673 = vadd.f32 %v2671, %v2672
      %v2674 = vsel %vm2640, %v2625, 0.0
      %v2675 = vadd.f32 %v2673, %v2674
      %v2676 = vsel %vm2640, %v2626, 0.0
      %v2677 = vadd.f32 %v2675, %v2676
      %v2678 = vsel %vm2640, %v2627, 0.0
      %v2679 = vadd.f32 %v2677, %v2678
      %v2680 = vsel %vm2640, %v2628, 0.0
      %v2681 = vadd.f32 %v2679, %v2680
      %v2682 = vsel %vm2640, %v2629, 0.0
      %v2683 = vadd.f32 %v2681, %v2682
      %v2684 = vsel %vm2640, %v2630, 0.0
      %v2685 = vadd.f32 %v2683, %v2684
      %v2686 = vsel %vm2640, %v2631, 0.0
      %v2687 = vadd.f32 %v2685, %v2686
      %v2688 = vsel %vm2640, %v2632, 0.0
      %v2689 = vadd.f32 %v2687, %v2688
      %v2690 = vsel %vm2640, %v2633, 0.0
      %v2691 = vadd.f32 %v2689, %v2690
      %v2692 = vsel %vm2640, %v2634, 0.0
      %v2693 = vadd.f32 %v2691, %v2692
      %v2694 = vsel %vm2640, %v2635, 0.0
      %v2695 = vadd.f32 %v2693, %v2694
      %v2696 = vsel %vm2640, %v2636, 0.0
      %v2697 = vadd.f32 %v2695, %v2696
      %v2698 = vsel %vm2640, %v2637, 0.0
      %v2699 = vadd.f32 %v2697, %v2698
      %v2700 = vsel %vm2640, %v2638, 0.0
      %v2701 = vadd.f32 %v2699, %v2700
      %v2702 = vsel %vm2640, %v2639, 0.0
      %v2703 = vadd.f32 %v2701, %v2702
      %v2704 = vrot.slane %v2703, 4
      %v2705 = vadd.f32 %v2703, %v2704
      %v2706 = vrot.slane %v2705, 2
      %v2707 = vadd.f32 %v2705, %v2706
      %v2708 = vrot.slane %v2707, 1
      %v2709 = vadd.f32 %v2707, %v2708
      %v2710 = vmul.f32 %v2608, %v2608
      %v2711 = vmul.f32 %v2609, %v2609
      %v2712 = vmul.f32 %v2610, %v2610
      %v2713 = vmul.f32 %v2611, %v2611
      %v2714 = vmul.f32 %v2612, %v2612
      %v2715 = vmul.f32 %v2613, %v2613
      %v2716 = vmul.f32 %v2614, %v2614
      %v2717 = vmul.f32 %v2615, %v2615
      %v2718 = vmul.f32 %v2616, %v2616
      %v2719 = vmul.f32 %v2617, %v2617
      %v2720 = vmul.f32 %v2618, %v2618
      %v2721 = vmul.f32 %v2619, %v2619
      %v2722 = vmul.f32 %v2620, %v2620
      %v2723 = vmul.f32 %v2621, %v2621
      %v2724 = vmul.f32 %v2622, %v2622
      %v2725 = vmul.f32 %v2623, %v2623
      %v2726 = vmul.f32 %v2624, %v2624
      %v2727 = vmul.f32 %v2625, %v2625
      %v2728 = vmul.f32 %v2626, %v2626
      %v2729 = vmul.f32 %v2627, %v2627
      %v2730 = vmul.f32 %v2628, %v2628
      %v2731 = vmul.f32 %v2629, %v2629
      %v2732 = vmul.f32 %v2630, %v2630
      %v2733 = vmul.f32 %v2631, %v2631
      %v2734 = vmul.f32 %v2632, %v2632
      %v2735 = vmul.f32 %v2633, %v2633
      %v2736 = vmul.f32 %v2634, %v2634
      %v2737 = vmul.f32 %v2635, %v2635
      %v2738 = vmul.f32 %v2636, %v2636
      %v2739 = vmul.f32 %v2637, %v2637
      %v2740 = vmul.f32 %v2638, %v2638
      %v2741 = vmul.f32 %v2639, %v2639
      %v2742 = vsel %vm2640, %v2710, 0.0
      %v2743 = vsel %vm2640, %v2711, 0.0
      %v2744 = vadd.f32 %v2742, %v2743
      %v2745 = vsel %vm2640, %v2712, 0.0
      %v2746 = vadd.f32 %v2744, %v2745
      %v2747 = vsel %vm2640, %v2713, 0.0
      %v2748 = vadd.f32 %v2746, %v2747
      %v2749 = vsel %vm2640, %v2714, 0.0
      %v2750 = vadd.f32 %v2748, %v2749
      %v2751 = vsel %vm2640, %v2715, 0.0
      %v2752 = vadd.f32 %v2750, %v2751
      %v2753 = vsel %vm2640, %v2716, 0.0
      %v2754 = vadd.f32 %v2752, %v2753
      %v2755 = vsel %vm2640, %v2717, 0.0
      %v2756 = vadd.f32 %v2754, %v2755
      %v2757 = vsel %vm2640, %v2718, 0.0
      %v2758 = vadd.f32 %v2756, %v2757
      %v2759 = vsel %vm2640, %v2719, 0.0
      %v2760 = vadd.f32 %v2758, %v2759
      %v2761 = vsel %vm2640, %v2720, 0.0
      %v2762 = vadd.f32 %v2760, %v2761
      %v2763 = vsel %vm2640, %v2721, 0.0
      %v2764 = vadd.f32 %v2762, %v2763
      %v2765 = vsel %vm2640, %v2722, 0.0
      %v2766 = vadd.f32 %v2764, %v2765
      %v2767 = vsel %vm2640, %v2723, 0.0
      %v2768 = vadd.f32 %v2766, %v2767
      %v2769 = vsel %vm2640, %v2724, 0.0
      %v2770 = vadd.f32 %v2768, %v2769
      %v2771 = vsel %vm2640, %v2725, 0.0
      %v2772 = vadd.f32 %v2770, %v2771
      %v2773 = vsel %vm2640, %v2726, 0.0
      %v2774 = vadd.f32 %v2772, %v2773
      %v2775 = vsel %vm2640, %v2727, 0.0
      %v2776 = vadd.f32 %v2774, %v2775
      %v2777 = vsel %vm2640, %v2728, 0.0
      %v2778 = vadd.f32 %v2776, %v2777
      %v2779 = vsel %vm2640, %v2729, 0.0
      %v2780 = vadd.f32 %v2778, %v2779
      %v2781 = vsel %vm2640, %v2730, 0.0
      %v2782 = vadd.f32 %v2780, %v2781
      %v2783 = vsel %vm2640, %v2731, 0.0
      %v2784 = vadd.f32 %v2782, %v2783
      %v2785 = vsel %vm2640, %v2732, 0.0
      %v2786 = vadd.f32 %v2784, %v2785
      %v2787 = vsel %vm2640, %v2733, 0.0
      %v2788 = vadd.f32 %v2786, %v2787
      %v2789 = vsel %vm2640, %v2734, 0.0
      %v2790 = vadd.f32 %v2788, %v2789
      %v2791 = vsel %vm2640, %v2735, 0.0
      %v2792 = vadd.f32 %v2790, %v2791
      %v2793 = vsel %vm2640, %v2736, 0.0
      %v2794 = vadd.f32 %v2792, %v2793
      %v2795 = vsel %vm2640, %v2737, 0.0
      %v2796 = vadd.f32 %v2794, %v2795
      %v2797 = vsel %vm2640, %v2738, 0.0
      %v2798 = vadd.f32 %v2796, %v2797
      %v2799 = vsel %vm2640, %v2739, 0.0
      %v2800 = vadd.f32 %v2798, %v2799
      %v2801 = vsel %vm2640, %v2740, 0.0
      %v2802 = vadd.f32 %v2800, %v2801
      %v2803 = vsel %vm2640, %v2741, 0.0
      %v2804 = vadd.f32 %v2802, %v2803
      %v2805 = vrot.slane %v2804, 4
      %v2806 = vadd.f32 %v2804, %v2805
      %v2807 = vrot.slane %v2806, 2
      %v2808 = vadd.f32 %v2806, %v2807
      %v2809 = vrot.slane %v2808, 1
      %v2810 = vadd.f32 %v2808, %v2809
      %vm2811 = vcmask 1040384
      %v2812 = vsel %vm2811, %v2709, %v2810
      %vm2813 = vcmask 58368
      %2814 = vst.msk [vmem:[%s316] sm:$0x3] %vm2813, %v2812
      %s2815 = smul.u32 32, %s17
      %p2816 = scmp.lt.s32.totalorder %s2815, 95
      %s2817 = scalar_select %p2816, %s2815, 95
      %s2818 = smul.addr %s2817, 4
      %s2819 = scalar_lea.vmem %s4, %s2818
      %p2820 = scmp.lt.s32.totalorder %s17, 2
      %s2821 = scalar_select %p2820, %s17, 2
      %s2822 = smul.addr %s2821, 2
      %s2823 = scalar_lea.vmem %s5, %s2822
      // Predicated region
      $region37: #{bnlrcnn_forward.2} parent=35 // pred_check
        %p2824 = pneg %p138
      $region38: #{bnlrcnn_forward.2} parent=35 // pred_check_branch
        %2826 = sbr.rel (%p2824) target = $region40
      $region39: #{bnlrcnn_forward.2} parent=35 // pred_region
        %s2827 = smul.u32 32, %s17
      $region40: #{bnlrcnn_forward.2} parent=35 // pred_fallthru
        _
      // Predicated region
      $region41: #{bnlrcnn_forward.2} parent=35 // pred_check
        %p2828 = pneg %p164
      $region42: #{bnlrcnn_forward.2} parent=35 // pred_check_branch
        %2830 = sbr.rel (%p2828) target = $region44
      $region43: #{bnlrcnn_forward.2} parent=35 // pred_region
        _
      $region44: #{bnlrcnn_forward.2} parent=35 // pred_fallthru
        _
    $region36: #{bnlrcnn_forward.2} parent=5 // pred_fallthru
      _
    %p2831 = scmp.le.s32.totalorder 2, %s12
    // Predicated region
    $region45: #{bnlrcnn_forward.2} parent=5 // pred_check
      %p2832 = pneg %p2831
    $region46: #{bnlrcnn_forward.2} parent=5 // pred_check_branch
      %2834 = sbr.rel (%p2832) target = $region48
    $region47: #{bnlrcnn_forward.2} parent=5 // pred_region
      %s2835 = ssub.s32 %s12, 2
      // Predicated region
      $region49: #{bnlrcnn_forward.2} parent=47 // pred_check
        %p2836 = pneg %p144
      $region50: #{bnlrcnn_forward.2} parent=47 // pred_check_branch
        %2838 = sbr.rel (%p2836) target = $region52
      $region51: #{bnlrcnn_forward.2} parent=47 // pred_region
        %s2839 = smul.u32 32, %s18
        %p2840 = scmp.lt.s32.totalorder %s2839, 95
        %s2841 = scalar_select %p2840, %s2839, 95
        %s2842 = smul.addr %s2841, 4
        %s2843 = scalar_lea.vmem %s4, %s2842
      $region52: #{bnlrcnn_forward.2} parent=47 // pred_fallthru
        _
      // Predicated region
      $region53: #{bnlrcnn_forward.2} parent=47 // pred_check
        %p2844 = pneg %p170
      $region54: #{bnlrcnn_forward.2} parent=47 // pred_check_branch
        %2846 = sbr.rel (%p2844) target = $region56
      $region55: #{bnlrcnn_forward.2} parent=47 // pred_region
        %p2847 = scmp.lt.s32.totalorder %s18, 2
        %s2848 = scalar_select %p2847, %s18, 2
        %s2849 = smul.addr %s2848, 2
        %s2850 = scalar_lea.vmem %s5, %s2849
      $region56: #{bnlrcnn_forward.2} parent=47 // pred_fallthru
        _
    $region48: #{bnlrcnn_forward.2} parent=5 // pred_fallthru
      _
  $region6: #{bnlrcnn_forward.2} parent=0 // loop_footer
    %s16 = sadd.s32 1, %s12
  $region7: #{bnlrcnn_forward.2} parent=0 // loop_footer_branch
    %11 = sbr.rel target = $region3
  $region8: #{bnlrcnn_forward.2} parent=0 // loop_exit
    _

</llo_original>
